<compile_context>
chip_gen: v5e
topology: v5e:2x2
jax: 0.10.0
libtpu: 0.0.40
codegen_flags: <defaults>
</compile_context>

<pallas_src>
import functools

import jax
import jax.numpy as jnp
import numpy as np
from jax.experimental import pallas as pl
from jax.experimental.pallas import tpu as pltpu


def _conv3d_relu_kernel(x_ref, w_ref, b_ref, coord_ref, o_ref,
                        *, D, H, W, K, pad, nb):
    # x_ref    : (nb, C_in, D*H*W)    activations, spatial flattened into lanes
    # w_ref    : (C_out, C_in*K^3)    weights, columns ordered (kd, kh, kw, ci)
    # b_ref    : (C_out, 1)           bias (f32)
    # coord_ref: (3, D*H*W)           int32 d/h/w coordinate planes
    # o_ref    : (nb, C_out, D*H*W)   output, lane-dense, channels-first
    C_in = x_ref.shape[1]
    C_out = o_ref.shape[1]
    HW = H * W
    DHW = D * HW

    d_pl = coord_ref[0:1, :]
    h_pl = coord_ref[1:2, :]
    w_pl = coord_ref[2:3, :]

    # Static per-tap metadata: lane shift, in-volume mask (None == all valid),
    # and the (C_out, C_in) weight slice.  Hoisted out of the batch loop.
    taps = []
    for kd in range(K):
        for kh in range(K):
            for kw in range(K):
                t = (kd * K + kh) * K + kw
                dz, hz, wz = kd - pad, kh - pad, kw - pad
                shift = dz * HW + hz * W + wz
                conds = []
                if dz < 0:
                    conds.append(d_pl >= -dz)
                if dz > 0:
                    conds.append(d_pl < D - dz)
                if hz < 0:
                    conds.append(h_pl >= -hz)
                if hz > 0:
                    conds.append(h_pl < H - hz)
                if wz < 0:
                    conds.append(w_pl >= -wz)
                if wz > 0:
                    conds.append(w_pl < W - wz)
                mask = None
                for c in conds:
                    mask = c if mask is None else (mask & c)
                w_t = w_ref[:, t * C_in:(t + 1) * C_in]        # (C_out, C_in)
                taps.append((shift, mask, w_t))

    bias = b_ref[...]                                          # (C_out, 1) f32

    for i in range(nb):
        x = x_ref[i]                                           # (C_in, DHW)
        acc = jnp.zeros((C_out, DHW), jnp.float32)
        for shift, mask, w_t in taps:
            # XLU lane rotation; lanes that wrap around are exactly the
            # out-of-volume positions the boundary mask zeroes below.
            shifted = x if shift == 0 else pltpu.roll(x, (-shift) % DHW, axis=1)
            chunk = shifted if mask is None else jnp.where(mask, shifted, 0.0)
            acc = acc + jax.lax.dot_general(
                w_t, chunk,
                dimension_numbers=(((1,), (0,)), ((), ())),
                preferred_element_type=jnp.float32)
        y = jnp.maximum(acc + bias, 0.0)                       # bias + ReLU
        o_ref[i] = y.astype(o_ref.dtype)                       # lane-dense store


@functools.partial(jax.jit,
                   static_argnames=("kernel_size", "stride", "batch_per_step"))
def three_ds2t_forward(x_ncdhw, weight_oikkk, bias, *, kernel_size=3, stride=1,
                       batch_per_step=1):
    """Forward pass of ThreeDS2T, PyTorch conventions:
       x: (N, C_in, D, H, W); weight: (C_out, C_in, K, K, K); bias: (C_out,).
       Returns (N, C_out, D, H, W)."""
    assert stride == 1, "ThreeDS2T is instantiated with stride=1"
    K = kernel_size
    pad = K // 2
    N, C_in, D, H, W = x_ncdhw.shape
    C_out = weight_oikkk.shape[0]
    HW, DHW = H * W, D * H * W
    R = C_in * K * K * K
    nb = batch_per_step
    assert N % nb == 0, "batch_per_step must divide the batch size"

    # Free (metadata-only) relayouts: stay channels-first, flatten spatial dims.
    x3 = x_ncdhw.reshape(N, C_in, DHW)
    # Weight as (C_out, C_in*K^3) with column order (kd, kh, kw, c_in).
    w_mat = jnp.transpose(weight_oikkk, (0, 2, 3, 4, 1)).reshape(C_out, R)
    b2 = bias.reshape(C_out, 1).astype(jnp.float32)

    # int32 coordinate planes (d, h, w) for every flattened voxel; the kernel
    # derives the K^3 boundary masks from these with a few integer compares.
    p = np.arange(DHW, dtype=np.int32)
    coords = jnp.asarray(np.stack([p // HW, (p // W) % H, p % W]))

    kernel = functools.partial(_conv3d_relu_kernel,
                               D=D, H=H, W=W, K=K, pad=pad, nb=nb)

    # TODO(synk): for large volumes where the per-step working set (activation
    # tile + f32 (C_out, DHW) accumulator) outgrows vregs/VMEM, add a spatial
    # D-tile grid axis with a +/-pad halo and per-tile coordinate planes.
    out3 = pl.pallas_call(
        kernel,
        out_shape=jax.ShapeDtypeStruct((N, C_out, DHW), x_ncdhw.dtype),
        grid_spec=pltpu.PrefetchScalarGridSpec(
            num_scalar_prefetch=0,
            grid=(N // nb,),
            in_specs=[
                pl.BlockSpec((nb, C_in, DHW), lambda n: (n, 0, 0)),
                pl.BlockSpec((C_out, R), lambda n: (0, 0)),
                pl.BlockSpec((C_out, 1), lambda n: (0, 0)),
                pl.BlockSpec((3, DHW), lambda n: (0, 0)),
            ],
            out_specs=pl.BlockSpec((nb, C_out, DHW), lambda n: (n, 0, 0)),
        ),
        compiler_params=pltpu.CompilerParams(
            # Batch steps shard across the two TensorCores on v7x.
            dimension_semantics=("parallel",),
            # Explicit limit: far above this kernel's working set, and within
            # physical VMEM on v5e (128 MiB), v6e (128 MiB) and v7x (64 MiB).
            vmem_limit_bytes=32 * 1024 * 1024,
        ),
    )(x3, w_mat, b2, coords)

    # Free reshape back to NCDHW (kernel already produced channels-first output).
    return out3.reshape(N, C_out, D, H, W)


def _reference_forward(x_ncdhw, weight_oikkk, bias, kernel_size=3):
    pad = kernel_size // 2
    y = jax.lax.conv_general_dilated(
        x_ncdhw, weight_oikkk,
        window_strides=(1, 1, 1),
        padding=((pad, pad), (pad, pad), (pad, pad)),
        dimension_numbers=("NCDHW", "OIDHW", "NCDHW"),
    )
    y = y + bias[None, :, None, None, None]
    return jnp.maximum(y, 0.0)


if __name__ == "__main__":
    # Small synthetic shapes consistent with the module.
    N, C_in, C_out = 2, 4, 4
    D = H = W = 8
    K = 3

    key = jax.random.PRNGKey(0)
    kx, kw_, kb = jax.random.split(key, 3)

    x = jax.random.normal(kx, (N, C_in, D, H, W), dtype=jnp.float32)

    # Deterministic PyTorch-style init: U(-bound, bound), bound = 1/sqrt(C_in*K^3).
    fan_in = C_in * K * K * K
    bound = 1.0 / np.sqrt(fan_in)
    weight = jax.random.uniform(kw_, (C_out, C_in, K, K, K),
                                minval=-bound, maxval=bound, dtype=jnp.float32)
    bias = jax.random.uniform(kb, (C_out,), minval=-bound, maxval=bound,
                              dtype=jnp.float32)

    ref = jax.block_until_ready(_reference_forward(x, weight, bias, kernel_size=K))

    # Default path: one batch element per grid step (>= 2 parallel steps on v7x).
    out = three_ds2t_forward(x, weight, bias, kernel_size=K, stride=1)
    out = jax.block_until_ready(out)
    np.testing.assert_allclose(np.asarray(out), np.asarray(ref),
                               atol=1e-4, rtol=1e-3)

    # Multi-element-per-step path (amortizes per-grid-step overhead for
    # small-volume / large-N workloads).
    out2 = three_ds2t_forward(x, weight, bias, kernel_size=K, stride=1,
                              batch_per_step=2)
    out2 = jax.block_until_ready(out2)
    np.testing.assert_allclose(np.asarray(out2), np.asarray(ref),
                               atol=1e-4, rtol=1e-3)

    print("KERNEL_OK")
</pallas_src>

<mosaic_0001>
module attributes {stable_mosaic.version = 11 : i64} {
  func.func @_conv3d_relu_kernel(%arg0: i32, %arg1: memref<1x4x512xf32, #tpu.memory_space<vmem>>, %arg2: memref<4x108xf32, #tpu.memory_space<vmem>>, %arg3: memref<4x1xf32, #tpu.memory_space<vmem>>, %arg4: memref<3x512xi32, #tpu.memory_space<vmem>>, %arg5: memref<1x4x512xf32, #tpu.memory_space<vmem>>) attributes {dimension_semantics = [#tpu.dimension_semantics<parallel>], iteration_bounds = array<i64: 2>, scalar_prefetch = 0 : i64, scratch_operands = 0 : i64, tpu.core_type = #tpu.core_type<tc>, window_params = [{transform_indices = @transform_0, window_bounds = array<i64: 1, 4, 512>}, {pipeline_mode = #tpu.pipeline_mode<synchronous>, transform_indices = @transform_1, window_bounds = array<i64: 4, 108>}, {pipeline_mode = #tpu.pipeline_mode<synchronous>, transform_indices = @transform_2, window_bounds = array<i64: 4, 1>}, {pipeline_mode = #tpu.pipeline_mode<synchronous>, transform_indices = @transform_3, window_bounds = array<i64: 3, 512>}, {transform_indices = @transform_4, window_bounds = array<i64: 1, 4, 512>}]} {
    %c0 = arith.constant 0 : index
    %c0_0 = arith.constant 0 : index
    %0 = vector.load %arg4[%c0, %c0_0] : memref<3x512xi32, #tpu.memory_space<vmem>>, vector<1x512xi32>
    %c1 = arith.constant 1 : index
    %c0_1 = arith.constant 0 : index
    %1 = vector.load %arg4[%c1, %c0_1] : memref<3x512xi32, #tpu.memory_space<vmem>>, vector<1x512xi32>
    %c2 = arith.constant 2 : index
    %c0_2 = arith.constant 0 : index
    %2 = vector.load %arg4[%c2, %c0_2] : memref<3x512xi32, #tpu.memory_space<vmem>>, vector<1x512xi32>
    %c1_i32 = arith.constant 1 : i32
    %3 = vector.broadcast %c1_i32 : i32 to vector<1x512xi32>
    %4 = arith.cmpi sge, %0, %3 : vector<1x512xi32>
    %c1_i32_3 = arith.constant 1 : i32
    %5 = vector.broadcast %c1_i32_3 : i32 to vector<1x512xi32>
    %6 = arith.cmpi sge, %1, %5 : vector<1x512xi32>
    %c1_i32_4 = arith.constant 1 : i32
    %7 = vector.broadcast %c1_i32_4 : i32 to vector<1x512xi32>
    %8 = arith.cmpi sge, %2, %7 : vector<1x512xi32>
    %9 = arith.andi %4, %6 : vector<1x512xi1>
    %10 = arith.andi %9, %8 : vector<1x512xi1>
    %c0_5 = arith.constant 0 : index
    %c0_6 = arith.constant 0 : index
    %11 = vector.load %arg2[%c0_5, %c0_6] : memref<4x108xf32, #tpu.memory_space<vmem>>, vector<4x4xf32>
    %c1_i32_7 = arith.constant 1 : i32
    %12 = vector.broadcast %c1_i32_7 : i32 to vector<1x512xi32>
    %13 = arith.cmpi sge, %0, %12 : vector<1x512xi32>
    %c1_i32_8 = arith.constant 1 : i32
    %14 = vector.broadcast %c1_i32_8 : i32 to vector<1x512xi32>
    %15 = arith.cmpi sge, %1, %14 : vector<1x512xi32>
    %16 = arith.andi %13, %15 : vector<1x512xi1>
    %c0_9 = arith.constant 0 : index
    %c4 = arith.constant 4 : index
    %17 = vector.load %arg2[%c0_9, %c4] : memref<4x108xf32, #tpu.memory_space<vmem>>, vector<4x4xf32>
    %c1_i32_10 = arith.constant 1 : i32
    %18 = vector.broadcast %c1_i32_10 : i32 to vector<1x512xi32>
    %19 = arith.cmpi sge, %0, %18 : vector<1x512xi32>
    %c1_i32_11 = arith.constant 1 : i32
    %20 = vector.broadcast %c1_i32_11 : i32 to vector<1x512xi32>
    %21 = arith.cmpi sge, %1, %20 : vector<1x512xi32>
    %c7_i32 = arith.constant 7 : i32
    %22 = vector.broadcast %c7_i32 : i32 to vector<1x512xi32>
    %23 = arith.cmpi slt, %2, %22 : vector<1x512xi32>
    %24 = arith.andi %19, %21 : vector<1x512xi1>
    %25 = arith.andi %24, %23 : vector<1x512xi1>
    %c0_12 = arith.constant 0 : index
    %c8 = arith.constant 8 : index
    %26 = vector.load %arg2[%c0_12, %c8] : memref<4x108xf32, #tpu.memory_space<vmem>>, vector<4x4xf32>
    %c1_i32_13 = arith.constant 1 : i32
    %27 = vector.broadcast %c1_i32_13 : i32 to vector<1x512xi32>
    %28 = arith.cmpi sge, %0, %27 : vector<1x512xi32>
    %c1_i32_14 = arith.constant 1 : i32
    %29 = vector.broadcast %c1_i32_14 : i32 to vector<1x512xi32>
    %30 = arith.cmpi sge, %2, %29 : vector<1x512xi32>
    %31 = arith.andi %28, %30 : vector<1x512xi1>
    %c0_15 = arith.constant 0 : index
    %c12 = arith.constant 12 : index
    %32 = vector.load %arg2[%c0_15, %c12] : memref<4x108xf32, #tpu.memory_space<vmem>>, vector<4x4xf32>
    %c1_i32_16 = arith.constant 1 : i32
    %33 = vector.broadcast %c1_i32_16 : i32 to vector<1x512xi32>
    %34 = arith.cmpi sge, %0, %33 : vector<1x512xi32>
    %c0_17 = arith.constant 0 : index
    %c16 = arith.constant 16 : index
    %35 = vector.load %arg2[%c0_17, %c16] : memref<4x108xf32, #tpu.memory_space<vmem>>, vector<4x4xf32>
    %c1_i32_18 = arith.constant 1 : i32
    %36 = vector.broadcast %c1_i32_18 : i32 to vector<1x512xi32>
    %37 = arith.cmpi sge, %0, %36 : vector<1x512xi32>
    %c7_i32_19 = arith.constant 7 : i32
    %38 = vector.broadcast %c7_i32_19 : i32 to vector<1x512xi32>
    %39 = arith.cmpi slt, %2, %38 : vector<1x512xi32>
    %40 = arith.andi %37, %39 : vector<1x512xi1>
    %c0_20 = arith.constant 0 : index
    %c20 = arith.constant 20 : index
    %41 = vector.load %arg2[%c0_20, %c20] : memref<4x108xf32, #tpu.memory_space<vmem>>, vector<4x4xf32>
    %c1_i32_21 = arith.constant 1 : i32
    %42 = vector.broadcast %c1_i32_21 : i32 to vector<1x512xi32>
    %43 = arith.cmpi sge, %0, %42 : vector<1x512xi32>
    %c7_i32_22 = arith.constant 7 : i32
    %44 = vector.broadcast %c7_i32_22 : i32 to vector<1x512xi32>
    %45 = arith.cmpi slt, %1, %44 : vector<1x512xi32>
    %c1_i32_23 = arith.constant 1 : i32
    %46 = vector.broadcast %c1_i32_23 : i32 to vector<1x512xi32>
    %47 = arith.cmpi sge, %2, %46 : vector<1x512xi32>
    %48 = arith.andi %43, %45 : vector<1x512xi1>
    %49 = arith.andi %48, %47 : vector<1x512xi1>
    %c0_24 = arith.constant 0 : index
    %c24 = arith.constant 24 : index
    %50 = vector.load %arg2[%c0_24, %c24] : memref<4x108xf32, #tpu.memory_space<vmem>>, vector<4x4xf32>
    %c1_i32_25 = arith.constant 1 : i32
    %51 = vector.broadcast %c1_i32_25 : i32 to vector<1x512xi32>
    %52 = arith.cmpi sge, %0, %51 : vector<1x512xi32>
    %c7_i32_26 = arith.constant 7 : i32
    %53 = vector.broadcast %c7_i32_26 : i32 to vector<1x512xi32>
    %54 = arith.cmpi slt, %1, %53 : vector<1x512xi32>
    %55 = arith.andi %52, %54 : vector<1x512xi1>
    %c0_27 = arith.constant 0 : index
    %c28 = arith.constant 28 : index
    %56 = vector.load %arg2[%c0_27, %c28] : memref<4x108xf32, #tpu.memory_space<vmem>>, vector<4x4xf32>
    %c1_i32_28 = arith.constant 1 : i32
    %57 = vector.broadcast %c1_i32_28 : i32 to vector<1x512xi32>
    %58 = arith.cmpi sge, %0, %57 : vector<1x512xi32>
    %c7_i32_29 = arith.constant 7 : i32
    %59 = vector.broadcast %c7_i32_29 : i32 to vector<1x512xi32>
    %60 = arith.cmpi slt, %1, %59 : vector<1x512xi32>
    %c7_i32_30 = arith.constant 7 : i32
    %61 = vector.broadcast %c7_i32_30 : i32 to vector<1x512xi32>
    %62 = arith.cmpi slt, %2, %61 : vector<1x512xi32>
    %63 = arith.andi %58, %60 : vector<1x512xi1>
    %64 = arith.andi %63, %62 : vector<1x512xi1>
    %c0_31 = arith.constant 0 : index
    %c32 = arith.constant 32 : index
    %65 = vector.load %arg2[%c0_31, %c32] : memref<4x108xf32, #tpu.memory_space<vmem>>, vector<4x4xf32>
    %c1_i32_32 = arith.constant 1 : i32
    %66 = vector.broadcast %c1_i32_32 : i32 to vector<1x512xi32>
    %67 = arith.cmpi sge, %1, %66 : vector<1x512xi32>
    %c1_i32_33 = arith.constant 1 : i32
    %68 = vector.broadcast %c1_i32_33 : i32 to vector<1x512xi32>
    %69 = arith.cmpi sge, %2, %68 : vector<1x512xi32>
    %70 = arith.andi %67, %69 : vector<1x512xi1>
    %c0_34 = arith.constant 0 : index
    %c36 = arith.constant 36 : index
    %71 = vector.load %arg2[%c0_34, %c36] : memref<4x108xf32, #tpu.memory_space<vmem>>, vector<4x4xf32>
    %c1_i32_35 = arith.constant 1 : i32
    %72 = vector.broadcast %c1_i32_35 : i32 to vector<1x512xi32>
    %73 = arith.cmpi sge, %1, %72 : vector<1x512xi32>
    %c0_36 = arith.constant 0 : index
    %c40 = arith.constant 40 : index
    %74 = vector.load %arg2[%c0_36, %c40] : memref<4x108xf32, #tpu.memory_space<vmem>>, vector<4x4xf32>
    %c1_i32_37 = arith.constant 1 : i32
    %75 = vector.broadcast %c1_i32_37 : i32 to vector<1x512xi32>
    %76 = arith.cmpi sge, %1, %75 : vector<1x512xi32>
    %c7_i32_38 = arith.constant 7 : i32
    %77 = vector.broadcast %c7_i32_38 : i32 to vector<1x512xi32>
    %78 = arith.cmpi slt, %2, %77 : vector<1x512xi32>
    %79 = arith.andi %76, %78 : vector<1x512xi1>
    %c0_39 = arith.constant 0 : index
    %c44 = arith.constant 44 : index
    %80 = vector.load %arg2[%c0_39, %c44] : memref<4x108xf32, #tpu.memory_space<vmem>>, vector<4x4xf32>
    %c1_i32_40 = arith.constant 1 : i32
    %81 = vector.broadcast %c1_i32_40 : i32 to vector<1x512xi32>
    %82 = arith.cmpi sge, %2, %81 : vector<1x512xi32>
    %c0_41 = arith.constant 0 : index
    %c48 = arith.constant 48 : index
    %83 = vector.load %arg2[%c0_41, %c48] : memref<4x108xf32, #tpu.memory_space<vmem>>, vector<4x4xf32>
    %c0_42 = arith.constant 0 : index
    %c52 = arith.constant 52 : index
    %84 = vector.load %arg2[%c0_42, %c52] : memref<4x108xf32, #tpu.memory_space<vmem>>, vector<4x4xf32>
    %c7_i32_43 = arith.constant 7 : i32
    %85 = vector.broadcast %c7_i32_43 : i32 to vector<1x512xi32>
    %86 = arith.cmpi slt, %2, %85 : vector<1x512xi32>
    %c0_44 = arith.constant 0 : index
    %c56 = arith.constant 56 : index
    %87 = vector.load %arg2[%c0_44, %c56] : memref<4x108xf32, #tpu.memory_space<vmem>>, vector<4x4xf32>
    %c7_i32_45 = arith.constant 7 : i32
    %88 = vector.broadcast %c7_i32_45 : i32 to vector<1x512xi32>
    %89 = arith.cmpi slt, %1, %88 : vector<1x512xi32>
    %c1_i32_46 = arith.constant 1 : i32
    %90 = vector.broadcast %c1_i32_46 : i32 to vector<1x512xi32>
    %91 = arith.cmpi sge, %2, %90 : vector<1x512xi32>
    %92 = arith.andi %89, %91 : vector<1x512xi1>
    %c0_47 = arith.constant 0 : index
    %c60 = arith.constant 60 : index
    %93 = vector.load %arg2[%c0_47, %c60] : memref<4x108xf32, #tpu.memory_space<vmem>>, vector<4x4xf32>
    %c7_i32_48 = arith.constant 7 : i32
    %94 = vector.broadcast %c7_i32_48 : i32 to vector<1x512xi32>
    %95 = arith.cmpi slt, %1, %94 : vector<1x512xi32>
    %c0_49 = arith.constant 0 : index
    %c64 = arith.constant 64 : index
    %96 = vector.load %arg2[%c0_49, %c64] : memref<4x108xf32, #tpu.memory_space<vmem>>, vector<4x4xf32>
    %c7_i32_50 = arith.constant 7 : i32
    %97 = vector.broadcast %c7_i32_50 : i32 to vector<1x512xi32>
    %98 = arith.cmpi slt, %1, %97 : vector<1x512xi32>
    %c7_i32_51 = arith.constant 7 : i32
    %99 = vector.broadcast %c7_i32_51 : i32 to vector<1x512xi32>
    %100 = arith.cmpi slt, %2, %99 : vector<1x512xi32>
    %101 = arith.andi %98, %100 : vector<1x512xi1>
    %c0_52 = arith.constant 0 : index
    %c68 = arith.constant 68 : index
    %102 = vector.load %arg2[%c0_52, %c68] : memref<4x108xf32, #tpu.memory_space<vmem>>, vector<4x4xf32>
    %c7_i32_53 = arith.constant 7 : i32
    %103 = vector.broadcast %c7_i32_53 : i32 to vector<1x512xi32>
    %104 = arith.cmpi slt, %0, %103 : vector<1x512xi32>
    %c1_i32_54 = arith.constant 1 : i32
    %105 = vector.broadcast %c1_i32_54 : i32 to vector<1x512xi32>
    %106 = arith.cmpi sge, %1, %105 : vector<1x512xi32>
    %c1_i32_55 = arith.constant 1 : i32
    %107 = vector.broadcast %c1_i32_55 : i32 to vector<1x512xi32>
    %108 = arith.cmpi sge, %2, %107 : vector<1x512xi32>
    %109 = arith.andi %104, %106 : vector<1x512xi1>
    %110 = arith.andi %109, %108 : vector<1x512xi1>
    %c0_56 = arith.constant 0 : index
    %c72 = arith.constant 72 : index
    %111 = vector.load %arg2[%c0_56, %c72] : memref<4x108xf32, #tpu.memory_space<vmem>>, vector<4x4xf32>
    %c7_i32_57 = arith.constant 7 : i32
    %112 = vector.broadcast %c7_i32_57 : i32 to vector<1x512xi32>
    %113 = arith.cmpi slt, %0, %112 : vector<1x512xi32>
    %c1_i32_58 = arith.constant 1 : i32
    %114 = vector.broadcast %c1_i32_58 : i32 to vector<1x512xi32>
    %115 = arith.cmpi sge, %1, %114 : vector<1x512xi32>
    %116 = arith.andi %113, %115 : vector<1x512xi1>
    %c0_59 = arith.constant 0 : index
    %c76 = arith.constant 76 : index
    %117 = vector.load %arg2[%c0_59, %c76] : memref<4x108xf32, #tpu.memory_space<vmem>>, vector<4x4xf32>
    %c7_i32_60 = arith.constant 7 : i32
    %118 = vector.broadcast %c7_i32_60 : i32 to vector<1x512xi32>
    %119 = arith.cmpi slt, %0, %118 : vector<1x512xi32>
    %c1_i32_61 = arith.constant 1 : i32
    %120 = vector.broadcast %c1_i32_61 : i32 to vector<1x512xi32>
    %121 = arith.cmpi sge, %1, %120 : vector<1x512xi32>
    %c7_i32_62 = arith.constant 7 : i32
    %122 = vector.broadcast %c7_i32_62 : i32 to vector<1x512xi32>
    %123 = arith.cmpi slt, %2, %122 : vector<1x512xi32>
    %124 = arith.andi %119, %121 : vector<1x512xi1>
    %125 = arith.andi %124, %123 : vector<1x512xi1>
    %c0_63 = arith.constant 0 : index
    %c80 = arith.constant 80 : index
    %126 = vector.load %arg2[%c0_63, %c80] : memref<4x108xf32, #tpu.memory_space<vmem>>, vector<4x4xf32>
    %c7_i32_64 = arith.constant 7 : i32
    %127 = vector.broadcast %c7_i32_64 : i32 to vector<1x512xi32>
    %128 = arith.cmpi slt, %0, %127 : vector<1x512xi32>
    %c1_i32_65 = arith.constant 1 : i32
    %129 = vector.broadcast %c1_i32_65 : i32 to vector<1x512xi32>
    %130 = arith.cmpi sge, %2, %129 : vector<1x512xi32>
    %131 = arith.andi %128, %130 : vector<1x512xi1>
    %c0_66 = arith.constant 0 : index
    %c84 = arith.constant 84 : index
    %132 = vector.load %arg2[%c0_66, %c84] : memref<4x108xf32, #tpu.memory_space<vmem>>, vector<4x4xf32>
    %c7_i32_67 = arith.constant 7 : i32
    %133 = vector.broadcast %c7_i32_67 : i32 to vector<1x512xi32>
    %134 = arith.cmpi slt, %0, %133 : vector<1x512xi32>
    %c0_68 = arith.constant 0 : index
    %c88 = arith.constant 88 : index
    %135 = vector.load %arg2[%c0_68, %c88] : memref<4x108xf32, #tpu.memory_space<vmem>>, vector<4x4xf32>
    %c7_i32_69 = arith.constant 7 : i32
    %136 = vector.broadcast %c7_i32_69 : i32 to vector<1x512xi32>
    %137 = arith.cmpi slt, %0, %136 : vector<1x512xi32>
    %c7_i32_70 = arith.constant 7 : i32
    %138 = vector.broadcast %c7_i32_70 : i32 to vector<1x512xi32>
    %139 = arith.cmpi slt, %2, %138 : vector<1x512xi32>
    %140 = arith.andi %137, %139 : vector<1x512xi1>
    %c0_71 = arith.constant 0 : index
    %c92 = arith.constant 92 : index
    %141 = vector.load %arg2[%c0_71, %c92] : memref<4x108xf32, #tpu.memory_space<vmem>>, vector<4x4xf32>
    %c7_i32_72 = arith.constant 7 : i32
    %142 = vector.broadcast %c7_i32_72 : i32 to vector<1x512xi32>
    %143 = arith.cmpi slt, %0, %142 : vector<1x512xi32>
    %c7_i32_73 = arith.constant 7 : i32
    %144 = vector.broadcast %c7_i32_73 : i32 to vector<1x512xi32>
    %145 = arith.cmpi slt, %1, %144 : vector<1x512xi32>
    %c1_i32_74 = arith.constant 1 : i32
    %146 = vector.broadcast %c1_i32_74 : i32 to vector<1x512xi32>
    %147 = arith.cmpi sge, %2, %146 : vector<1x512xi32>
    %148 = arith.andi %143, %145 : vector<1x512xi1>
    %149 = arith.andi %148, %147 : vector<1x512xi1>
    %c0_75 = arith.constant 0 : index
    %c96 = arith.constant 96 : index
    %150 = vector.load %arg2[%c0_75, %c96] : memref<4x108xf32, #tpu.memory_space<vmem>>, vector<4x4xf32>
    %c7_i32_76 = arith.constant 7 : i32
    %151 = vector.broadcast %c7_i32_76 : i32 to vector<1x512xi32>
    %152 = arith.cmpi slt, %0, %151 : vector<1x512xi32>
    %c7_i32_77 = arith.constant 7 : i32
    %153 = vector.broadcast %c7_i32_77 : i32 to vector<1x512xi32>
    %154 = arith.cmpi slt, %1, %153 : vector<1x512xi32>
    %155 = arith.andi %152, %154 : vector<1x512xi1>
    %c0_78 = arith.constant 0 : index
    %c100 = arith.constant 100 : index
    %156 = vector.load %arg2[%c0_78, %c100] : memref<4x108xf32, #tpu.memory_space<vmem>>, vector<4x4xf32>
    %c7_i32_79 = arith.constant 7 : i32
    %157 = vector.broadcast %c7_i32_79 : i32 to vector<1x512xi32>
    %158 = arith.cmpi slt, %0, %157 : vector<1x512xi32>
    %c7_i32_80 = arith.constant 7 : i32
    %159 = vector.broadcast %c7_i32_80 : i32 to vector<1x512xi32>
    %160 = arith.cmpi slt, %1, %159 : vector<1x512xi32>
    %c7_i32_81 = arith.constant 7 : i32
    %161 = vector.broadcast %c7_i32_81 : i32 to vector<1x512xi32>
    %162 = arith.cmpi slt, %2, %161 : vector<1x512xi32>
    %163 = arith.andi %158, %160 : vector<1x512xi1>
    %164 = arith.andi %163, %162 : vector<1x512xi1>
    %c0_82 = arith.constant 0 : index
    %c104 = arith.constant 104 : index
    %165 = vector.load %arg2[%c0_82, %c104] : memref<4x108xf32, #tpu.memory_space<vmem>>, vector<4x4xf32>
    %c0_83 = arith.constant 0 : index
    %c0_84 = arith.constant 0 : index
    %166 = vector.load %arg3[%c0_83, %c0_84] : memref<4x1xf32, #tpu.memory_space<vmem>>, vector<4x1xf32>
    %c0_85 = arith.constant 0 : index
    %c0_86 = arith.constant 0 : index
    %c0_87 = arith.constant 0 : index
    %167 = vector.load %arg1[%c0_85, %c0_86, %c0_87] : memref<1x4x512xf32, #tpu.memory_space<vmem>>, vector<1x4x512xf32>
    %168 = vector.shape_cast %167 : vector<1x4x512xf32> to vector<4x512xf32>
    %cst = arith.constant 0.000000e+00 : f32
    %169 = vector.broadcast %cst : f32 to vector<4x512xf32>
    %c73_i32 = arith.constant 73 : i32
    %170 = tpu.dynamic_rotate %168 by %c73_i32 dim 1 : vector<4x512xf32>, i32 -> vector<4x512xf32>
    %cst_88 = arith.constant 0.000000e+00 : f32
    %171 = vector.shape_cast %10 : vector<1x512xi1> to vector<1x512xi1>
    %172 = vector.broadcast %171 : vector<1x512xi1> to vector<4x512xi1>
    %173 = vector.broadcast %cst_88 : f32 to vector<4x512xf32>
    %174 = arith.select %172, %170, %173 : vector<4x512xi1>, vector<4x512xf32>
    %cst_89 = arith.constant dense<0.000000e+00> : vector<4x512xf32>
    %175 = tpu.matmul %11, %174, %cst_89 {dimension_numbers = #tpu.dot_dimension_numbers<[1], [0], [0], [1], [0, 0, 1, 1], [], []>} : vector<4x4xf32>, vector<4x512xf32>, vector<4x512xf32> -> vector<4x512xf32>
    %176 = arith.addf %169, %175 : vector<4x512xf32>
    %c72_i32 = arith.constant 72 : i32
    %177 = tpu.dynamic_rotate %168 by %c72_i32 dim 1 : vector<4x512xf32>, i32 -> vector<4x512xf32>
    %cst_90 = arith.constant 0.000000e+00 : f32
    %178 = vector.shape_cast %16 : vector<1x512xi1> to vector<1x512xi1>
    %179 = vector.broadcast %178 : vector<1x512xi1> to vector<4x512xi1>
    %180 = vector.broadcast %cst_90 : f32 to vector<4x512xf32>
    %181 = arith.select %179, %177, %180 : vector<4x512xi1>, vector<4x512xf32>
    %cst_91 = arith.constant dense<0.000000e+00> : vector<4x512xf32>
    %182 = tpu.matmul %17, %181, %cst_91 {dimension_numbers = #tpu.dot_dimension_numbers<[1], [0], [0], [1], [0, 0, 1, 1], [], []>} : vector<4x4xf32>, vector<4x512xf32>, vector<4x512xf32> -> vector<4x512xf32>
    %183 = arith.addf %176, %182 : vector<4x512xf32>
    %c71_i32 = arith.constant 71 : i32
    %184 = tpu.dynamic_rotate %168 by %c71_i32 dim 1 : vector<4x512xf32>, i32 -> vector<4x512xf32>
    %cst_92 = arith.constant 0.000000e+00 : f32
    %185 = vector.shape_cast %25 : vector<1x512xi1> to vector<1x512xi1>
    %186 = vector.broadcast %185 : vector<1x512xi1> to vector<4x512xi1>
    %187 = vector.broadcast %cst_92 : f32 to vector<4x512xf32>
    %188 = arith.select %186, %184, %187 : vector<4x512xi1>, vector<4x512xf32>
    %cst_93 = arith.constant dense<0.000000e+00> : vector<4x512xf32>
    %189 = tpu.matmul %26, %188, %cst_93 {dimension_numbers = #tpu.dot_dimension_numbers<[1], [0], [0], [1], [0, 0, 1, 1], [], []>} : vector<4x4xf32>, vector<4x512xf32>, vector<4x512xf32> -> vector<4x512xf32>
    %190 = arith.addf %183, %189 : vector<4x512xf32>
    %c65_i32 = arith.constant 65 : i32
    %191 = tpu.dynamic_rotate %168 by %c65_i32 dim 1 : vector<4x512xf32>, i32 -> vector<4x512xf32>
    %cst_94 = arith.constant 0.000000e+00 : f32
    %192 = vector.shape_cast %31 : vector<1x512xi1> to vector<1x512xi1>
    %193 = vector.broadcast %192 : vector<1x512xi1> to vector<4x512xi1>
    %194 = vector.broadcast %cst_94 : f32 to vector<4x512xf32>
    %195 = arith.select %193, %191, %194 : vector<4x512xi1>, vector<4x512xf32>
    %cst_95 = arith.constant dense<0.000000e+00> : vector<4x512xf32>
    %196 = tpu.matmul %32, %195, %cst_95 {dimension_numbers = #tpu.dot_dimension_numbers<[1], [0], [0], [1], [0, 0, 1, 1], [], []>} : vector<4x4xf32>, vector<4x512xf32>, vector<4x512xf32> -> vector<4x512xf32>
    %197 = arith.addf %190, %196 : vector<4x512xf32>
    %c64_i32 = arith.constant 64 : i32
    %198 = tpu.dynamic_rotate %168 by %c64_i32 dim 1 : vector<4x512xf32>, i32 -> vector<4x512xf32>
    %cst_96 = arith.constant 0.000000e+00 : f32
    %199 = vector.shape_cast %34 : vector<1x512xi1> to vector<1x512xi1>
    %200 = vector.broadcast %199 : vector<1x512xi1> to vector<4x512xi1>
    %201 = vector.broadcast %cst_96 : f32 to vector<4x512xf32>
    %202 = arith.select %200, %198, %201 : vector<4x512xi1>, vector<4x512xf32>
    %cst_97 = arith.constant dense<0.000000e+00> : vector<4x512xf32>
    %203 = tpu.matmul %35, %202, %cst_97 {dimension_numbers = #tpu.dot_dimension_numbers<[1], [0], [0], [1], [0, 0, 1, 1], [], []>} : vector<4x4xf32>, vector<4x512xf32>, vector<4x512xf32> -> vector<4x512xf32>
    %204 = arith.addf %197, %203 : vector<4x512xf32>
    %c63_i32 = arith.constant 63 : i32
    %205 = tpu.dynamic_rotate %168 by %c63_i32 dim 1 : vector<4x512xf32>, i32 -> vector<4x512xf32>
    %cst_98 = arith.constant 0.000000e+00 : f32
    %206 = vector.shape_cast %40 : vector<1x512xi1> to vector<1x512xi1>
    %207 = vector.broadcast %206 : vector<1x512xi1> to vector<4x512xi1>
    %208 = vector.broadcast %cst_98 : f32 to vector<4x512xf32>
    %209 = arith.select %207, %205, %208 : vector<4x512xi1>, vector<4x512xf32>
    %cst_99 = arith.constant dense<0.000000e+00> : vector<4x512xf32>
    %210 = tpu.matmul %41, %209, %cst_99 {dimension_numbers = #tpu.dot_dimension_numbers<[1], [0], [0], [1], [0, 0, 1, 1], [], []>} : vector<4x4xf32>, vector<4x512xf32>, vector<4x512xf32> -> vector<4x512xf32>
    %211 = arith.addf %204, %210 : vector<4x512xf32>
    %c57_i32 = arith.constant 57 : i32
    %212 = tpu.dynamic_rotate %168 by %c57_i32 dim 1 : vector<4x512xf32>, i32 -> vector<4x512xf32>
    %cst_100 = arith.constant 0.000000e+00 : f32
    %213 = vector.shape_cast %49 : vector<1x512xi1> to vector<1x512xi1>
    %214 = vector.broadcast %213 : vector<1x512xi1> to vector<4x512xi1>
    %215 = vector.broadcast %cst_100 : f32 to vector<4x512xf32>
    %216 = arith.select %214, %212, %215 : vector<4x512xi1>, vector<4x512xf32>
    %cst_101 = arith.constant dense<0.000000e+00> : vector<4x512xf32>
    %217 = tpu.matmul %50, %216, %cst_101 {dimension_numbers = #tpu.dot_dimension_numbers<[1], [0], [0], [1], [0, 0, 1, 1], [], []>} : vector<4x4xf32>, vector<4x512xf32>, vector<4x512xf32> -> vector<4x512xf32>
    %218 = arith.addf %211, %217 : vector<4x512xf32>
    %c56_i32 = arith.constant 56 : i32
    %219 = tpu.dynamic_rotate %168 by %c56_i32 dim 1 : vector<4x512xf32>, i32 -> vector<4x512xf32>
    %cst_102 = arith.constant 0.000000e+00 : f32
    %220 = vector.shape_cast %55 : vector<1x512xi1> to vector<1x512xi1>
    %221 = vector.broadcast %220 : vector<1x512xi1> to vector<4x512xi1>
    %222 = vector.broadcast %cst_102 : f32 to vector<4x512xf32>
    %223 = arith.select %221, %219, %222 : vector<4x512xi1>, vector<4x512xf32>
    %cst_103 = arith.constant dense<0.000000e+00> : vector<4x512xf32>
    %224 = tpu.matmul %56, %223, %cst_103 {dimension_numbers = #tpu.dot_dimension_numbers<[1], [0], [0], [1], [0, 0, 1, 1], [], []>} : vector<4x4xf32>, vector<4x512xf32>, vector<4x512xf32> -> vector<4x512xf32>
    %225 = arith.addf %218, %224 : vector<4x512xf32>
    %c55_i32 = arith.constant 55 : i32
    %226 = tpu.dynamic_rotate %168 by %c55_i32 dim 1 : vector<4x512xf32>, i32 -> vector<4x512xf32>
    %cst_104 = arith.constant 0.000000e+00 : f32
    %227 = vector.shape_cast %64 : vector<1x512xi1> to vector<1x512xi1>
    %228 = vector.broadcast %227 : vector<1x512xi1> to vector<4x512xi1>
    %229 = vector.broadcast %cst_104 : f32 to vector<4x512xf32>
    %230 = arith.select %228, %226, %229 : vector<4x512xi1>, vector<4x512xf32>
    %cst_105 = arith.constant dense<0.000000e+00> : vector<4x512xf32>
    %231 = tpu.matmul %65, %230, %cst_105 {dimension_numbers = #tpu.dot_dimension_numbers<[1], [0], [0], [1], [0, 0, 1, 1], [], []>} : vector<4x4xf32>, vector<4x512xf32>, vector<4x512xf32> -> vector<4x512xf32>
    %232 = arith.addf %225, %231 : vector<4x512xf32>
    %c9_i32 = arith.constant 9 : i32
    %233 = tpu.dynamic_rotate %168 by %c9_i32 dim 1 : vector<4x512xf32>, i32 -> vector<4x512xf32>
    %cst_106 = arith.constant 0.000000e+00 : f32
    %234 = vector.shape_cast %70 : vector<1x512xi1> to vector<1x512xi1>
    %235 = vector.broadcast %234 : vector<1x512xi1> to vector<4x512xi1>
    %236 = vector.broadcast %cst_106 : f32 to vector<4x512xf32>
    %237 = arith.select %235, %233, %236 : vector<4x512xi1>, vector<4x512xf32>
    %cst_107 = arith.constant dense<0.000000e+00> : vector<4x512xf32>
    %238 = tpu.matmul %71, %237, %cst_107 {dimension_numbers = #tpu.dot_dimension_numbers<[1], [0], [0], [1], [0, 0, 1, 1], [], []>} : vector<4x4xf32>, vector<4x512xf32>, vector<4x512xf32> -> vector<4x512xf32>
    %239 = arith.addf %232, %238 : vector<4x512xf32>
    %c8_i32 = arith.constant 8 : i32
    %240 = tpu.dynamic_rotate %168 by %c8_i32 dim 1 : vector<4x512xf32>, i32 -> vector<4x512xf32>
    %cst_108 = arith.constant 0.000000e+00 : f32
    %241 = vector.shape_cast %73 : vector<1x512xi1> to vector<1x512xi1>
    %242 = vector.broadcast %241 : vector<1x512xi1> to vector<4x512xi1>
    %243 = vector.broadcast %cst_108 : f32 to vector<4x512xf32>
    %244 = arith.select %242, %240, %243 : vector<4x512xi1>, vector<4x512xf32>
    %cst_109 = arith.constant dense<0.000000e+00> : vector<4x512xf32>
    %245 = tpu.matmul %74, %244, %cst_109 {dimension_numbers = #tpu.dot_dimension_numbers<[1], [0], [0], [1], [0, 0, 1, 1], [], []>} : vector<4x4xf32>, vector<4x512xf32>, vector<4x512xf32> -> vector<4x512xf32>
    %246 = arith.addf %239, %245 : vector<4x512xf32>
    %c7_i32_110 = arith.constant 7 : i32
    %247 = tpu.dynamic_rotate %168 by %c7_i32_110 dim 1 : vector<4x512xf32>, i32 -> vector<4x512xf32>
    %cst_111 = arith.constant 0.000000e+00 : f32
    %248 = vector.shape_cast %79 : vector<1x512xi1> to vector<1x512xi1>
    %249 = vector.broadcast %248 : vector<1x512xi1> to vector<4x512xi1>
    %250 = vector.broadcast %cst_111 : f32 to vector<4x512xf32>
    %251 = arith.select %249, %247, %250 : vector<4x512xi1>, vector<4x512xf32>
    %cst_112 = arith.constant dense<0.000000e+00> : vector<4x512xf32>
    %252 = tpu.matmul %80, %251, %cst_112 {dimension_numbers = #tpu.dot_dimension_numbers<[1], [0], [0], [1], [0, 0, 1, 1], [], []>} : vector<4x4xf32>, vector<4x512xf32>, vector<4x512xf32> -> vector<4x512xf32>
    %253 = arith.addf %246, %252 : vector<4x512xf32>
    %c1_i32_113 = arith.constant 1 : i32
    %254 = tpu.dynamic_rotate %168 by %c1_i32_113 dim 1 : vector<4x512xf32>, i32 -> vector<4x512xf32>
    %cst_114 = arith.constant 0.000000e+00 : f32
    %255 = vector.shape_cast %82 : vector<1x512xi1> to vector<1x512xi1>
    %256 = vector.broadcast %255 : vector<1x512xi1> to vector<4x512xi1>
    %257 = vector.broadcast %cst_114 : f32 to vector<4x512xf32>
    %258 = arith.select %256, %254, %257 : vector<4x512xi1>, vector<4x512xf32>
    %cst_115 = arith.constant dense<0.000000e+00> : vector<4x512xf32>
    %259 = tpu.matmul %83, %258, %cst_115 {dimension_numbers = #tpu.dot_dimension_numbers<[1], [0], [0], [1], [0, 0, 1, 1], [], []>} : vector<4x4xf32>, vector<4x512xf32>, vector<4x512xf32> -> vector<4x512xf32>
    %260 = arith.addf %253, %259 : vector<4x512xf32>
    %cst_116 = arith.constant dense<0.000000e+00> : vector<4x512xf32>
    %261 = tpu.matmul %84, %168, %cst_116 {dimension_numbers = #tpu.dot_dimension_numbers<[1], [0], [0], [1], [0, 0, 1, 1], [], []>} : vector<4x4xf32>, vector<4x512xf32>, vector<4x512xf32> -> vector<4x512xf32>
    %262 = arith.addf %260, %261 : vector<4x512xf32>
    %c511_i32 = arith.constant 511 : i32
    %263 = tpu.dynamic_rotate %168 by %c511_i32 dim 1 : vector<4x512xf32>, i32 -> vector<4x512xf32>
    %cst_117 = arith.constant 0.000000e+00 : f32
    %264 = vector.shape_cast %86 : vector<1x512xi1> to vector<1x512xi1>
    %265 = vector.broadcast %264 : vector<1x512xi1> to vector<4x512xi1>
    %266 = vector.broadcast %cst_117 : f32 to vector<4x512xf32>
    %267 = arith.select %265, %263, %266 : vector<4x512xi1>, vector<4x512xf32>
    %cst_118 = arith.constant dense<0.000000e+00> : vector<4x512xf32>
    %268 = tpu.matmul %87, %267, %cst_118 {dimension_numbers = #tpu.dot_dimension_numbers<[1], [0], [0], [1], [0, 0, 1, 1], [], []>} : vector<4x4xf32>, vector<4x512xf32>, vector<4x512xf32> -> vector<4x512xf32>
    %269 = arith.addf %262, %268 : vector<4x512xf32>
    %c505_i32 = arith.constant 505 : i32
    %270 = tpu.dynamic_rotate %168 by %c505_i32 dim 1 : vector<4x512xf32>, i32 -> vector<4x512xf32>
    %cst_119 = arith.constant 0.000000e+00 : f32
    %271 = vector.shape_cast %92 : vector<1x512xi1> to vector<1x512xi1>
    %272 = vector.broadcast %271 : vector<1x512xi1> to vector<4x512xi1>
    %273 = vector.broadcast %cst_119 : f32 to vector<4x512xf32>
    %274 = arith.select %272, %270, %273 : vector<4x512xi1>, vector<4x512xf32>
    %cst_120 = arith.constant dense<0.000000e+00> : vector<4x512xf32>
    %275 = tpu.matmul %93, %274, %cst_120 {dimension_numbers = #tpu.dot_dimension_numbers<[1], [0], [0], [1], [0, 0, 1, 1], [], []>} : vector<4x4xf32>, vector<4x512xf32>, vector<4x512xf32> -> vector<4x512xf32>
    %276 = arith.addf %269, %275 : vector<4x512xf32>
    %c504_i32 = arith.constant 504 : i32
    %277 = tpu.dynamic_rotate %168 by %c504_i32 dim 1 : vector<4x512xf32>, i32 -> vector<4x512xf32>
    %cst_121 = arith.constant 0.000000e+00 : f32
    %278 = vector.shape_cast %95 : vector<1x512xi1> to vector<1x512xi1>
    %279 = vector.broadcast %278 : vector<1x512xi1> to vector<4x512xi1>
    %280 = vector.broadcast %cst_121 : f32 to vector<4x512xf32>
    %281 = arith.select %279, %277, %280 : vector<4x512xi1>, vector<4x512xf32>
    %cst_122 = arith.constant dense<0.000000e+00> : vector<4x512xf32>
    %282 = tpu.matmul %96, %281, %cst_122 {dimension_numbers = #tpu.dot_dimension_numbers<[1], [0], [0], [1], [0, 0, 1, 1], [], []>} : vector<4x4xf32>, vector<4x512xf32>, vector<4x512xf32> -> vector<4x512xf32>
    %283 = arith.addf %276, %282 : vector<4x512xf32>
    %c503_i32 = arith.constant 503 : i32
    %284 = tpu.dynamic_rotate %168 by %c503_i32 dim 1 : vector<4x512xf32>, i32 -> vector<4x512xf32>
    %cst_123 = arith.constant 0.000000e+00 : f32
    %285 = vector.shape_cast %101 : vector<1x512xi1> to vector<1x512xi1>
    %286 = vector.broadcast %285 : vector<1x512xi1> to vector<4x512xi1>
    %287 = vector.broadcast %cst_123 : f32 to vector<4x512xf32>
    %288 = arith.select %286, %284, %287 : vector<4x512xi1>, vector<4x512xf32>
    %cst_124 = arith.constant dense<0.000000e+00> : vector<4x512xf32>
    %289 = tpu.matmul %102, %288, %cst_124 {dimension_numbers = #tpu.dot_dimension_numbers<[1], [0], [0], [1], [0, 0, 1, 1], [], []>} : vector<4x4xf32>, vector<4x512xf32>, vector<4x512xf32> -> vector<4x512xf32>
    %290 = arith.addf %283, %289 : vector<4x512xf32>
    %c457_i32 = arith.constant 457 : i32
    %291 = tpu.dynamic_rotate %168 by %c457_i32 dim 1 : vector<4x512xf32>, i32 -> vector<4x512xf32>
    %cst_125 = arith.constant 0.000000e+00 : f32
    %292 = vector.shape_cast %110 : vector<1x512xi1> to vector<1x512xi1>
    %293 = vector.broadcast %292 : vector<1x512xi1> to vector<4x512xi1>
    %294 = vector.broadcast %cst_125 : f32 to vector<4x512xf32>
    %295 = arith.select %293, %291, %294 : vector<4x512xi1>, vector<4x512xf32>
    %cst_126 = arith.constant dense<0.000000e+00> : vector<4x512xf32>
    %296 = tpu.matmul %111, %295, %cst_126 {dimension_numbers = #tpu.dot_dimension_numbers<[1], [0], [0], [1], [0, 0, 1, 1], [], []>} : vector<4x4xf32>, vector<4x512xf32>, vector<4x512xf32> -> vector<4x512xf32>
    %297 = arith.addf %290, %296 : vector<4x512xf32>
    %c456_i32 = arith.constant 456 : i32
    %298 = tpu.dynamic_rotate %168 by %c456_i32 dim 1 : vector<4x512xf32>, i32 -> vector<4x512xf32>
    %cst_127 = arith.constant 0.000000e+00 : f32
    %299 = vector.shape_cast %116 : vector<1x512xi1> to vector<1x512xi1>
    %300 = vector.broadcast %299 : vector<1x512xi1> to vector<4x512xi1>
    %301 = vector.broadcast %cst_127 : f32 to vector<4x512xf32>
    %302 = arith.select %300, %298, %301 : vector<4x512xi1>, vector<4x512xf32>
    %cst_128 = arith.constant dense<0.000000e+00> : vector<4x512xf32>
    %303 = tpu.matmul %117, %302, %cst_128 {dimension_numbers = #tpu.dot_dimension_numbers<[1], [0], [0], [1], [0, 0, 1, 1], [], []>} : vector<4x4xf32>, vector<4x512xf32>, vector<4x512xf32> -> vector<4x512xf32>
    %304 = arith.addf %297, %303 : vector<4x512xf32>
    %c455_i32 = arith.constant 455 : i32
    %305 = tpu.dynamic_rotate %168 by %c455_i32 dim 1 : vector<4x512xf32>, i32 -> vector<4x512xf32>
    %cst_129 = arith.constant 0.000000e+00 : f32
    %306 = vector.shape_cast %125 : vector<1x512xi1> to vector<1x512xi1>
    %307 = vector.broadcast %306 : vector<1x512xi1> to vector<4x512xi1>
    %308 = vector.broadcast %cst_129 : f32 to vector<4x512xf32>
    %309 = arith.select %307, %305, %308 : vector<4x512xi1>, vector<4x512xf32>
    %cst_130 = arith.constant dense<0.000000e+00> : vector<4x512xf32>
    %310 = tpu.matmul %126, %309, %cst_130 {dimension_numbers = #tpu.dot_dimension_numbers<[1], [0], [0], [1], [0, 0, 1, 1], [], []>} : vector<4x4xf32>, vector<4x512xf32>, vector<4x512xf32> -> vector<4x512xf32>
    %311 = arith.addf %304, %310 : vector<4x512xf32>
    %c449_i32 = arith.constant 449 : i32
    %312 = tpu.dynamic_rotate %168 by %c449_i32 dim 1 : vector<4x512xf32>, i32 -> vector<4x512xf32>
    %cst_131 = arith.constant 0.000000e+00 : f32
    %313 = vector.shape_cast %131 : vector<1x512xi1> to vector<1x512xi1>
    %314 = vector.broadcast %313 : vector<1x512xi1> to vector<4x512xi1>
    %315 = vector.broadcast %cst_131 : f32 to vector<4x512xf32>
    %316 = arith.select %314, %312, %315 : vector<4x512xi1>, vector<4x512xf32>
    %cst_132 = arith.constant dense<0.000000e+00> : vector<4x512xf32>
    %317 = tpu.matmul %132, %316, %cst_132 {dimension_numbers = #tpu.dot_dimension_numbers<[1], [0], [0], [1], [0, 0, 1, 1], [], []>} : vector<4x4xf32>, vector<4x512xf32>, vector<4x512xf32> -> vector<4x512xf32>
    %318 = arith.addf %311, %317 : vector<4x512xf32>
    %c448_i32 = arith.constant 448 : i32
    %319 = tpu.dynamic_rotate %168 by %c448_i32 dim 1 : vector<4x512xf32>, i32 -> vector<4x512xf32>
    %cst_133 = arith.constant 0.000000e+00 : f32
    %320 = vector.shape_cast %134 : vector<1x512xi1> to vector<1x512xi1>
    %321 = vector.broadcast %320 : vector<1x512xi1> to vector<4x512xi1>
    %322 = vector.broadcast %cst_133 : f32 to vector<4x512xf32>
    %323 = arith.select %321, %319, %322 : vector<4x512xi1>, vector<4x512xf32>
    %cst_134 = arith.constant dense<0.000000e+00> : vector<4x512xf32>
    %324 = tpu.matmul %135, %323, %cst_134 {dimension_numbers = #tpu.dot_dimension_numbers<[1], [0], [0], [1], [0, 0, 1, 1], [], []>} : vector<4x4xf32>, vector<4x512xf32>, vector<4x512xf32> -> vector<4x512xf32>
    %325 = arith.addf %318, %324 : vector<4x512xf32>
    %c447_i32 = arith.constant 447 : i32
    %326 = tpu.dynamic_rotate %168 by %c447_i32 dim 1 : vector<4x512xf32>, i32 -> vector<4x512xf32>
    %cst_135 = arith.constant 0.000000e+00 : f32
    %327 = vector.shape_cast %140 : vector<1x512xi1> to vector<1x512xi1>
    %328 = vector.broadcast %327 : vector<1x512xi1> to vector<4x512xi1>
    %329 = vector.broadcast %cst_135 : f32 to vector<4x512xf32>
    %330 = arith.select %328, %326, %329 : vector<4x512xi1>, vector<4x512xf32>
    %cst_136 = arith.constant dense<0.000000e+00> : vector<4x512xf32>
    %331 = tpu.matmul %141, %330, %cst_136 {dimension_numbers = #tpu.dot_dimension_numbers<[1], [0], [0], [1], [0, 0, 1, 1], [], []>} : vector<4x4xf32>, vector<4x512xf32>, vector<4x512xf32> -> vector<4x512xf32>
    %332 = arith.addf %325, %331 : vector<4x512xf32>
    %c441_i32 = arith.constant 441 : i32
    %333 = tpu.dynamic_rotate %168 by %c441_i32 dim 1 : vector<4x512xf32>, i32 -> vector<4x512xf32>
    %cst_137 = arith.constant 0.000000e+00 : f32
    %334 = vector.shape_cast %149 : vector<1x512xi1> to vector<1x512xi1>
    %335 = vector.broadcast %334 : vector<1x512xi1> to vector<4x512xi1>
    %336 = vector.broadcast %cst_137 : f32 to vector<4x512xf32>
    %337 = arith.select %335, %333, %336 : vector<4x512xi1>, vector<4x512xf32>
    %cst_138 = arith.constant dense<0.000000e+00> : vector<4x512xf32>
    %338 = tpu.matmul %150, %337, %cst_138 {dimension_numbers = #tpu.dot_dimension_numbers<[1], [0], [0], [1], [0, 0, 1, 1], [], []>} : vector<4x4xf32>, vector<4x512xf32>, vector<4x512xf32> -> vector<4x512xf32>
    %339 = arith.addf %332, %338 : vector<4x512xf32>
    %c440_i32 = arith.constant 440 : i32
    %340 = tpu.dynamic_rotate %168 by %c440_i32 dim 1 : vector<4x512xf32>, i32 -> vector<4x512xf32>
    %cst_139 = arith.constant 0.000000e+00 : f32
    %341 = vector.shape_cast %155 : vector<1x512xi1> to vector<1x512xi1>
    %342 = vector.broadcast %341 : vector<1x512xi1> to vector<4x512xi1>
    %343 = vector.broadcast %cst_139 : f32 to vector<4x512xf32>
    %344 = arith.select %342, %340, %343 : vector<4x512xi1>, vector<4x512xf32>
    %cst_140 = arith.constant dense<0.000000e+00> : vector<4x512xf32>
    %345 = tpu.matmul %156, %344, %cst_140 {dimension_numbers = #tpu.dot_dimension_numbers<[1], [0], [0], [1], [0, 0, 1, 1], [], []>} : vector<4x4xf32>, vector<4x512xf32>, vector<4x512xf32> -> vector<4x512xf32>
    %346 = arith.addf %339, %345 : vector<4x512xf32>
    %c439_i32 = arith.constant 439 : i32
    %347 = tpu.dynamic_rotate %168 by %c439_i32 dim 1 : vector<4x512xf32>, i32 -> vector<4x512xf32>
    %cst_141 = arith.constant 0.000000e+00 : f32
    %348 = vector.shape_cast %164 : vector<1x512xi1> to vector<1x512xi1>
    %349 = vector.broadcast %348 : vector<1x512xi1> to vector<4x512xi1>
    %350 = vector.broadcast %cst_141 : f32 to vector<4x512xf32>
    %351 = arith.select %349, %347, %350 : vector<4x512xi1>, vector<4x512xf32>
    %cst_142 = arith.constant dense<0.000000e+00> : vector<4x512xf32>
    %352 = tpu.matmul %165, %351, %cst_142 {dimension_numbers = #tpu.dot_dimension_numbers<[1], [0], [0], [1], [0, 0, 1, 1], [], []>} : vector<4x4xf32>, vector<4x512xf32>, vector<4x512xf32> -> vector<4x512xf32>
    %353 = arith.addf %346, %352 : vector<4x512xf32>
    %354 = vector.broadcast %166 : vector<4x1xf32> to vector<4x512xf32>
    %355 = arith.addf %353, %354 : vector<4x512xf32>
    %cst_143 = arith.constant 0.000000e+00 : f32
    %356 = vector.broadcast %cst_143 : f32 to vector<4x512xf32>
    %357 = arith.maximumf %355, %356 : vector<4x512xf32>
    %c0_144 = arith.constant 0 : index
    %c0_145 = arith.constant 0 : index
    %c0_146 = arith.constant 0 : index
    %358 = vector.load %arg5[%c0_144, %c0_145, %c0_146] : memref<1x4x512xf32, #tpu.memory_space<vmem>>, vector<1x4x512xf32>
    %359 = vector.shape_cast %358 : vector<1x4x512xf32> to vector<4x512xf32>
    %360 = vector.shape_cast %357 : vector<4x512xf32> to vector<1x4x512xf32>
    tpu.vector_store %arg5[%c0_144, %c0_145, %c0_146], %360 {strides = array<i32>} : memref<1x4x512xf32, #tpu.memory_space<vmem>>, vector<1x4x512xf32>,
    return
  }
  func.func @transform_0(%arg0: i32) -> (i32, i32, i32) {
    %c0_i32 = arith.constant 0 : i32
    %c0_i32_0 = arith.constant 0 : i32
    %c0_i32_1 = arith.constant 0 : i32
    return %arg0, %c0_i32, %c0_i32_0 : i32, i32, i32
  }
  func.func @transform_1(%arg0: i32) -> (i32, i32) {
    %c0_i32 = arith.constant 0 : i32
    %c0_i32_0 = arith.constant 0 : i32
    %c0_i32_1 = arith.constant 0 : i32
    return %c0_i32, %c0_i32_0 : i32, i32
  }
  func.func @transform_2(%arg0: i32) -> (i32, i32) {
    %c0_i32 = arith.constant 0 : i32
    %c0_i32_0 = arith.constant 0 : i32
    %c0_i32_1 = arith.constant 0 : i32
    return %c0_i32, %c0_i32_0 : i32, i32
  }
  func.func @transform_3(%arg0: i32) -> (i32, i32) {
    %c0_i32 = arith.constant 0 : i32
    %c0_i32_0 = arith.constant 0 : i32
    %c0_i32_1 = arith.constant 0 : i32
    return %c0_i32, %c0_i32_0 : i32, i32
  }
  func.func @transform_4(%arg0: i32) -> (i32, i32, i32) {
    %c0_i32 = arith.constant 0 : i32
    %c0_i32_0 = arith.constant 0 : i32
    %c0_i32_1 = arith.constant 0 : i32
    return %arg0, %c0_i32, %c0_i32_0 : i32, i32, i32
  }
}

</mosaic_0001>

<llo_original>
// kernel: three_ds2t_forward.1
$region0: #{three_ds2t_forward.1}
  #allocation0 [shape = 'u32[]', space=smem, size = 0x4, offset = 0x4, fixed_abs, tag = 'smem constant byte address 0x4 - core index']
  #allocation1 [shape = 'u32[72,128]{1,0:T(1,128)}', space=vmem, size = 0x9000, scoped, tag = 'internal scratch']
  %s0 = inlined_call_operand.vmem [shape: f32[2,4,512], index: 0, kind: input, shape index: {}]
  %s1 = inlined_call_operand.vmem [shape: f32[4,108], index: 1, kind: input, shape index: {}]
  %s2 = inlined_call_operand.vmem [shape: f32[4,1], index: 2, kind: input, shape index: {}]
  %s3 = inlined_call_operand.vmem [shape: s32[3,512], index: 3, kind: input, shape index: {}]
  %s4 = inlined_call_operand.vmem [shape: f32[2,4,512], index: 4, kind: output, shape index: {}]
  %s5 = sld [smem:[#allocation0]]
  $region49: #{three_ds2t_forward.1} parent=0
    _
  %s7 = ssub.s32 1, %s5
  %s8 = scalar_select 0, %s7, %s5
  loop: start=0, step=1, limit=4
  $region2: #{three_ds2t_forward.1} parent=0 // loop_pre_header
    _
  $region3: #{three_ds2t_forward.1} parent=0 // loop_header
    %s10 = sphi 0, %s14
    %p11 = scmp.ge.s32.totalorder %s10, 4
    %s20 = sphi 0, %s22
    %s23 = sphi 0, %s20
    %s24 = sphi 0, %s23
    %s40 = sphi 0, %s24
    %s44 = sphi 0, %s44
    %s46 = sphi 0, %s44
    %s47 = sphi 0, %s46
    %s61 = sphi 0, %s47
    %s65 = sphi 0, %s65
    %s67 = sphi 0, %s65
    %s68 = sphi 0, %s67
    %s82 = sphi 0, %s68
    %s86 = sphi 0, %s86
    %s88 = sphi 0, %s86
    %s89 = sphi 0, %s88
    %s103 = sphi 0, %s89
    %s109 = sphi 0, %s111
    %s112 = sphi 0, %s109
    %s113 = sphi 0, %s112
    %s129 = sphi 0, %s113
  $region4: #{three_ds2t_forward.1} parent=0 // loop_header_branch
    %13 = sbr.rel (%p11) target = $region8
  $region5: #{three_ds2t_forward.1} parent=0 // loop_body
    %s15 = ssub.s32 %s10, 1
    %s16 = ssub.s32 %s10, 2
    %s17 = sadd.s32 %s10, 1
    %s18 = ssub.s32 %s10, %s17
    %p19 = scmp.eq.s32.totalorder %s18, 0
    %s21 = sadd.s32 %s20, 1
    %s22 = scalar_select %p19, %s20, %s21
    %p25 = pneg %p19
    %p26 = scmp.eq.s32.totalorder %s10, 1
    %p27 = por %p25, %p26
    %p28 = scmp.ne.s32.totalorder %s20, %s23
    %p29 = scmp.eq.s32.totalorder %s10, 0
    %p30 = por %p28, %p29
    %p31 = scmp.ne.s32.totalorder %s20, %s23
    %p32 = scmp.eq.s32.totalorder %s15, 1
    %p33 = por %p31, %p32
    %p34 = scmp.ne.s32.totalorder %s23, %s24
    %p35 = scmp.eq.s32.totalorder %s15, 0
    %p36 = por %p34, %p35
    %p37 = scmp.ne.s32.totalorder %s23, %s24
    %p38 = scmp.eq.s32.totalorder %s16, 1
    %p39 = por %p37, %p38
    %p41 = scmp.ne.s32.totalorder %s24, %s40
    %p42 = scmp.eq.s32.totalorder %s16, 0
    %p43 = por %p41, %p42
    %s45 = sadd.s32 %s44, 1
    %p48 = scmp.eq.s32.totalorder %s10, 1
    %p49 = scmp.ne.s32.totalorder %s44, %s46
    %p50 = scmp.eq.s32.totalorder %s10, 0
    %p51 = por %p49, %p50
    %p52 = scmp.ne.s32.totalorder %s44, %s46
    %p53 = scmp.eq.s32.totalorder %s15, 1
    %p54 = por %p52, %p53
    %p55 = scmp.ne.s32.totalorder %s46, %s47
    %p56 = scmp.eq.s32.totalorder %s15, 0
    %p57 = por %p55, %p56
    %p58 = scmp.ne.s32.totalorder %s46, %s47
    %p59 = scmp.eq.s32.totalorder %s16, 1
    %p60 = por %p58, %p59
    %p62 = scmp.ne.s32.totalorder %s47, %s61
    %p63 = scmp.eq.s32.totalorder %s16, 0
    %p64 = por %p62, %p63
    %s66 = sadd.s32 %s65, 1
    %p69 = scmp.eq.s32.totalorder %s10, 1
    %p70 = scmp.ne.s32.totalorder %s65, %s67
    %p71 = scmp.eq.s32.totalorder %s10, 0
    %p72 = por %p70, %p71
    %p73 = scmp.ne.s32.totalorder %s65, %s67
    %p74 = scmp.eq.s32.totalorder %s15, 1
    %p75 = por %p73, %p74
    %p76 = scmp.ne.s32.totalorder %s67, %s68
    %p77 = scmp.eq.s32.totalorder %s15, 0
    %p78 = por %p76, %p77
    %p79 = scmp.ne.s32.totalorder %s67, %s68
    %p80 = scmp.eq.s32.totalorder %s16, 1
    %p81 = por %p79, %p80
    %p83 = scmp.ne.s32.totalorder %s68, %s82
    %p84 = scmp.eq.s32.totalorder %s16, 0
    %p85 = por %p83, %p84
    %s87 = sadd.s32 %s86, 1
    %p90 = scmp.eq.s32.totalorder %s10, 1
    %p91 = scmp.ne.s32.totalorder %s86, %s88
    %p92 = scmp.eq.s32.totalorder %s10, 0
    %p93 = por %p91, %p92
    %p94 = scmp.ne.s32.totalorder %s86, %s88
    %p95 = scmp.eq.s32.totalorder %s15, 1
    %p96 = por %p94, %p95
    %p97 = scmp.ne.s32.totalorder %s88, %s89
    %p98 = scmp.eq.s32.totalorder %s15, 0
    %p99 = por %p97, %p98
    %p100 = scmp.ne.s32.totalorder %s88, %s89
    %p101 = scmp.eq.s32.totalorder %s16, 1
    %p102 = por %p100, %p101
    %p104 = scmp.ne.s32.totalorder %s89, %s103
    %p105 = scmp.eq.s32.totalorder %s16, 0
    %p106 = por %p104, %p105
    %s107 = ssub.s32 %s10, %s17
    %p108 = scmp.eq.s32.totalorder %s107, 0
    %s110 = sadd.s32 %s109, 1
    %s111 = scalar_select %p108, %s109, %s110
    %p114 = pneg %p108
    %p115 = scmp.eq.s32.totalorder %s10, 1
    %p116 = por %p114, %p115
    %p117 = scmp.ne.s32.totalorder %s109, %s112
    %p118 = scmp.eq.s32.totalorder %s10, 0
    %p119 = por %p117, %p118
    %p120 = scmp.ne.s32.totalorder %s109, %s112
    %p121 = scmp.eq.s32.totalorder %s15, 1
    %p122 = por %p120, %p121
    %p123 = scmp.ne.s32.totalorder %s112, %s113
    %p124 = scmp.eq.s32.totalorder %s15, 0
    %p125 = por %p123, %p124
    %p126 = scmp.ne.s32.totalorder %s112, %s113
    %p127 = scmp.eq.s32.totalorder %s16, 1
    %p128 = por %p126, %p127
    %p130 = scmp.ne.s32.totalorder %s113, %s129
    %p131 = scmp.eq.s32.totalorder %s16, 0
    %p132 = por %p130, %p131
    %p133 = scmp.le.s32.totalorder 1, %s10
    %p134 = scmp.lt.s32.totalorder %s10, 3
    %p135 = pnand %p133, %p134
    %p136 = pneg %p135
    // Predicated region
    $region9: #{three_ds2t_forward.1} parent=5 // pred_check
      _
    $region10: #{three_ds2t_forward.1} parent=5 // pred_check_branch
      %138 = sbr.rel (%p135) target = $region12
    $region11: #{three_ds2t_forward.1} parent=5 // pred_region
      %s139 = ssub.s32 %s10, 1
      // Predicated region
      $region13: #{three_ds2t_forward.1} parent=11 // pred_check
        %p140 = pneg %p57
      $region14: #{three_ds2t_forward.1} parent=11 // pred_check_branch
        %142 = sbr.rel (%p140) target = $region16
      $region15: #{three_ds2t_forward.1} parent=11 // pred_region
        _
      $region16: #{three_ds2t_forward.1} parent=11 // pred_fallthru
        _
      // Predicated region
      $region17: #{three_ds2t_forward.1} parent=11 // pred_check
        %p143 = pneg %p78
      $region18: #{three_ds2t_forward.1} parent=11 // pred_check_branch
        %145 = sbr.rel (%p143) target = $region20
      $region19: #{three_ds2t_forward.1} parent=11 // pred_region
        _
      $region20: #{three_ds2t_forward.1} parent=11 // pred_fallthru
        _
      // Predicated region
      $region21: #{three_ds2t_forward.1} parent=11 // pred_check
        %p146 = pneg %p99
      $region22: #{three_ds2t_forward.1} parent=11 // pred_check_branch
        %148 = sbr.rel (%p146) target = $region24
      $region23: #{three_ds2t_forward.1} parent=11 // pred_region
        _
      $region24: #{three_ds2t_forward.1} parent=11 // pred_fallthru
        _
    $region12: #{three_ds2t_forward.1} parent=5 // pred_fallthru
      _
    %p149 = scmp.lt.s32.totalorder %s10, 2
    // Predicated region
    $region25: #{three_ds2t_forward.1} parent=5 // pred_check
      %p150 = pneg %p149
    $region26: #{three_ds2t_forward.1} parent=5 // pred_check_branch
      %152 = sbr.rel (%p150) target = $region28
    $region27: #{three_ds2t_forward.1} parent=5 // pred_region
      // Predicated region
      $region29: #{three_ds2t_forward.1} parent=27 // pred_check
        %p153 = pneg %p30
      $region30: #{three_ds2t_forward.1} parent=27 // pred_check_branch
        %155 = sbr.rel (%p153) target = $region32
      $region31: #{three_ds2t_forward.1} parent=27 // pred_region
        %p156 = scmp.lt.s32.totalorder %s10, 1
        %s157 = scalar_select %p156, %s10, 1
        %s158 = smul.addr %s157, 4
        %s159 = smul.addr %s158, 4
        %s160 = scalar_lea.vmem %s0, %s159
      $region32: #{three_ds2t_forward.1} parent=27 // pred_fallthru
        _
    $region28: #{three_ds2t_forward.1} parent=5 // pred_fallthru
      _
    %p161 = scmp.le.s32.totalorder 1, %s10
    %p162 = scmp.lt.s32.totalorder %s10, 3
    %p163 = pnand %p161, %p162
    %p164 = pneg %p163
    // Predicated region
    $region33: #{three_ds2t_forward.1} parent=5 // pred_check
      _
    $region34: #{three_ds2t_forward.1} parent=5 // pred_check_branch
      %166 = sbr.rel (%p163) target = $region36
    $region35: #{three_ds2t_forward.1} parent=5 // pred_region
      %s167 = ssub.s32 %s10, 1
      %p168 = scmp.lt.s32.totalorder %s15, 1
      %s169 = scalar_select %p168, %s15, 1
      %s170 = smul.addr %s169, 4
      %s171 = smul.addr %s170, 4
      %s172 = scalar_lea.vmem %s0, %s171
      %p173 = pneg %p36
      %p174 = pneg %p33
      %p175 = pneg %p57
      %p176 = pneg %p54
      %p177 = pneg %p78
      %p178 = pneg %p75
      %p179 = pneg %p99
      %p180 = pneg %p96
      %p181 = pneg %p125
      %p182 = pneg %p122
      %p183 = scmp.lt.s32.totalorder %s15, 1
      %s184 = scalar_select %p183, %s15, 1
      %s185 = smul.addr %s184, 4
      %s186 = smul.addr %s185, 4
      %s187 = scalar_lea.vmem %s4, %s186
      %p188 = scmp.lt.s32.totalorder %s15, 1
      %s189 = scalar_select %p188, %s15, 1
      %s190 = smul.addr %s189, 4
      %s191 = smul.addr %s190, 4
      %s192 = scalar_lea.vmem %s0, %s191
      %p193 = scmp.lt.s32.totalorder %s15, 1
      %s194 = scalar_select %p193, %s15, 1
      %s195 = smul.addr %s194, 4
      %s196 = smul.addr %s195, 4
      %s197 = scalar_lea.vmem %s4, %s196
      %v198 = vld [vmem:[%s3] ss:$4 sm:$0xf]
      %s199 = scalar_lea.vmem %s3, 1
      %v200 = vld [vmem:[%s199] ss:$4 sm:$0xf]
      %s201 = scalar_lea.vmem %s3, 2
      %v202 = vld [vmem:[%s201] ss:$4 sm:$0xf]
      %vm203 = vcmp.ge.s32.totalorder %v198, 1
      %vm204 = vcmp.ge.s32.totalorder %v200, 1
      %vm205 = vcmp.ge.s32.totalorder %v202, 1
      %vm206 = vmand %vm203, %vm204
      %vm207 = vmand %vm206, %vm205
      %v208 = vld [vmem:[%s1] sm:$0xf]
      %vm209 = vcmp.lt.s32.totalorder %v202, 7
      %vm210 = vmand %vm206, %vm209
      %vm211 = vmand %vm203, %vm205
      %vm212 = vmand %vm203, %vm209
      %vm213 = vcmp.lt.s32.totalorder %v200, 7
      %vm214 = vmand %vm203, %vm213
      %vm215 = vmand %vm214, %vm205
      %vm216 = vmand %vm214, %vm209
      %vm217 = vmand %vm204, %vm205
      %vm218 = vmand %vm204, %vm209
      %vm219 = vmand %vm213, %vm205
      %vm220 = vmand %vm213, %vm209
      %vm221 = vcmp.lt.s32.totalorder %v198, 7
      %vm222 = vmand %vm221, %vm204
      %vm223 = vmand %vm222, %vm205
      %vm224 = vmand %vm222, %vm209
      %vm225 = vmand %vm221, %vm205
      %vm226 = vmand %vm221, %vm209
      %vm227 = vmand %vm221, %vm213
      %vm228 = vmand %vm227, %vm205
      %vm229 = vmand %vm227, %vm209
      %v230 = vld [vmem:[%s2] sm:$0xf]
      %v231 = vld [vmem:[%s192] sm:$0xff]
      %v232 = vld [vmem:[%s192 + $0x8] sm:$0xff]
      %235 = vst [vmem:[#allocation1] ss:$2 sm:$0xff] %v231
      %s236 = scalar_lea.vmem [#allocation1], 16
      %237 = vst [vmem:[%s236] ss:$2 sm:$0xff] %v232
      %v238 = vld.sshfl [vmem:[#allocation1] sm:$0xff pattern:$0x75316420]
      %v239 = vld.sshfl [vmem:[#allocation1 + $0x8] sm:$0xff pattern:$0x75316420]
      %v240 = vld.sshfl [vmem:[#allocation1 + $0x10] sm:$0xff pattern:$0x75316420]
      %v241 = vld.sshfl [vmem:[#allocation1 + $0x18] sm:$0xff pattern:$0x75316420]
      %246 = vrot.lane.b32.xlu0 %v238, 73
      %v247 = vpop.permute.xlu0 %246
      %248 = vrot.lane.b32.xlu0 %v239, 73
      %v249 = vpop.permute.xlu0 %248
      %250 = vrot.lane.b32.xlu0 %v240, 73
      %v251 = vpop.permute.xlu0 %250
      %252 = vrot.lane.b32.xlu0 %v241, 73
      %v253 = vpop.permute.xlu0 %252
      %v254 = vlaneseq
      %v255 = vand.u32 %v254, 127
      %vm256 = vcmp.lt.s32.totalorder %v255, 73
      %v257 = vsel %vm256, %v251, %v253
      %v258 = vsel %vm256, %v249, %v251
      %v259 = vsel %vm256, %v247, %v249
      %v260 = vsel %vm256, %v253, %v247
      %v261 = vsel %vm207, 1, 0
      %v262 = vperm.slane %v261, 0
      %v263 = vperm.slane %v261, 1
      %v264 = vperm.slane %v261, 2
      %v265 = vperm.slane %v261, 3
      %vm266 = vcmp.eq.s32.totalorder %v262, 1
      %vm267 = vcmp.eq.s32.totalorder %v263, 1
      %vm268 = vcmp.eq.s32.totalorder %v264, 1
      %vm269 = vcmp.eq.s32.totalorder %v265, 1
      %v270 = vsel %vm266, %v260, 0.0
      %v271 = vsel %vm267, %v259, 0.0
      %v272 = vsel %vm268, %v258, 0.0
      %v273 = vsel %vm269, %v257, 0.0
      %274 = vst [vmem:[#allocation1] ss:$2 sm:$0xff] %v231
      %s275 = scalar_lea.vmem [#allocation1], 16
      %276 = vst [vmem:[%s275] ss:$2 sm:$0xff] %v232
      %v277 = vld.sshfl [vmem:[#allocation1] sm:$0xff pattern:$0x75316420]
      %v278 = vld.sshfl [vmem:[#allocation1 + $0x8] sm:$0xff pattern:$0x75316420]
      %v279 = vld.sshfl [vmem:[#allocation1 + $0x10] sm:$0xff pattern:$0x75316420]
      %v280 = vld.sshfl [vmem:[#allocation1 + $0x18] sm:$0xff pattern:$0x75316420]
      %285 = vrot.lane.b32.xlu0 %v277, 72
      %v286 = vpop.permute.xlu0 %285
      %287 = vrot.lane.b32.xlu0 %v278, 72
      %v288 = vpop.permute.xlu0 %287
      %289 = vrot.lane.b32.xlu0 %v279, 72
      %v290 = vpop.permute.xlu0 %289
      %291 = vrot.lane.b32.xlu0 %v280, 72
      %v292 = vpop.permute.xlu0 %291
      %vm293 = vcmp.lt.s32.totalorder %v255, 72
      %v294 = vsel %vm293, %v290, %v292
      %v295 = vsel %vm293, %v288, %v290
      %v296 = vsel %vm293, %v286, %v288
      %v297 = vsel %vm293, %v292, %v286
      %v298 = vsel %vm206, 1, 0
      %v299 = vperm.slane %v298, 0
      %v300 = vperm.slane %v298, 1
      %v301 = vperm.slane %v298, 2
      %v302 = vperm.slane %v298, 3
      %vm303 = vcmp.eq.s32.totalorder %v299, 1
      %vm304 = vcmp.eq.s32.totalorder %v300, 1
      %vm305 = vcmp.eq.s32.totalorder %v301, 1
      %vm306 = vcmp.eq.s32.totalorder %v302, 1
      %v307 = vsel %vm303, %v297, 0.0
      %v308 = vsel %vm304, %v296, 0.0
      %v309 = vsel %vm305, %v295, 0.0
      %v310 = vsel %vm306, %v294, 0.0
      %312 = vrot.lane.b32.xlu0 %v208, 124
      %v313 = vpop.permute.xlu0 %312
      %vm314 = vcmask 31744
      %v315 = vsel %vm314, %v313, 0
      %vm317 = vcmask 1043456
      %v319 = vsel %vm317, %v307, 0
      %v322 = vsel %vm317, %v308, 0
      %v325 = vsel %vm317, %v309, 0
      %v328 = vsel %vm317, %v310, 0
      %330 = vmatpush.msra.mxu0 0.0
      %331 = vmatpush.msra.mxu0 0.0
      %332 = vmatpush.msra.mxu0 0.0
      %333 = vmatpush.msra.mxu0 0.0
      %334 = vmatpush.msra.mxu0 0.0
      %335 = vmatpush.msra.mxu0 0.0
      %336 = vmatpush.msra.mxu0 0.0
      %337 = vmatpush.msra.mxu0 0.0
      %338 = vmatpush.msra.mxu0 0.0
      %339 = vmatpush.msra.mxu0 0.0
      %340 = vmatpush.msra.mxu0 0.0
      %341 = vmatpush.msra.mxu0 0.0
      %342 = vmatpush.msra.mxu0 0.0
      %343 = vmatpush.msra.mxu0 0.0
      %344 = vmatpush.msra.mxu0 0.0
      %345 = vmatpush.msra.mxu0 %v319
      %346 = vmatmul.f32.gmra.mxu0 %v315
      %v347 = vpop.f32.mrf.mxu0
      %v348 = vadd.f32 0.0, %v347
      %349 = vdwg.mxu0
      %350 = vmatpush.msra.mxu0 0.0
      %351 = vmatpush.msra.mxu0 0.0
      %352 = vmatpush.msra.mxu0 0.0
      %353 = vmatpush.msra.mxu0 0.0
      %354 = vmatpush.msra.mxu0 0.0
      %355 = vmatpush.msra.mxu0 0.0
      %356 = vmatpush.msra.mxu0 0.0
      %357 = vmatpush.msra.mxu0 0.0
      %358 = vmatpush.msra.mxu0 0.0
      %359 = vmatpush.msra.mxu0 0.0
      %360 = vmatpush.msra.mxu0 0.0
      %361 = vmatpush.msra.mxu0 0.0
      %362 = vmatpush.msra.mxu0 0.0
      %363 = vmatpush.msra.mxu0 0.0
      %364 = vmatpush.msra.mxu0 0.0
      %365 = vmatpush.msra.mxu0 %v322
      %366 = vmatmul.f32.gmra.mxu0 %v315
      %v367 = vpop.f32.mrf.mxu0
      %v368 = vadd.f32 0.0, %v367
      %369 = vdwg.mxu0
      %370 = vmatpush.msra.mxu0 0.0
      %371 = vmatpush.msra.mxu0 0.0
      %372 = vmatpush.msra.mxu0 0.0
      %373 = vmatpush.msra.mxu0 0.0
      %374 = vmatpush.msra.mxu0 0.0
      %375 = vmatpush.msra.mxu0 0.0
      %376 = vmatpush.msra.mxu0 0.0
      %377 = vmatpush.msra.mxu0 0.0
      %378 = vmatpush.msra.mxu0 0.0
      %379 = vmatpush.msra.mxu0 0.0
      %380 = vmatpush.msra.mxu0 0.0
      %381 = vmatpush.msra.mxu0 0.0
      %382 = vmatpush.msra.mxu0 0.0
      %383 = vmatpush.msra.mxu0 0.0
      %384 = vmatpush.msra.mxu0 0.0
      %385 = vmatpush.msra.mxu0 %v325
      %386 = vmatmul.f32.gmra.mxu0 %v315
      %v387 = vpop.f32.mrf.mxu0
      %v388 = vadd.f32 0.0, %v387
      %389 = vdwg.mxu0
      %390 = vmatpush.msra.mxu0 0.0
      %391 = vmatpush.msra.mxu0 0.0
      %392 = vmatpush.msra.mxu0 0.0
      %393 = vmatpush.msra.mxu0 0.0
      %394 = vmatpush.msra.mxu0 0.0
      %395 = vmatpush.msra.mxu0 0.0
      %396 = vmatpush.msra.mxu0 0.0
      %397 = vmatpush.msra.mxu0 0.0
      %398 = vmatpush.msra.mxu0 0.0
      %399 = vmatpush.msra.mxu0 0.0
      %400 = vmatpush.msra.mxu0 0.0
      %401 = vmatpush.msra.mxu0 0.0
      %402 = vmatpush.msra.mxu0 0.0
      %403 = vmatpush.msra.mxu0 0.0
      %404 = vmatpush.msra.mxu0 0.0
      %405 = vmatpush.msra.mxu0 %v328
      %406 = vmatmul.f32.gmra.mxu0 %v315
      %v407 = vpop.f32.mrf.mxu0
      %v408 = vadd.f32 0.0, %v407
      %409 = vdwg.mxu0
      %v410 = vsel %vm314, %v208, 0
      %v413 = vsel %vm317, %v270, 0
      %v416 = vsel %vm317, %v271, 0
      %v419 = vsel %vm317, %v272, 0
      %v422 = vsel %vm317, %v273, 0
      %424 = vmatpush.msra.mxu0 0.0
      %425 = vmatpush.msra.mxu0 0.0
      %426 = vmatpush.msra.mxu0 0.0
      %427 = vmatpush.msra.mxu0 0.0
      %428 = vmatpush.msra.mxu0 0.0
      %429 = vmatpush.msra.mxu0 0.0
      %430 = vmatpush.msra.mxu0 0.0
      %431 = vmatpush.msra.mxu0 0.0
      %432 = vmatpush.msra.mxu0 0.0
      %433 = vmatpush.msra.mxu0 0.0
      %434 = vmatpush.msra.mxu0 0.0
      %435 = vmatpush.msra.mxu0 0.0
      %436 = vmatpush.msra.mxu0 0.0
      %437 = vmatpush.msra.mxu0 0.0
      %438 = vmatpush.msra.mxu0 0.0
      %439 = vmatpush.msra.mxu0 %v413
      %440 = vmatmul.f32.gmra.mxu0 %v410
      %v441 = vpop.f32.mrf.mxu0
      %v442 = vadd.f32 %v348, %v441
      %443 = vdwg.mxu0
      %444 = vmatpush.msra.mxu0 0.0
      %445 = vmatpush.msra.mxu0 0.0
      %446 = vmatpush.msra.mxu0 0.0
      %447 = vmatpush.msra.mxu0 0.0
      %448 = vmatpush.msra.mxu0 0.0
      %449 = vmatpush.msra.mxu0 0.0
      %450 = vmatpush.msra.mxu0 0.0
      %451 = vmatpush.msra.mxu0 0.0
      %452 = vmatpush.msra.mxu0 0.0
      %453 = vmatpush.msra.mxu0 0.0
      %454 = vmatpush.msra.mxu0 0.0
      %455 = vmatpush.msra.mxu0 0.0
      %456 = vmatpush.msra.mxu0 0.0
      %457 = vmatpush.msra.mxu0 0.0
      %458 = vmatpush.msra.mxu0 0.0
      %459 = vmatpush.msra.mxu0 %v416
      %460 = vmatmul.f32.gmra.mxu0 %v410
      %v461 = vpop.f32.mrf.mxu0
      %v462 = vadd.f32 %v368, %v461
      %463 = vdwg.mxu0
      %464 = vmatpush.msra.mxu0 0.0
      %465 = vmatpush.msra.mxu0 0.0
      %466 = vmatpush.msra.mxu0 0.0
      %467 = vmatpush.msra.mxu0 0.0
      %468 = vmatpush.msra.mxu0 0.0
      %469 = vmatpush.msra.mxu0 0.0
      %470 = vmatpush.msra.mxu0 0.0
      %471 = vmatpush.msra.mxu0 0.0
      %472 = vmatpush.msra.mxu0 0.0
      %473 = vmatpush.msra.mxu0 0.0
      %474 = vmatpush.msra.mxu0 0.0
      %475 = vmatpush.msra.mxu0 0.0
      %476 = vmatpush.msra.mxu0 0.0
      %477 = vmatpush.msra.mxu0 0.0
      %478 = vmatpush.msra.mxu0 0.0
      %479 = vmatpush.msra.mxu0 %v419
      %480 = vmatmul.f32.gmra.mxu0 %v410
      %v481 = vpop.f32.mrf.mxu0
      %v482 = vadd.f32 %v388, %v481
      %483 = vdwg.mxu0
      %484 = vmatpush.msra.mxu0 0.0
      %485 = vmatpush.msra.mxu0 0.0
      %486 = vmatpush.msra.mxu0 0.0
      %487 = vmatpush.msra.mxu0 0.0
      %488 = vmatpush.msra.mxu0 0.0
      %489 = vmatpush.msra.mxu0 0.0
      %490 = vmatpush.msra.mxu0 0.0
      %491 = vmatpush.msra.mxu0 0.0
      %492 = vmatpush.msra.mxu0 0.0
      %493 = vmatpush.msra.mxu0 0.0
      %494 = vmatpush.msra.mxu0 0.0
      %495 = vmatpush.msra.mxu0 0.0
      %496 = vmatpush.msra.mxu0 0.0
      %497 = vmatpush.msra.mxu0 0.0
      %498 = vmatpush.msra.mxu0 0.0
      %499 = vmatpush.msra.mxu0 %v422
      %500 = vmatmul.f32.gmra.mxu0 %v410
      %v501 = vpop.f32.mrf.mxu0
      %v502 = vadd.f32 %v408, %v501
      %503 = vdwg.mxu0
      %504 = vst [vmem:[#allocation1] ss:$2 sm:$0xff] %v231
      %s505 = scalar_lea.vmem [#allocation1], 16
      %506 = vst [vmem:[%s505] ss:$2 sm:$0xff] %v232
      %v507 = vld.sshfl [vmem:[#allocation1] sm:$0xff pattern:$0x75316420]
      %v508 = vld.sshfl [vmem:[#allocation1 + $0x8] sm:$0xff pattern:$0x75316420]
      %v509 = vld.sshfl [vmem:[#allocation1 + $0x10] sm:$0xff pattern:$0x75316420]
      %v510 = vld.sshfl [vmem:[#allocation1 + $0x18] sm:$0xff pattern:$0x75316420]
      %515 = vrot.lane.b32.xlu0 %v507, 71
      %v516 = vpop.permute.xlu0 %515
      %517 = vrot.lane.b32.xlu0 %v508, 71
      %v518 = vpop.permute.xlu0 %517
      %519 = vrot.lane.b32.xlu0 %v509, 71
      %v520 = vpop.permute.xlu0 %519
      %521 = vrot.lane.b32.xlu0 %v510, 71
      %v522 = vpop.permute.xlu0 %521
      %vm523 = vcmp.lt.s32.totalorder %v255, 71
      %v524 = vsel %vm523, %v520, %v522
      %v525 = vsel %vm523, %v518, %v520
      %v526 = vsel %vm523, %v516, %v518
      %v527 = vsel %vm523, %v522, %v516
      %v528 = vsel %vm210, 1, 0
      %v529 = vperm.slane %v528, 0
      %v530 = vperm.slane %v528, 1
      %v531 = vperm.slane %v528, 2
      %v532 = vperm.slane %v528, 3
      %vm533 = vcmp.eq.s32.totalorder %v529, 1
      %vm534 = vcmp.eq.s32.totalorder %v530, 1
      %vm535 = vcmp.eq.s32.totalorder %v531, 1
      %vm536 = vcmp.eq.s32.totalorder %v532, 1
      %v537 = vsel %vm533, %v527, 0.0
      %v538 = vsel %vm534, %v526, 0.0
      %v539 = vsel %vm535, %v525, 0.0
      %v540 = vsel %vm536, %v524, 0.0
      %541 = vrot.lane.b32.xlu0 %v208, 120
      %v542 = vpop.permute.xlu0 %541
      %v543 = vsel %vm314, %v542, 0
      %v546 = vsel %vm317, %v537, 0
      %v549 = vsel %vm317, %v538, 0
      %v552 = vsel %vm317, %v539, 0
      %v555 = vsel %vm317, %v540, 0
      %557 = vmatpush.msra.mxu0 0.0
      %558 = vmatpush.msra.mxu0 0.0
      %559 = vmatpush.msra.mxu0 0.0
      %560 = vmatpush.msra.mxu0 0.0
      %561 = vmatpush.msra.mxu0 0.0
      %562 = vmatpush.msra.mxu0 0.0
      %563 = vmatpush.msra.mxu0 0.0
      %564 = vmatpush.msra.mxu0 0.0
      %565 = vmatpush.msra.mxu0 0.0
      %566 = vmatpush.msra.mxu0 0.0
      %567 = vmatpush.msra.mxu0 0.0
      %568 = vmatpush.msra.mxu0 0.0
      %569 = vmatpush.msra.mxu0 0.0
      %570 = vmatpush.msra.mxu0 0.0
      %571 = vmatpush.msra.mxu0 0.0
      %572 = vmatpush.msra.mxu0 %v546
      %573 = vmatmul.f32.gmra.mxu0 %v543
      %v574 = vpop.f32.mrf.mxu0
      %v575 = vadd.f32 0.0, %v574
      %576 = vdwg.mxu0
      %577 = vmatpush.msra.mxu0 0.0
      %578 = vmatpush.msra.mxu0 0.0
      %579 = vmatpush.msra.mxu0 0.0
      %580 = vmatpush.msra.mxu0 0.0
      %581 = vmatpush.msra.mxu0 0.0
      %582 = vmatpush.msra.mxu0 0.0
      %583 = vmatpush.msra.mxu0 0.0
      %584 = vmatpush.msra.mxu0 0.0
      %585 = vmatpush.msra.mxu0 0.0
      %586 = vmatpush.msra.mxu0 0.0
      %587 = vmatpush.msra.mxu0 0.0
      %588 = vmatpush.msra.mxu0 0.0
      %589 = vmatpush.msra.mxu0 0.0
      %590 = vmatpush.msra.mxu0 0.0
      %591 = vmatpush.msra.mxu0 0.0
      %592 = vmatpush.msra.mxu0 %v549
      %593 = vmatmul.f32.gmra.mxu0 %v543
      %v594 = vpop.f32.mrf.mxu0
      %v595 = vadd.f32 0.0, %v594
      %596 = vdwg.mxu0
      %597 = vmatpush.msra.mxu0 0.0
      %598 = vmatpush.msra.mxu0 0.0
      %599 = vmatpush.msra.mxu0 0.0
      %600 = vmatpush.msra.mxu0 0.0
      %601 = vmatpush.msra.mxu0 0.0
      %602 = vmatpush.msra.mxu0 0.0
      %603 = vmatpush.msra.mxu0 0.0
      %604 = vmatpush.msra.mxu0 0.0
      %605 = vmatpush.msra.mxu0 0.0
      %606 = vmatpush.msra.mxu0 0.0
      %607 = vmatpush.msra.mxu0 0.0
      %608 = vmatpush.msra.mxu0 0.0
      %609 = vmatpush.msra.mxu0 0.0
      %610 = vmatpush.msra.mxu0 0.0
      %611 = vmatpush.msra.mxu0 0.0
      %612 = vmatpush.msra.mxu0 %v552
      %613 = vmatmul.f32.gmra.mxu0 %v543
      %v614 = vpop.f32.mrf.mxu0
      %v615 = vadd.f32 0.0, %v614
      %616 = vdwg.mxu0
      %617 = vmatpush.msra.mxu0 0.0
      %618 = vmatpush.msra.mxu0 0.0
      %619 = vmatpush.msra.mxu0 0.0
      %620 = vmatpush.msra.mxu0 0.0
      %621 = vmatpush.msra.mxu0 0.0
      %622 = vmatpush.msra.mxu0 0.0
      %623 = vmatpush.msra.mxu0 0.0
      %624 = vmatpush.msra.mxu0 0.0
      %625 = vmatpush.msra.mxu0 0.0
      %626 = vmatpush.msra.mxu0 0.0
      %627 = vmatpush.msra.mxu0 0.0
      %628 = vmatpush.msra.mxu0 0.0
      %629 = vmatpush.msra.mxu0 0.0
      %630 = vmatpush.msra.mxu0 0.0
      %631 = vmatpush.msra.mxu0 0.0
      %632 = vmatpush.msra.mxu0 %v555
      %633 = vmatmul.f32.gmra.mxu0 %v543
      %v634 = vpop.f32.mrf.mxu0
      %v635 = vadd.f32 0.0, %v634
      %636 = vdwg.mxu0
      %v637 = vadd.f32 %v442, %v575
      %v638 = vadd.f32 %v462, %v595
      %v639 = vadd.f32 %v482, %v615
      %v640 = vadd.f32 %v502, %v635
      %641 = vst [vmem:[#allocation1] ss:$2 sm:$0xff] %v231
      %s642 = scalar_lea.vmem [#allocation1], 16
      %643 = vst [vmem:[%s642] ss:$2 sm:$0xff] %v232
      %v644 = vld.sshfl [vmem:[#allocation1] sm:$0xff pattern:$0x75316420]
      %v645 = vld.sshfl [vmem:[#allocation1 + $0x8] sm:$0xff pattern:$0x75316420]
      %v646 = vld.sshfl [vmem:[#allocation1 + $0x10] sm:$0xff pattern:$0x75316420]
      %v647 = vld.sshfl [vmem:[#allocation1 + $0x18] sm:$0xff pattern:$0x75316420]
      %652 = vrot.lane.b32.xlu0 %v644, 65
      %v653 = vpop.permute.xlu0 %652
      %654 = vrot.lane.b32.xlu0 %v645, 65
      %v655 = vpop.permute.xlu0 %654
      %656 = vrot.lane.b32.xlu0 %v646, 65
      %v657 = vpop.permute.xlu0 %656
      %658 = vrot.lane.b32.xlu0 %v647, 65
      %v659 = vpop.permute.xlu0 %658
      %vm660 = vcmp.lt.s32.totalorder %v255, 65
      %v661 = vsel %vm660, %v657, %v659
      %v662 = vsel %vm660, %v655, %v657
      %v663 = vsel %vm660, %v653, %v655
      %v664 = vsel %vm660, %v659, %v653
      %v665 = vsel %vm211, 1, 0
      %v666 = vperm.slane %v665, 0
      %v667 = vperm.slane %v665, 1
      %v668 = vperm.slane %v665, 2
      %v669 = vperm.slane %v665, 3
      %vm670 = vcmp.eq.s32.totalorder %v666, 1
      %vm671 = vcmp.eq.s32.totalorder %v667, 1
      %vm672 = vcmp.eq.s32.totalorder %v668, 1
      %vm673 = vcmp.eq.s32.totalorder %v669, 1
      %v674 = vsel %vm670, %v664, 0.0
      %v675 = vsel %vm671, %v663, 0.0
      %v676 = vsel %vm672, %v662, 0.0
      %v677 = vsel %vm673, %v661, 0.0
      %678 = vrot.lane.b32.xlu0 %v208, 116
      %v679 = vpop.permute.xlu0 %678
      %v680 = vsel %vm314, %v679, 0
      %v683 = vsel %vm317, %v674, 0
      %v686 = vsel %vm317, %v675, 0
      %v689 = vsel %vm317, %v676, 0
      %v692 = vsel %vm317, %v677, 0
      %694 = vmatpush.msra.mxu0 0.0
      %695 = vmatpush.msra.mxu0 0.0
      %696 = vmatpush.msra.mxu0 0.0
      %697 = vmatpush.msra.mxu0 0.0
      %698 = vmatpush.msra.mxu0 0.0
      %699 = vmatpush.msra.mxu0 0.0
      %700 = vmatpush.msra.mxu0 0.0
      %701 = vmatpush.msra.mxu0 0.0
      %702 = vmatpush.msra.mxu0 0.0
      %703 = vmatpush.msra.mxu0 0.0
      %704 = vmatpush.msra.mxu0 0.0
      %705 = vmatpush.msra.mxu0 0.0
      %706 = vmatpush.msra.mxu0 0.0
      %707 = vmatpush.msra.mxu0 0.0
      %708 = vmatpush.msra.mxu0 0.0
      %709 = vmatpush.msra.mxu0 %v683
      %710 = vmatmul.f32.gmra.mxu0 %v680
      %v711 = vpop.f32.mrf.mxu0
      %v712 = vadd.f32 0.0, %v711
      %713 = vdwg.mxu0
      %714 = vmatpush.msra.mxu0 0.0
      %715 = vmatpush.msra.mxu0 0.0
      %716 = vmatpush.msra.mxu0 0.0
      %717 = vmatpush.msra.mxu0 0.0
      %718 = vmatpush.msra.mxu0 0.0
      %719 = vmatpush.msra.mxu0 0.0
      %720 = vmatpush.msra.mxu0 0.0
      %721 = vmatpush.msra.mxu0 0.0
      %722 = vmatpush.msra.mxu0 0.0
      %723 = vmatpush.msra.mxu0 0.0
      %724 = vmatpush.msra.mxu0 0.0
      %725 = vmatpush.msra.mxu0 0.0
      %726 = vmatpush.msra.mxu0 0.0
      %727 = vmatpush.msra.mxu0 0.0
      %728 = vmatpush.msra.mxu0 0.0
      %729 = vmatpush.msra.mxu0 %v686
      %730 = vmatmul.f32.gmra.mxu0 %v680
      %v731 = vpop.f32.mrf.mxu0
      %v732 = vadd.f32 0.0, %v731
      %733 = vdwg.mxu0
      %734 = vmatpush.msra.mxu0 0.0
      %735 = vmatpush.msra.mxu0 0.0
      %736 = vmatpush.msra.mxu0 0.0
      %737 = vmatpush.msra.mxu0 0.0
      %738 = vmatpush.msra.mxu0 0.0
      %739 = vmatpush.msra.mxu0 0.0
      %740 = vmatpush.msra.mxu0 0.0
      %741 = vmatpush.msra.mxu0 0.0
      %742 = vmatpush.msra.mxu0 0.0
      %743 = vmatpush.msra.mxu0 0.0
      %744 = vmatpush.msra.mxu0 0.0
      %745 = vmatpush.msra.mxu0 0.0
      %746 = vmatpush.msra.mxu0 0.0
      %747 = vmatpush.msra.mxu0 0.0
      %748 = vmatpush.msra.mxu0 0.0
      %749 = vmatpush.msra.mxu0 %v689
      %750 = vmatmul.f32.gmra.mxu0 %v680
      %v751 = vpop.f32.mrf.mxu0
      %v752 = vadd.f32 0.0, %v751
      %753 = vdwg.mxu0
      %754 = vmatpush.msra.mxu0 0.0
      %755 = vmatpush.msra.mxu0 0.0
      %756 = vmatpush.msra.mxu0 0.0
      %757 = vmatpush.msra.mxu0 0.0
      %758 = vmatpush.msra.mxu0 0.0
      %759 = vmatpush.msra.mxu0 0.0
      %760 = vmatpush.msra.mxu0 0.0
      %761 = vmatpush.msra.mxu0 0.0
      %762 = vmatpush.msra.mxu0 0.0
      %763 = vmatpush.msra.mxu0 0.0
      %764 = vmatpush.msra.mxu0 0.0
      %765 = vmatpush.msra.mxu0 0.0
      %766 = vmatpush.msra.mxu0 0.0
      %767 = vmatpush.msra.mxu0 0.0
      %768 = vmatpush.msra.mxu0 0.0
      %769 = vmatpush.msra.mxu0 %v692
      %770 = vmatmul.f32.gmra.mxu0 %v680
      %v771 = vpop.f32.mrf.mxu0
      %v772 = vadd.f32 0.0, %v771
      %773 = vdwg.mxu0
      %v774 = vadd.f32 %v637, %v712
      %v775 = vadd.f32 %v638, %v732
      %v776 = vadd.f32 %v639, %v752
      %v777 = vadd.f32 %v640, %v772
      %778 = vst [vmem:[#allocation1] ss:$2 sm:$0xff] %v231
      %s779 = scalar_lea.vmem [#allocation1], 16
      %780 = vst [vmem:[%s779] ss:$2 sm:$0xff] %v232
      %v781 = vld.sshfl [vmem:[#allocation1] sm:$0xff pattern:$0x75316420]
      %v782 = vld.sshfl [vmem:[#allocation1 + $0x8] sm:$0xff pattern:$0x75316420]
      %v783 = vld.sshfl [vmem:[#allocation1 + $0x10] sm:$0xff pattern:$0x75316420]
      %v784 = vld.sshfl [vmem:[#allocation1 + $0x18] sm:$0xff pattern:$0x75316420]
      %789 = vrot.lane.b32.xlu0 %v781, 64
      %v790 = vpop.permute.xlu0 %789
      %791 = vrot.lane.b32.xlu0 %v782, 64
      %v792 = vpop.permute.xlu0 %791
      %793 = vrot.lane.b32.xlu0 %v783, 64
      %v794 = vpop.permute.xlu0 %793
      %795 = vrot.lane.b32.xlu0 %v784, 64
      %v796 = vpop.permute.xlu0 %795
      %vm797 = vcmp.lt.s32.totalorder %v255, 64
      %v798 = vsel %vm797, %v794, %v796
      %v799 = vsel %vm797, %v792, %v794
      %v800 = vsel %vm797, %v790, %v792
      %v801 = vsel %vm797, %v796, %v790
      %v802 = vsel %vm203, 1, 0
      %v803 = vperm.slane %v802, 0
      %v804 = vperm.slane %v802, 1
      %v805 = vperm.slane %v802, 2
      %v806 = vperm.slane %v802, 3
      %vm807 = vcmp.eq.s32.totalorder %v803, 1
      %vm808 = vcmp.eq.s32.totalorder %v804, 1
      %vm809 = vcmp.eq.s32.totalorder %v805, 1
      %vm810 = vcmp.eq.s32.totalorder %v806, 1
      %v811 = vsel %vm807, %v801, 0.0
      %v812 = vsel %vm808, %v800, 0.0
      %v813 = vsel %vm809, %v799, 0.0
      %v814 = vsel %vm810, %v798, 0.0
      %815 = vrot.lane.b32.xlu0 %v208, 112
      %v816 = vpop.permute.xlu0 %815
      %v817 = vsel %vm314, %v816, 0
      %v820 = vsel %vm317, %v811, 0
      %v823 = vsel %vm317, %v812, 0
      %v826 = vsel %vm317, %v813, 0
      %v829 = vsel %vm317, %v814, 0
      %831 = vmatpush.msra.mxu0 0.0
      %832 = vmatpush.msra.mxu0 0.0
      %833 = vmatpush.msra.mxu0 0.0
      %834 = vmatpush.msra.mxu0 0.0
      %835 = vmatpush.msra.mxu0 0.0
      %836 = vmatpush.msra.mxu0 0.0
      %837 = vmatpush.msra.mxu0 0.0
      %838 = vmatpush.msra.mxu0 0.0
      %839 = vmatpush.msra.mxu0 0.0
      %840 = vmatpush.msra.mxu0 0.0
      %841 = vmatpush.msra.mxu0 0.0
      %842 = vmatpush.msra.mxu0 0.0
      %843 = vmatpush.msra.mxu0 0.0
      %844 = vmatpush.msra.mxu0 0.0
      %845 = vmatpush.msra.mxu0 0.0
      %846 = vmatpush.msra.mxu0 %v820
      %847 = vmatmul.f32.gmra.mxu0 %v817
      %v848 = vpop.f32.mrf.mxu0
      %v849 = vadd.f32 0.0, %v848
      %850 = vdwg.mxu0
      %851 = vmatpush.msra.mxu0 0.0
      %852 = vmatpush.msra.mxu0 0.0
      %853 = vmatpush.msra.mxu0 0.0
      %854 = vmatpush.msra.mxu0 0.0
      %855 = vmatpush.msra.mxu0 0.0
      %856 = vmatpush.msra.mxu0 0.0
      %857 = vmatpush.msra.mxu0 0.0
      %858 = vmatpush.msra.mxu0 0.0
      %859 = vmatpush.msra.mxu0 0.0
      %860 = vmatpush.msra.mxu0 0.0
      %861 = vmatpush.msra.mxu0 0.0
      %862 = vmatpush.msra.mxu0 0.0
      %863 = vmatpush.msra.mxu0 0.0
      %864 = vmatpush.msra.mxu0 0.0
      %865 = vmatpush.msra.mxu0 0.0
      %866 = vmatpush.msra.mxu0 %v823
      %867 = vmatmul.f32.gmra.mxu0 %v817
      %v868 = vpop.f32.mrf.mxu0
      %v869 = vadd.f32 0.0, %v868
      %870 = vdwg.mxu0
      %871 = vmatpush.msra.mxu0 0.0
      %872 = vmatpush.msra.mxu0 0.0
      %873 = vmatpush.msra.mxu0 0.0
      %874 = vmatpush.msra.mxu0 0.0
      %875 = vmatpush.msra.mxu0 0.0
      %876 = vmatpush.msra.mxu0 0.0
      %877 = vmatpush.msra.mxu0 0.0
      %878 = vmatpush.msra.mxu0 0.0
      %879 = vmatpush.msra.mxu0 0.0
      %880 = vmatpush.msra.mxu0 0.0
      %881 = vmatpush.msra.mxu0 0.0
      %882 = vmatpush.msra.mxu0 0.0
      %883 = vmatpush.msra.mxu0 0.0
      %884 = vmatpush.msra.mxu0 0.0
      %885 = vmatpush.msra.mxu0 0.0
      %886 = vmatpush.msra.mxu0 %v826
      %887 = vmatmul.f32.gmra.mxu0 %v817
      %v888 = vpop.f32.mrf.mxu0
      %v889 = vadd.f32 0.0, %v888
      %890 = vdwg.mxu0
      %891 = vmatpush.msra.mxu0 0.0
      %892 = vmatpush.msra.mxu0 0.0
      %893 = vmatpush.msra.mxu0 0.0
      %894 = vmatpush.msra.mxu0 0.0
      %895 = vmatpush.msra.mxu0 0.0
      %896 = vmatpush.msra.mxu0 0.0
      %897 = vmatpush.msra.mxu0 0.0
      %898 = vmatpush.msra.mxu0 0.0
      %899 = vmatpush.msra.mxu0 0.0
      %900 = vmatpush.msra.mxu0 0.0
      %901 = vmatpush.msra.mxu0 0.0
      %902 = vmatpush.msra.mxu0 0.0
      %903 = vmatpush.msra.mxu0 0.0
      %904 = vmatpush.msra.mxu0 0.0
      %905 = vmatpush.msra.mxu0 0.0
      %906 = vmatpush.msra.mxu0 %v829
      %907 = vmatmul.f32.gmra.mxu0 %v817
      %v908 = vpop.f32.mrf.mxu0
      %v909 = vadd.f32 0.0, %v908
      %910 = vdwg.mxu0
      %v911 = vadd.f32 %v774, %v849
      %v912 = vadd.f32 %v775, %v869
      %v913 = vadd.f32 %v776, %v889
      %v914 = vadd.f32 %v777, %v909
      %915 = vst [vmem:[#allocation1] ss:$2 sm:$0xff] %v231
      %s916 = scalar_lea.vmem [#allocation1], 16
      %917 = vst [vmem:[%s916] ss:$2 sm:$0xff] %v232
      %v918 = vld.sshfl [vmem:[#allocation1] sm:$0xff pattern:$0x75316420]
      %v919 = vld.sshfl [vmem:[#allocation1 + $0x8] sm:$0xff pattern:$0x75316420]
      %v920 = vld.sshfl [vmem:[#allocation1 + $0x10] sm:$0xff pattern:$0x75316420]
      %v921 = vld.sshfl [vmem:[#allocation1 + $0x18] sm:$0xff pattern:$0x75316420]
      %926 = vrot.lane.b32.xlu0 %v918, 63
      %v927 = vpop.permute.xlu0 %926
      %928 = vrot.lane.b32.xlu0 %v919, 63
      %v929 = vpop.permute.xlu0 %928
      %930 = vrot.lane.b32.xlu0 %v920, 63
      %v931 = vpop.permute.xlu0 %930
      %932 = vrot.lane.b32.xlu0 %v921, 63
      %v933 = vpop.permute.xlu0 %932
      %vm934 = vcmp.lt.s32.totalorder %v255, 63
      %v935 = vsel %vm934, %v931, %v933
      %v936 = vsel %vm934, %v929, %v931
      %v937 = vsel %vm934, %v927, %v929
      %v938 = vsel %vm934, %v933, %v927
      %v939 = vsel %vm212, 1, 0
      %v940 = vperm.slane %v939, 0
      %v941 = vperm.slane %v939, 1
      %v942 = vperm.slane %v939, 2
      %v943 = vperm.slane %v939, 3
      %vm944 = vcmp.eq.s32.totalorder %v940, 1
      %vm945 = vcmp.eq.s32.totalorder %v941, 1
      %vm946 = vcmp.eq.s32.totalorder %v942, 1
      %vm947 = vcmp.eq.s32.totalorder %v943, 1
      %v948 = vsel %vm944, %v938, 0.0
      %v949 = vsel %vm945, %v937, 0.0
      %v950 = vsel %vm946, %v936, 0.0
      %v951 = vsel %vm947, %v935, 0.0
      %952 = vrot.lane.b32.xlu0 %v208, 108
      %v953 = vpop.permute.xlu0 %952
      %v954 = vsel %vm314, %v953, 0
      %v957 = vsel %vm317, %v948, 0
      %v960 = vsel %vm317, %v949, 0
      %v963 = vsel %vm317, %v950, 0
      %v966 = vsel %vm317, %v951, 0
      %968 = vmatpush.msra.mxu0 0.0
      %969 = vmatpush.msra.mxu0 0.0
      %970 = vmatpush.msra.mxu0 0.0
      %971 = vmatpush.msra.mxu0 0.0
      %972 = vmatpush.msra.mxu0 0.0
      %973 = vmatpush.msra.mxu0 0.0
      %974 = vmatpush.msra.mxu0 0.0
      %975 = vmatpush.msra.mxu0 0.0
      %976 = vmatpush.msra.mxu0 0.0
      %977 = vmatpush.msra.mxu0 0.0
      %978 = vmatpush.msra.mxu0 0.0
      %979 = vmatpush.msra.mxu0 0.0
      %980 = vmatpush.msra.mxu0 0.0
      %981 = vmatpush.msra.mxu0 0.0
      %982 = vmatpush.msra.mxu0 0.0
      %983 = vmatpush.msra.mxu0 %v957
      %984 = vmatmul.f32.gmra.mxu0 %v954
      %v985 = vpop.f32.mrf.mxu0
      %v986 = vadd.f32 0.0, %v985
      %987 = vdwg.mxu0
      %988 = vmatpush.msra.mxu0 0.0
      %989 = vmatpush.msra.mxu0 0.0
      %990 = vmatpush.msra.mxu0 0.0
      %991 = vmatpush.msra.mxu0 0.0
      %992 = vmatpush.msra.mxu0 0.0
      %993 = vmatpush.msra.mxu0 0.0
      %994 = vmatpush.msra.mxu0 0.0
      %995 = vmatpush.msra.mxu0 0.0
      %996 = vmatpush.msra.mxu0 0.0
      %997 = vmatpush.msra.mxu0 0.0
      %998 = vmatpush.msra.mxu0 0.0
      %999 = vmatpush.msra.mxu0 0.0
      %1000 = vmatpush.msra.mxu0 0.0
      %1001 = vmatpush.msra.mxu0 0.0
      %1002 = vmatpush.msra.mxu0 0.0
      %1003 = vmatpush.msra.mxu0 %v960
      %1004 = vmatmul.f32.gmra.mxu0 %v954
      %v1005 = vpop.f32.mrf.mxu0
      %v1006 = vadd.f32 0.0, %v1005
      %1007 = vdwg.mxu0
      %1008 = vmatpush.msra.mxu0 0.0
      %1009 = vmatpush.msra.mxu0 0.0
      %1010 = vmatpush.msra.mxu0 0.0
      %1011 = vmatpush.msra.mxu0 0.0
      %1012 = vmatpush.msra.mxu0 0.0
      %1013 = vmatpush.msra.mxu0 0.0
      %1014 = vmatpush.msra.mxu0 0.0
      %1015 = vmatpush.msra.mxu0 0.0
      %1016 = vmatpush.msra.mxu0 0.0
      %1017 = vmatpush.msra.mxu0 0.0
      %1018 = vmatpush.msra.mxu0 0.0
      %1019 = vmatpush.msra.mxu0 0.0
      %1020 = vmatpush.msra.mxu0 0.0
      %1021 = vmatpush.msra.mxu0 0.0
      %1022 = vmatpush.msra.mxu0 0.0
      %1023 = vmatpush.msra.mxu0 %v963
      %1024 = vmatmul.f32.gmra.mxu0 %v954
      %v1025 = vpop.f32.mrf.mxu0
      %v1026 = vadd.f32 0.0, %v1025
      %1027 = vdwg.mxu0
      %1028 = vmatpush.msra.mxu0 0.0
      %1029 = vmatpush.msra.mxu0 0.0
      %1030 = vmatpush.msra.mxu0 0.0
      %1031 = vmatpush.msra.mxu0 0.0
      %1032 = vmatpush.msra.mxu0 0.0
      %1033 = vmatpush.msra.mxu0 0.0
      %1034 = vmatpush.msra.mxu0 0.0
      %1035 = vmatpush.msra.mxu0 0.0
      %1036 = vmatpush.msra.mxu0 0.0
      %1037 = vmatpush.msra.mxu0 0.0
      %1038 = vmatpush.msra.mxu0 0.0
      %1039 = vmatpush.msra.mxu0 0.0
      %1040 = vmatpush.msra.mxu0 0.0
      %1041 = vmatpush.msra.mxu0 0.0
      %1042 = vmatpush.msra.mxu0 0.0
      %1043 = vmatpush.msra.mxu0 %v966
      %1044 = vmatmul.f32.gmra.mxu0 %v954
      %v1045 = vpop.f32.mrf.mxu0
      %v1046 = vadd.f32 0.0, %v1045
      %1047 = vdwg.mxu0
      %v1048 = vadd.f32 %v911, %v986
      %v1049 = vadd.f32 %v912, %v1006
      %v1050 = vadd.f32 %v913, %v1026
      %v1051 = vadd.f32 %v914, %v1046
      %1052 = vst [vmem:[#allocation1] ss:$2 sm:$0xff] %v231
      %s1053 = scalar_lea.vmem [#allocation1], 16
      %1054 = vst [vmem:[%s1053] ss:$2 sm:$0xff] %v232
      %v1055 = vld.sshfl [vmem:[#allocation1] sm:$0xff pattern:$0x75316420]
      %v1056 = vld.sshfl [vmem:[#allocation1 + $0x8] sm:$0xff pattern:$0x75316420]
      %v1057 = vld.sshfl [vmem:[#allocation1 + $0x10] sm:$0xff pattern:$0x75316420]
      %v1058 = vld.sshfl [vmem:[#allocation1 + $0x18] sm:$0xff pattern:$0x75316420]
      %1063 = vrot.lane.b32.xlu0 %v1055, 57
      %v1064 = vpop.permute.xlu0 %1063
      %1065 = vrot.lane.b32.xlu0 %v1056, 57
      %v1066 = vpop.permute.xlu0 %1065
      %1067 = vrot.lane.b32.xlu0 %v1057, 57
      %v1068 = vpop.permute.xlu0 %1067
      %1069 = vrot.lane.b32.xlu0 %v1058, 57
      %v1070 = vpop.permute.xlu0 %1069
      %vm1071 = vcmp.lt.s32.totalorder %v255, 57
      %v1072 = vsel %vm1071, %v1068, %v1070
      %v1073 = vsel %vm1071, %v1066, %v1068
      %v1074 = vsel %vm1071, %v1064, %v1066
      %v1075 = vsel %vm1071, %v1070, %v1064
      %v1076 = vsel %vm215, 1, 0
      %v1077 = vperm.slane %v1076, 0
      %v1078 = vperm.slane %v1076, 1
      %v1079 = vperm.slane %v1076, 2
      %v1080 = vperm.slane %v1076, 3
      %vm1081 = vcmp.eq.s32.totalorder %v1077, 1
      %vm1082 = vcmp.eq.s32.totalorder %v1078, 1
      %vm1083 = vcmp.eq.s32.totalorder %v1079, 1
      %vm1084 = vcmp.eq.s32.totalorder %v1080, 1
      %v1085 = vsel %vm1081, %v1075, 0.0
      %v1086 = vsel %vm1082, %v1074, 0.0
      %v1087 = vsel %vm1083, %v1073, 0.0
      %v1088 = vsel %vm1084, %v1072, 0.0
      %1089 = vrot.lane.b32.xlu0 %v208, 104
      %v1090 = vpop.permute.xlu0 %1089
      %v1091 = vsel %vm314, %v1090, 0
      %v1094 = vsel %vm317, %v1085, 0
      %v1097 = vsel %vm317, %v1086, 0
      %v1100 = vsel %vm317, %v1087, 0
      %v1103 = vsel %vm317, %v1088, 0
      %1105 = vmatpush.msra.mxu0 0.0
      %1106 = vmatpush.msra.mxu0 0.0
      %1107 = vmatpush.msra.mxu0 0.0
      %1108 = vmatpush.msra.mxu0 0.0
      %1109 = vmatpush.msra.mxu0 0.0
      %1110 = vmatpush.msra.mxu0 0.0
      %1111 = vmatpush.msra.mxu0 0.0
      %1112 = vmatpush.msra.mxu0 0.0
      %1113 = vmatpush.msra.mxu0 0.0
      %1114 = vmatpush.msra.mxu0 0.0
      %1115 = vmatpush.msra.mxu0 0.0
      %1116 = vmatpush.msra.mxu0 0.0
      %1117 = vmatpush.msra.mxu0 0.0
      %1118 = vmatpush.msra.mxu0 0.0
      %1119 = vmatpush.msra.mxu0 0.0
      %1120 = vmatpush.msra.mxu0 %v1094
      %1121 = vmatmul.f32.gmra.mxu0 %v1091
      %v1122 = vpop.f32.mrf.mxu0
      %v1123 = vadd.f32 0.0, %v1122
      %1124 = vdwg.mxu0
      %1125 = vmatpush.msra.mxu0 0.0
      %1126 = vmatpush.msra.mxu0 0.0
      %1127 = vmatpush.msra.mxu0 0.0
      %1128 = vmatpush.msra.mxu0 0.0
      %1129 = vmatpush.msra.mxu0 0.0
      %1130 = vmatpush.msra.mxu0 0.0
      %1131 = vmatpush.msra.mxu0 0.0
      %1132 = vmatpush.msra.mxu0 0.0
      %1133 = vmatpush.msra.mxu0 0.0
      %1134 = vmatpush.msra.mxu0 0.0
      %1135 = vmatpush.msra.mxu0 0.0
      %1136 = vmatpush.msra.mxu0 0.0
      %1137 = vmatpush.msra.mxu0 0.0
      %1138 = vmatpush.msra.mxu0 0.0
      %1139 = vmatpush.msra.mxu0 0.0
      %1140 = vmatpush.msra.mxu0 %v1097
      %1141 = vmatmul.f32.gmra.mxu0 %v1091
      %v1142 = vpop.f32.mrf.mxu0
      %v1143 = vadd.f32 0.0, %v1142
      %1144 = vdwg.mxu0
      %1145 = vmatpush.msra.mxu0 0.0
      %1146 = vmatpush.msra.mxu0 0.0
      %1147 = vmatpush.msra.mxu0 0.0
      %1148 = vmatpush.msra.mxu0 0.0
      %1149 = vmatpush.msra.mxu0 0.0
      %1150 = vmatpush.msra.mxu0 0.0
      %1151 = vmatpush.msra.mxu0 0.0
      %1152 = vmatpush.msra.mxu0 0.0
      %1153 = vmatpush.msra.mxu0 0.0
      %1154 = vmatpush.msra.mxu0 0.0
      %1155 = vmatpush.msra.mxu0 0.0
      %1156 = vmatpush.msra.mxu0 0.0
      %1157 = vmatpush.msra.mxu0 0.0
      %1158 = vmatpush.msra.mxu0 0.0
      %1159 = vmatpush.msra.mxu0 0.0
      %1160 = vmatpush.msra.mxu0 %v1100
      %1161 = vmatmul.f32.gmra.mxu0 %v1091
      %v1162 = vpop.f32.mrf.mxu0
      %v1163 = vadd.f32 0.0, %v1162
      %1164 = vdwg.mxu0
      %1165 = vmatpush.msra.mxu0 0.0
      %1166 = vmatpush.msra.mxu0 0.0
      %1167 = vmatpush.msra.mxu0 0.0
      %1168 = vmatpush.msra.mxu0 0.0
      %1169 = vmatpush.msra.mxu0 0.0
      %1170 = vmatpush.msra.mxu0 0.0
      %1171 = vmatpush.msra.mxu0 0.0
      %1172 = vmatpush.msra.mxu0 0.0
      %1173 = vmatpush.msra.mxu0 0.0
      %1174 = vmatpush.msra.mxu0 0.0
      %1175 = vmatpush.msra.mxu0 0.0
      %1176 = vmatpush.msra.mxu0 0.0
      %1177 = vmatpush.msra.mxu0 0.0
      %1178 = vmatpush.msra.mxu0 0.0
      %1179 = vmatpush.msra.mxu0 0.0
      %1180 = vmatpush.msra.mxu0 %v1103
      %1181 = vmatmul.f32.gmra.mxu0 %v1091
      %v1182 = vpop.f32.mrf.mxu0
      %v1183 = vadd.f32 0.0, %v1182
      %1184 = vdwg.mxu0
      %v1185 = vadd.f32 %v1048, %v1123
      %v1186 = vadd.f32 %v1049, %v1143
      %v1187 = vadd.f32 %v1050, %v1163
      %v1188 = vadd.f32 %v1051, %v1183
      %1189 = vst [vmem:[#allocation1] ss:$2 sm:$0xff] %v231
      %s1190 = scalar_lea.vmem [#allocation1], 16
      %1191 = vst [vmem:[%s1190] ss:$2 sm:$0xff] %v232
      %v1192 = vld.sshfl [vmem:[#allocation1] sm:$0xff pattern:$0x75316420]
      %v1193 = vld.sshfl [vmem:[#allocation1 + $0x8] sm:$0xff pattern:$0x75316420]
      %v1194 = vld.sshfl [vmem:[#allocation1 + $0x10] sm:$0xff pattern:$0x75316420]
      %v1195 = vld.sshfl [vmem:[#allocation1 + $0x18] sm:$0xff pattern:$0x75316420]
      %1200 = vrot.lane.b32.xlu0 %v1192, 56
      %v1201 = vpop.permute.xlu0 %1200
      %1202 = vrot.lane.b32.xlu0 %v1193, 56
      %v1203 = vpop.permute.xlu0 %1202
      %1204 = vrot.lane.b32.xlu0 %v1194, 56
      %v1205 = vpop.permute.xlu0 %1204
      %1206 = vrot.lane.b32.xlu0 %v1195, 56
      %v1207 = vpop.permute.xlu0 %1206
      %vm1208 = vcmp.lt.s32.totalorder %v255, 56
      %v1209 = vsel %vm1208, %v1205, %v1207
      %v1210 = vsel %vm1208, %v1203, %v1205
      %v1211 = vsel %vm1208, %v1201, %v1203
      %v1212 = vsel %vm1208, %v1207, %v1201
      %v1213 = vsel %vm214, 1, 0
      %v1214 = vperm.slane %v1213, 0
      %v1215 = vperm.slane %v1213, 1
      %v1216 = vperm.slane %v1213, 2
      %v1217 = vperm.slane %v1213, 3
      %vm1218 = vcmp.eq.s32.totalorder %v1214, 1
      %vm1219 = vcmp.eq.s32.totalorder %v1215, 1
      %vm1220 = vcmp.eq.s32.totalorder %v1216, 1
      %vm1221 = vcmp.eq.s32.totalorder %v1217, 1
      %v1222 = vsel %vm1218, %v1212, 0.0
      %v1223 = vsel %vm1219, %v1211, 0.0
      %v1224 = vsel %vm1220, %v1210, 0.0
      %v1225 = vsel %vm1221, %v1209, 0.0
      %1226 = vrot.lane.b32.xlu0 %v208, 100
      %v1227 = vpop.permute.xlu0 %1226
      %v1228 = vsel %vm314, %v1227, 0
      %v1231 = vsel %vm317, %v1222, 0
      %v1234 = vsel %vm317, %v1223, 0
      %v1237 = vsel %vm317, %v1224, 0
      %v1240 = vsel %vm317, %v1225, 0
      %1242 = vmatpush.msra.mxu0 0.0
      %1243 = vmatpush.msra.mxu0 0.0
      %1244 = vmatpush.msra.mxu0 0.0
      %1245 = vmatpush.msra.mxu0 0.0
      %1246 = vmatpush.msra.mxu0 0.0
      %1247 = vmatpush.msra.mxu0 0.0
      %1248 = vmatpush.msra.mxu0 0.0
      %1249 = vmatpush.msra.mxu0 0.0
      %1250 = vmatpush.msra.mxu0 0.0
      %1251 = vmatpush.msra.mxu0 0.0
      %1252 = vmatpush.msra.mxu0 0.0
      %1253 = vmatpush.msra.mxu0 0.0
      %1254 = vmatpush.msra.mxu0 0.0
      %1255 = vmatpush.msra.mxu0 0.0
      %1256 = vmatpush.msra.mxu0 0.0
      %1257 = vmatpush.msra.mxu0 %v1231
      %1258 = vmatmul.f32.gmra.mxu0 %v1228
      %v1259 = vpop.f32.mrf.mxu0
      %v1260 = vadd.f32 0.0, %v1259
      %1261 = vdwg.mxu0
      %1262 = vmatpush.msra.mxu0 0.0
      %1263 = vmatpush.msra.mxu0 0.0
      %1264 = vmatpush.msra.mxu0 0.0
      %1265 = vmatpush.msra.mxu0 0.0
      %1266 = vmatpush.msra.mxu0 0.0
      %1267 = vmatpush.msra.mxu0 0.0
      %1268 = vmatpush.msra.mxu0 0.0
      %1269 = vmatpush.msra.mxu0 0.0
      %1270 = vmatpush.msra.mxu0 0.0
      %1271 = vmatpush.msra.mxu0 0.0
      %1272 = vmatpush.msra.mxu0 0.0
      %1273 = vmatpush.msra.mxu0 0.0
      %1274 = vmatpush.msra.mxu0 0.0
      %1275 = vmatpush.msra.mxu0 0.0
      %1276 = vmatpush.msra.mxu0 0.0
      %1277 = vmatpush.msra.mxu0 %v1234
      %1278 = vmatmul.f32.gmra.mxu0 %v1228
      %v1279 = vpop.f32.mrf.mxu0
      %v1280 = vadd.f32 0.0, %v1279
      %1281 = vdwg.mxu0
      %1282 = vmatpush.msra.mxu0 0.0
      %1283 = vmatpush.msra.mxu0 0.0
      %1284 = vmatpush.msra.mxu0 0.0
      %1285 = vmatpush.msra.mxu0 0.0
      %1286 = vmatpush.msra.mxu0 0.0
      %1287 = vmatpush.msra.mxu0 0.0
      %1288 = vmatpush.msra.mxu0 0.0
      %1289 = vmatpush.msra.mxu0 0.0
      %1290 = vmatpush.msra.mxu0 0.0
      %1291 = vmatpush.msra.mxu0 0.0
      %1292 = vmatpush.msra.mxu0 0.0
      %1293 = vmatpush.msra.mxu0 0.0
      %1294 = vmatpush.msra.mxu0 0.0
      %1295 = vmatpush.msra.mxu0 0.0
      %1296 = vmatpush.msra.mxu0 0.0
      %1297 = vmatpush.msra.mxu0 %v1237
      %1298 = vmatmul.f32.gmra.mxu0 %v1228
      %v1299 = vpop.f32.mrf.mxu0
      %v1300 = vadd.f32 0.0, %v1299
      %1301 = vdwg.mxu0
      %1302 = vmatpush.msra.mxu0 0.0
      %1303 = vmatpush.msra.mxu0 0.0
      %1304 = vmatpush.msra.mxu0 0.0
      %1305 = vmatpush.msra.mxu0 0.0
      %1306 = vmatpush.msra.mxu0 0.0
      %1307 = vmatpush.msra.mxu0 0.0
      %1308 = vmatpush.msra.mxu0 0.0
      %1309 = vmatpush.msra.mxu0 0.0
      %1310 = vmatpush.msra.mxu0 0.0
      %1311 = vmatpush.msra.mxu0 0.0
      %1312 = vmatpush.msra.mxu0 0.0
      %1313 = vmatpush.msra.mxu0 0.0
      %1314 = vmatpush.msra.mxu0 0.0
      %1315 = vmatpush.msra.mxu0 0.0
      %1316 = vmatpush.msra.mxu0 0.0
      %1317 = vmatpush.msra.mxu0 %v1240
      %1318 = vmatmul.f32.gmra.mxu0 %v1228
      %v1319 = vpop.f32.mrf.mxu0
      %v1320 = vadd.f32 0.0, %v1319
      %1321 = vdwg.mxu0
      %v1322 = vadd.f32 %v1185, %v1260
      %v1323 = vadd.f32 %v1186, %v1280
      %v1324 = vadd.f32 %v1187, %v1300
      %v1325 = vadd.f32 %v1188, %v1320
      %1326 = vst [vmem:[#allocation1] ss:$2 sm:$0xff] %v231
      %s1327 = scalar_lea.vmem [#allocation1], 16
      %1328 = vst [vmem:[%s1327] ss:$2 sm:$0xff] %v232
      %v1329 = vld.sshfl [vmem:[#allocation1] sm:$0xff pattern:$0x75316420]
      %v1330 = vld.sshfl [vmem:[#allocation1 + $0x8] sm:$0xff pattern:$0x75316420]
      %v1331 = vld.sshfl [vmem:[#allocation1 + $0x10] sm:$0xff pattern:$0x75316420]
      %v1332 = vld.sshfl [vmem:[#allocation1 + $0x18] sm:$0xff pattern:$0x75316420]
      %1337 = vrot.lane.b32.xlu0 %v1329, 55
      %v1338 = vpop.permute.xlu0 %1337
      %1339 = vrot.lane.b32.xlu0 %v1330, 55
      %v1340 = vpop.permute.xlu0 %1339
      %1341 = vrot.lane.b32.xlu0 %v1331, 55
      %v1342 = vpop.permute.xlu0 %1341
      %1343 = vrot.lane.b32.xlu0 %v1332, 55
      %v1344 = vpop.permute.xlu0 %1343
      %vm1345 = vcmp.lt.s32.totalorder %v255, 55
      %v1346 = vsel %vm1345, %v1342, %v1344
      %v1347 = vsel %vm1345, %v1340, %v1342
      %v1348 = vsel %vm1345, %v1338, %v1340
      %v1349 = vsel %vm1345, %v1344, %v1338
      %v1350 = vsel %vm216, 1, 0
      %v1351 = vperm.slane %v1350, 0
      %v1352 = vperm.slane %v1350, 1
      %v1353 = vperm.slane %v1350, 2
      %v1354 = vperm.slane %v1350, 3
      %vm1355 = vcmp.eq.s32.totalorder %v1351, 1
      %vm1356 = vcmp.eq.s32.totalorder %v1352, 1
      %vm1357 = vcmp.eq.s32.totalorder %v1353, 1
      %vm1358 = vcmp.eq.s32.totalorder %v1354, 1
      %v1359 = vsel %vm1355, %v1349, 0.0
      %v1360 = vsel %vm1356, %v1348, 0.0
      %v1361 = vsel %vm1357, %v1347, 0.0
      %v1362 = vsel %vm1358, %v1346, 0.0
      %1363 = vrot.lane.b32.xlu0 %v208, 96
      %v1364 = vpop.permute.xlu0 %1363
      %v1365 = vsel %vm314, %v1364, 0
      %v1368 = vsel %vm317, %v1359, 0
      %v1371 = vsel %vm317, %v1360, 0
      %v1374 = vsel %vm317, %v1361, 0
      %v1377 = vsel %vm317, %v1362, 0
      %1379 = vmatpush.msra.mxu0 0.0
      %1380 = vmatpush.msra.mxu0 0.0
      %1381 = vmatpush.msra.mxu0 0.0
      %1382 = vmatpush.msra.mxu0 0.0
      %1383 = vmatpush.msra.mxu0 0.0
      %1384 = vmatpush.msra.mxu0 0.0
      %1385 = vmatpush.msra.mxu0 0.0
      %1386 = vmatpush.msra.mxu0 0.0
      %1387 = vmatpush.msra.mxu0 0.0
      %1388 = vmatpush.msra.mxu0 0.0
      %1389 = vmatpush.msra.mxu0 0.0
      %1390 = vmatpush.msra.mxu0 0.0
      %1391 = vmatpush.msra.mxu0 0.0
      %1392 = vmatpush.msra.mxu0 0.0
      %1393 = vmatpush.msra.mxu0 0.0
      %1394 = vmatpush.msra.mxu0 %v1368
      %1395 = vmatmul.f32.gmra.mxu0 %v1365
      %v1396 = vpop.f32.mrf.mxu0
      %v1397 = vadd.f32 0.0, %v1396
      %1398 = vdwg.mxu0
      %1399 = vmatpush.msra.mxu0 0.0
      %1400 = vmatpush.msra.mxu0 0.0
      %1401 = vmatpush.msra.mxu0 0.0
      %1402 = vmatpush.msra.mxu0 0.0
      %1403 = vmatpush.msra.mxu0 0.0
      %1404 = vmatpush.msra.mxu0 0.0
      %1405 = vmatpush.msra.mxu0 0.0
      %1406 = vmatpush.msra.mxu0 0.0
      %1407 = vmatpush.msra.mxu0 0.0
      %1408 = vmatpush.msra.mxu0 0.0
      %1409 = vmatpush.msra.mxu0 0.0
      %1410 = vmatpush.msra.mxu0 0.0
      %1411 = vmatpush.msra.mxu0 0.0
      %1412 = vmatpush.msra.mxu0 0.0
      %1413 = vmatpush.msra.mxu0 0.0
      %1414 = vmatpush.msra.mxu0 %v1371
      %1415 = vmatmul.f32.gmra.mxu0 %v1365
      %v1416 = vpop.f32.mrf.mxu0
      %v1417 = vadd.f32 0.0, %v1416
      %1418 = vdwg.mxu0
      %1419 = vmatpush.msra.mxu0 0.0
      %1420 = vmatpush.msra.mxu0 0.0
      %1421 = vmatpush.msra.mxu0 0.0
      %1422 = vmatpush.msra.mxu0 0.0
      %1423 = vmatpush.msra.mxu0 0.0
      %1424 = vmatpush.msra.mxu0 0.0
      %1425 = vmatpush.msra.mxu0 0.0
      %1426 = vmatpush.msra.mxu0 0.0
      %1427 = vmatpush.msra.mxu0 0.0
      %1428 = vmatpush.msra.mxu0 0.0
      %1429 = vmatpush.msra.mxu0 0.0
      %1430 = vmatpush.msra.mxu0 0.0
      %1431 = vmatpush.msra.mxu0 0.0
      %1432 = vmatpush.msra.mxu0 0.0
      %1433 = vmatpush.msra.mxu0 0.0
      %1434 = vmatpush.msra.mxu0 %v1374
      %1435 = vmatmul.f32.gmra.mxu0 %v1365
      %v1436 = vpop.f32.mrf.mxu0
      %v1437 = vadd.f32 0.0, %v1436
      %1438 = vdwg.mxu0
      %1439 = vmatpush.msra.mxu0 0.0
      %1440 = vmatpush.msra.mxu0 0.0
      %1441 = vmatpush.msra.mxu0 0.0
      %1442 = vmatpush.msra.mxu0 0.0
      %1443 = vmatpush.msra.mxu0 0.0
      %1444 = vmatpush.msra.mxu0 0.0
      %1445 = vmatpush.msra.mxu0 0.0
      %1446 = vmatpush.msra.mxu0 0.0
      %1447 = vmatpush.msra.mxu0 0.0
      %1448 = vmatpush.msra.mxu0 0.0
      %1449 = vmatpush.msra.mxu0 0.0
      %1450 = vmatpush.msra.mxu0 0.0
      %1451 = vmatpush.msra.mxu0 0.0
      %1452 = vmatpush.msra.mxu0 0.0
      %1453 = vmatpush.msra.mxu0 0.0
      %1454 = vmatpush.msra.mxu0 %v1377
      %1455 = vmatmul.f32.gmra.mxu0 %v1365
      %v1456 = vpop.f32.mrf.mxu0
      %v1457 = vadd.f32 0.0, %v1456
      %1458 = vdwg.mxu0
      %v1459 = vadd.f32 %v1322, %v1397
      %v1460 = vadd.f32 %v1323, %v1417
      %v1461 = vadd.f32 %v1324, %v1437
      %v1462 = vadd.f32 %v1325, %v1457
      %1463 = vst [vmem:[#allocation1] ss:$2 sm:$0xff] %v231
      %s1464 = scalar_lea.vmem [#allocation1], 16
      %1465 = vst [vmem:[%s1464] ss:$2 sm:$0xff] %v232
      %v1466 = vld.sshfl [vmem:[#allocation1] sm:$0xff pattern:$0x75316420]
      %v1467 = vld.sshfl [vmem:[#allocation1 + $0x8] sm:$0xff pattern:$0x75316420]
      %v1468 = vld.sshfl [vmem:[#allocation1 + $0x10] sm:$0xff pattern:$0x75316420]
      %v1469 = vld.sshfl [vmem:[#allocation1 + $0x18] sm:$0xff pattern:$0x75316420]
      %1474 = vrot.lane.b32.xlu0 %v1466, 9
      %v1475 = vpop.permute.xlu0 %1474
      %1476 = vrot.lane.b32.xlu0 %v1467, 9
      %v1477 = vpop.permute.xlu0 %1476
      %1478 = vrot.lane.b32.xlu0 %v1468, 9
      %v1479 = vpop.permute.xlu0 %1478
      %1480 = vrot.lane.b32.xlu0 %v1469, 9
      %v1481 = vpop.permute.xlu0 %1480
      %vm1482 = vcmp.lt.s32.totalorder %v255, 9
      %v1483 = vsel %vm1482, %v1479, %v1481
      %v1484 = vsel %vm1482, %v1477, %v1479
      %v1485 = vsel %vm1482, %v1475, %v1477
      %v1486 = vsel %vm1482, %v1481, %v1475
      %v1487 = vsel %vm217, 1, 0
      %v1488 = vperm.slane %v1487, 0
      %v1489 = vperm.slane %v1487, 1
      %v1490 = vperm.slane %v1487, 2
      %v1491 = vperm.slane %v1487, 3
      %vm1492 = vcmp.eq.s32.totalorder %v1488, 1
      %vm1493 = vcmp.eq.s32.totalorder %v1489, 1
      %vm1494 = vcmp.eq.s32.totalorder %v1490, 1
      %vm1495 = vcmp.eq.s32.totalorder %v1491, 1
      %v1496 = vsel %vm1492, %v1486, 0.0
      %v1497 = vsel %vm1493, %v1485, 0.0
      %v1498 = vsel %vm1494, %v1484, 0.0
      %v1499 = vsel %vm1495, %v1483, 0.0
      %1500 = vrot.lane.b32.xlu0 %v208, 92
      %v1501 = vpop.permute.xlu0 %1500
      %v1502 = vsel %vm314, %v1501, 0
      %v1505 = vsel %vm317, %v1496, 0
      %v1508 = vsel %vm317, %v1497, 0
      %v1511 = vsel %vm317, %v1498, 0
      %v1514 = vsel %vm317, %v1499, 0
      %1516 = vmatpush.msra.mxu0 0.0
      %1517 = vmatpush.msra.mxu0 0.0
      %1518 = vmatpush.msra.mxu0 0.0
      %1519 = vmatpush.msra.mxu0 0.0
      %1520 = vmatpush.msra.mxu0 0.0
      %1521 = vmatpush.msra.mxu0 0.0
      %1522 = vmatpush.msra.mxu0 0.0
      %1523 = vmatpush.msra.mxu0 0.0
      %1524 = vmatpush.msra.mxu0 0.0
      %1525 = vmatpush.msra.mxu0 0.0
      %1526 = vmatpush.msra.mxu0 0.0
      %1527 = vmatpush.msra.mxu0 0.0
      %1528 = vmatpush.msra.mxu0 0.0
      %1529 = vmatpush.msra.mxu0 0.0
      %1530 = vmatpush.msra.mxu0 0.0
      %1531 = vmatpush.msra.mxu0 %v1505
      %1532 = vmatmul.f32.gmra.mxu0 %v1502
      %v1533 = vpop.f32.mrf.mxu0
      %v1534 = vadd.f32 0.0, %v1533
      %1535 = vdwg.mxu0
      %1536 = vmatpush.msra.mxu0 0.0
      %1537 = vmatpush.msra.mxu0 0.0
      %1538 = vmatpush.msra.mxu0 0.0
      %1539 = vmatpush.msra.mxu0 0.0
      %1540 = vmatpush.msra.mxu0 0.0
      %1541 = vmatpush.msra.mxu0 0.0
      %1542 = vmatpush.msra.mxu0 0.0
      %1543 = vmatpush.msra.mxu0 0.0
      %1544 = vmatpush.msra.mxu0 0.0
      %1545 = vmatpush.msra.mxu0 0.0
      %1546 = vmatpush.msra.mxu0 0.0
      %1547 = vmatpush.msra.mxu0 0.0
      %1548 = vmatpush.msra.mxu0 0.0
      %1549 = vmatpush.msra.mxu0 0.0
      %1550 = vmatpush.msra.mxu0 0.0
      %1551 = vmatpush.msra.mxu0 %v1508
      %1552 = vmatmul.f32.gmra.mxu0 %v1502
      %v1553 = vpop.f32.mrf.mxu0
      %v1554 = vadd.f32 0.0, %v1553
      %1555 = vdwg.mxu0
      %1556 = vmatpush.msra.mxu0 0.0
      %1557 = vmatpush.msra.mxu0 0.0
      %1558 = vmatpush.msra.mxu0 0.0
      %1559 = vmatpush.msra.mxu0 0.0
      %1560 = vmatpush.msra.mxu0 0.0
      %1561 = vmatpush.msra.mxu0 0.0
      %1562 = vmatpush.msra.mxu0 0.0
      %1563 = vmatpush.msra.mxu0 0.0
      %1564 = vmatpush.msra.mxu0 0.0
      %1565 = vmatpush.msra.mxu0 0.0
      %1566 = vmatpush.msra.mxu0 0.0
      %1567 = vmatpush.msra.mxu0 0.0
      %1568 = vmatpush.msra.mxu0 0.0
      %1569 = vmatpush.msra.mxu0 0.0
      %1570 = vmatpush.msra.mxu0 0.0
      %1571 = vmatpush.msra.mxu0 %v1511
      %1572 = vmatmul.f32.gmra.mxu0 %v1502
      %v1573 = vpop.f32.mrf.mxu0
      %v1574 = vadd.f32 0.0, %v1573
      %1575 = vdwg.mxu0
      %1576 = vmatpush.msra.mxu0 0.0
      %1577 = vmatpush.msra.mxu0 0.0
      %1578 = vmatpush.msra.mxu0 0.0
      %1579 = vmatpush.msra.mxu0 0.0
      %1580 = vmatpush.msra.mxu0 0.0
      %1581 = vmatpush.msra.mxu0 0.0
      %1582 = vmatpush.msra.mxu0 0.0
      %1583 = vmatpush.msra.mxu0 0.0
      %1584 = vmatpush.msra.mxu0 0.0
      %1585 = vmatpush.msra.mxu0 0.0
      %1586 = vmatpush.msra.mxu0 0.0
      %1587 = vmatpush.msra.mxu0 0.0
      %1588 = vmatpush.msra.mxu0 0.0
      %1589 = vmatpush.msra.mxu0 0.0
      %1590 = vmatpush.msra.mxu0 0.0
      %1591 = vmatpush.msra.mxu0 %v1514
      %1592 = vmatmul.f32.gmra.mxu0 %v1502
      %v1593 = vpop.f32.mrf.mxu0
      %v1594 = vadd.f32 0.0, %v1593
      %1595 = vdwg.mxu0
      %v1596 = vadd.f32 %v1459, %v1534
      %v1597 = vadd.f32 %v1460, %v1554
      %v1598 = vadd.f32 %v1461, %v1574
      %v1599 = vadd.f32 %v1462, %v1594
      %1600 = vst [vmem:[#allocation1] ss:$2 sm:$0xff] %v231
      %s1601 = scalar_lea.vmem [#allocation1], 16
      %1602 = vst [vmem:[%s1601] ss:$2 sm:$0xff] %v232
      %v1603 = vld.sshfl [vmem:[#allocation1] sm:$0xff pattern:$0x75316420]
      %v1604 = vld.sshfl [vmem:[#allocation1 + $0x8] sm:$0xff pattern:$0x75316420]
      %v1605 = vld.sshfl [vmem:[#allocation1 + $0x10] sm:$0xff pattern:$0x75316420]
      %v1606 = vld.sshfl [vmem:[#allocation1 + $0x18] sm:$0xff pattern:$0x75316420]
      %1611 = vrot.lane.b32.xlu0 %v1603, 8
      %v1612 = vpop.permute.xlu0 %1611
      %1613 = vrot.lane.b32.xlu0 %v1604, 8
      %v1614 = vpop.permute.xlu0 %1613
      %1615 = vrot.lane.b32.xlu0 %v1605, 8
      %v1616 = vpop.permute.xlu0 %1615
      %1617 = vrot.lane.b32.xlu0 %v1606, 8
      %v1618 = vpop.permute.xlu0 %1617
      %vm1619 = vcmp.lt.s32.totalorder %v255, 8
      %v1620 = vsel %vm1619, %v1616, %v1618
      %v1621 = vsel %vm1619, %v1614, %v1616
      %v1622 = vsel %vm1619, %v1612, %v1614
      %v1623 = vsel %vm1619, %v1618, %v1612
      %v1624 = vsel %vm204, 1, 0
      %v1625 = vperm.slane %v1624, 0
      %v1626 = vperm.slane %v1624, 1
      %v1627 = vperm.slane %v1624, 2
      %v1628 = vperm.slane %v1624, 3
      %vm1629 = vcmp.eq.s32.totalorder %v1625, 1
      %vm1630 = vcmp.eq.s32.totalorder %v1626, 1
      %vm1631 = vcmp.eq.s32.totalorder %v1627, 1
      %vm1632 = vcmp.eq.s32.totalorder %v1628, 1
      %v1633 = vsel %vm1629, %v1623, 0.0
      %v1634 = vsel %vm1630, %v1622, 0.0
      %v1635 = vsel %vm1631, %v1621, 0.0
      %v1636 = vsel %vm1632, %v1620, 0.0
      %1637 = vrot.lane.b32.xlu0 %v208, 88
      %v1638 = vpop.permute.xlu0 %1637
      %v1639 = vsel %vm314, %v1638, 0
      %v1642 = vsel %vm317, %v1633, 0
      %v1645 = vsel %vm317, %v1634, 0
      %v1648 = vsel %vm317, %v1635, 0
      %v1651 = vsel %vm317, %v1636, 0
      %1653 = vmatpush.msra.mxu0 0.0
      %1654 = vmatpush.msra.mxu0 0.0
      %1655 = vmatpush.msra.mxu0 0.0
      %1656 = vmatpush.msra.mxu0 0.0
      %1657 = vmatpush.msra.mxu0 0.0
      %1658 = vmatpush.msra.mxu0 0.0
      %1659 = vmatpush.msra.mxu0 0.0
      %1660 = vmatpush.msra.mxu0 0.0
      %1661 = vmatpush.msra.mxu0 0.0
      %1662 = vmatpush.msra.mxu0 0.0
      %1663 = vmatpush.msra.mxu0 0.0
      %1664 = vmatpush.msra.mxu0 0.0
      %1665 = vmatpush.msra.mxu0 0.0
      %1666 = vmatpush.msra.mxu0 0.0
      %1667 = vmatpush.msra.mxu0 0.0
      %1668 = vmatpush.msra.mxu0 %v1642
      %1669 = vmatmul.f32.gmra.mxu0 %v1639
      %v1670 = vpop.f32.mrf.mxu0
      %v1671 = vadd.f32 0.0, %v1670
      %1672 = vdwg.mxu0
      %1673 = vmatpush.msra.mxu0 0.0
      %1674 = vmatpush.msra.mxu0 0.0
      %1675 = vmatpush.msra.mxu0 0.0
      %1676 = vmatpush.msra.mxu0 0.0
      %1677 = vmatpush.msra.mxu0 0.0
      %1678 = vmatpush.msra.mxu0 0.0
      %1679 = vmatpush.msra.mxu0 0.0
      %1680 = vmatpush.msra.mxu0 0.0
      %1681 = vmatpush.msra.mxu0 0.0
      %1682 = vmatpush.msra.mxu0 0.0
      %1683 = vmatpush.msra.mxu0 0.0
      %1684 = vmatpush.msra.mxu0 0.0
      %1685 = vmatpush.msra.mxu0 0.0
      %1686 = vmatpush.msra.mxu0 0.0
      %1687 = vmatpush.msra.mxu0 0.0
      %1688 = vmatpush.msra.mxu0 %v1645
      %1689 = vmatmul.f32.gmra.mxu0 %v1639
      %v1690 = vpop.f32.mrf.mxu0
      %v1691 = vadd.f32 0.0, %v1690
      %1692 = vdwg.mxu0
      %1693 = vmatpush.msra.mxu0 0.0
      %1694 = vmatpush.msra.mxu0 0.0
      %1695 = vmatpush.msra.mxu0 0.0
      %1696 = vmatpush.msra.mxu0 0.0
      %1697 = vmatpush.msra.mxu0 0.0
      %1698 = vmatpush.msra.mxu0 0.0
      %1699 = vmatpush.msra.mxu0 0.0
      %1700 = vmatpush.msra.mxu0 0.0
      %1701 = vmatpush.msra.mxu0 0.0
      %1702 = vmatpush.msra.mxu0 0.0
      %1703 = vmatpush.msra.mxu0 0.0
      %1704 = vmatpush.msra.mxu0 0.0
      %1705 = vmatpush.msra.mxu0 0.0
      %1706 = vmatpush.msra.mxu0 0.0
      %1707 = vmatpush.msra.mxu0 0.0
      %1708 = vmatpush.msra.mxu0 %v1648
      %1709 = vmatmul.f32.gmra.mxu0 %v1639
      %v1710 = vpop.f32.mrf.mxu0
      %v1711 = vadd.f32 0.0, %v1710
      %1712 = vdwg.mxu0
      %1713 = vmatpush.msra.mxu0 0.0
      %1714 = vmatpush.msra.mxu0 0.0
      %1715 = vmatpush.msra.mxu0 0.0
      %1716 = vmatpush.msra.mxu0 0.0
      %1717 = vmatpush.msra.mxu0 0.0
      %1718 = vmatpush.msra.mxu0 0.0
      %1719 = vmatpush.msra.mxu0 0.0
      %1720 = vmatpush.msra.mxu0 0.0
      %1721 = vmatpush.msra.mxu0 0.0
      %1722 = vmatpush.msra.mxu0 0.0
      %1723 = vmatpush.msra.mxu0 0.0
      %1724 = vmatpush.msra.mxu0 0.0
      %1725 = vmatpush.msra.mxu0 0.0
      %1726 = vmatpush.msra.mxu0 0.0
      %1727 = vmatpush.msra.mxu0 0.0
      %1728 = vmatpush.msra.mxu0 %v1651
      %1729 = vmatmul.f32.gmra.mxu0 %v1639
      %v1730 = vpop.f32.mrf.mxu0
      %v1731 = vadd.f32 0.0, %v1730
      %1732 = vdwg.mxu0
      %v1733 = vadd.f32 %v1596, %v1671
      %v1734 = vadd.f32 %v1597, %v1691
      %v1735 = vadd.f32 %v1598, %v1711
      %v1736 = vadd.f32 %v1599, %v1731
      %1737 = vst [vmem:[#allocation1] ss:$2 sm:$0xff] %v231
      %s1738 = scalar_lea.vmem [#allocation1], 16
      %1739 = vst [vmem:[%s1738] ss:$2 sm:$0xff] %v232
      %v1740 = vld.sshfl [vmem:[#allocation1] sm:$0xff pattern:$0x75316420]
      %v1741 = vld.sshfl [vmem:[#allocation1 + $0x8] sm:$0xff pattern:$0x75316420]
      %v1742 = vld.sshfl [vmem:[#allocation1 + $0x10] sm:$0xff pattern:$0x75316420]
      %v1743 = vld.sshfl [vmem:[#allocation1 + $0x18] sm:$0xff pattern:$0x75316420]
      %1748 = vrot.lane.b32.xlu0 %v1740, 7
      %v1749 = vpop.permute.xlu0 %1748
      %1750 = vrot.lane.b32.xlu0 %v1741, 7
      %v1751 = vpop.permute.xlu0 %1750
      %1752 = vrot.lane.b32.xlu0 %v1742, 7
      %v1753 = vpop.permute.xlu0 %1752
      %1754 = vrot.lane.b32.xlu0 %v1743, 7
      %v1755 = vpop.permute.xlu0 %1754
      %vm1756 = vcmp.lt.s32.totalorder %v255, 7
      %v1757 = vsel %vm1756, %v1753, %v1755
      %v1758 = vsel %vm1756, %v1751, %v1753
      %v1759 = vsel %vm1756, %v1749, %v1751
      %v1760 = vsel %vm1756, %v1755, %v1749
      %v1761 = vsel %vm218, 1, 0
      %v1762 = vperm.slane %v1761, 0
      %v1763 = vperm.slane %v1761, 1
      %v1764 = vperm.slane %v1761, 2
      %v1765 = vperm.slane %v1761, 3
      %vm1766 = vcmp.eq.s32.totalorder %v1762, 1
      %vm1767 = vcmp.eq.s32.totalorder %v1763, 1
      %vm1768 = vcmp.eq.s32.totalorder %v1764, 1
      %vm1769 = vcmp.eq.s32.totalorder %v1765, 1
      %v1770 = vsel %vm1766, %v1760, 0.0
      %v1771 = vsel %vm1767, %v1759, 0.0
      %v1772 = vsel %vm1768, %v1758, 0.0
      %v1773 = vsel %vm1769, %v1757, 0.0
      %1774 = vrot.lane.b32.xlu0 %v208, 84
      %v1775 = vpop.permute.xlu0 %1774
      %v1776 = vsel %vm314, %v1775, 0
      %v1779 = vsel %vm317, %v1770, 0
      %v1782 = vsel %vm317, %v1771, 0
      %v1785 = vsel %vm317, %v1772, 0
      %v1788 = vsel %vm317, %v1773, 0
      %1790 = vmatpush.msra.mxu0 0.0
      %1791 = vmatpush.msra.mxu0 0.0
      %1792 = vmatpush.msra.mxu0 0.0
      %1793 = vmatpush.msra.mxu0 0.0
      %1794 = vmatpush.msra.mxu0 0.0
      %1795 = vmatpush.msra.mxu0 0.0
      %1796 = vmatpush.msra.mxu0 0.0
      %1797 = vmatpush.msra.mxu0 0.0
      %1798 = vmatpush.msra.mxu0 0.0
      %1799 = vmatpush.msra.mxu0 0.0
      %1800 = vmatpush.msra.mxu0 0.0
      %1801 = vmatpush.msra.mxu0 0.0
      %1802 = vmatpush.msra.mxu0 0.0
      %1803 = vmatpush.msra.mxu0 0.0
      %1804 = vmatpush.msra.mxu0 0.0
      %1805 = vmatpush.msra.mxu0 %v1779
      %1806 = vmatmul.f32.gmra.mxu0 %v1776
      %v1807 = vpop.f32.mrf.mxu0
      %v1808 = vadd.f32 0.0, %v1807
      %1809 = vdwg.mxu0
      %1810 = vmatpush.msra.mxu0 0.0
      %1811 = vmatpush.msra.mxu0 0.0
      %1812 = vmatpush.msra.mxu0 0.0
      %1813 = vmatpush.msra.mxu0 0.0
      %1814 = vmatpush.msra.mxu0 0.0
      %1815 = vmatpush.msra.mxu0 0.0
      %1816 = vmatpush.msra.mxu0 0.0
      %1817 = vmatpush.msra.mxu0 0.0
      %1818 = vmatpush.msra.mxu0 0.0
      %1819 = vmatpush.msra.mxu0 0.0
      %1820 = vmatpush.msra.mxu0 0.0
      %1821 = vmatpush.msra.mxu0 0.0
      %1822 = vmatpush.msra.mxu0 0.0
      %1823 = vmatpush.msra.mxu0 0.0
      %1824 = vmatpush.msra.mxu0 0.0
      %1825 = vmatpush.msra.mxu0 %v1782
      %1826 = vmatmul.f32.gmra.mxu0 %v1776
      %v1827 = vpop.f32.mrf.mxu0
      %v1828 = vadd.f32 0.0, %v1827
      %1829 = vdwg.mxu0
      %1830 = vmatpush.msra.mxu0 0.0
      %1831 = vmatpush.msra.mxu0 0.0
      %1832 = vmatpush.msra.mxu0 0.0
      %1833 = vmatpush.msra.mxu0 0.0
      %1834 = vmatpush.msra.mxu0 0.0
      %1835 = vmatpush.msra.mxu0 0.0
      %1836 = vmatpush.msra.mxu0 0.0
      %1837 = vmatpush.msra.mxu0 0.0
      %1838 = vmatpush.msra.mxu0 0.0
      %1839 = vmatpush.msra.mxu0 0.0
      %1840 = vmatpush.msra.mxu0 0.0
      %1841 = vmatpush.msra.mxu0 0.0
      %1842 = vmatpush.msra.mxu0 0.0
      %1843 = vmatpush.msra.mxu0 0.0
      %1844 = vmatpush.msra.mxu0 0.0
      %1845 = vmatpush.msra.mxu0 %v1785
      %1846 = vmatmul.f32.gmra.mxu0 %v1776
      %v1847 = vpop.f32.mrf.mxu0
      %v1848 = vadd.f32 0.0, %v1847
      %1849 = vdwg.mxu0
      %1850 = vmatpush.msra.mxu0 0.0
      %1851 = vmatpush.msra.mxu0 0.0
      %1852 = vmatpush.msra.mxu0 0.0
      %1853 = vmatpush.msra.mxu0 0.0
      %1854 = vmatpush.msra.mxu0 0.0
      %1855 = vmatpush.msra.mxu0 0.0
      %1856 = vmatpush.msra.mxu0 0.0
      %1857 = vmatpush.msra.mxu0 0.0
      %1858 = vmatpush.msra.mxu0 0.0
      %1859 = vmatpush.msra.mxu0 0.0
      %1860 = vmatpush.msra.mxu0 0.0
      %1861 = vmatpush.msra.mxu0 0.0
      %1862 = vmatpush.msra.mxu0 0.0
      %1863 = vmatpush.msra.mxu0 0.0
      %1864 = vmatpush.msra.mxu0 0.0
      %1865 = vmatpush.msra.mxu0 %v1788
      %1866 = vmatmul.f32.gmra.mxu0 %v1776
      %v1867 = vpop.f32.mrf.mxu0
      %v1868 = vadd.f32 0.0, %v1867
      %1869 = vdwg.mxu0
      %v1870 = vadd.f32 %v1733, %v1808
      %v1871 = vadd.f32 %v1734, %v1828
      %v1872 = vadd.f32 %v1735, %v1848
      %v1873 = vadd.f32 %v1736, %v1868
      %1874 = vst [vmem:[#allocation1] ss:$2 sm:$0xff] %v231
      %s1875 = scalar_lea.vmem [#allocation1], 16
      %1876 = vst [vmem:[%s1875] ss:$2 sm:$0xff] %v232
      %v1877 = vld.sshfl [vmem:[#allocation1] sm:$0xff pattern:$0x75316420]
      %v1878 = vld.sshfl [vmem:[#allocation1 + $0x8] sm:$0xff pattern:$0x75316420]
      %v1879 = vld.sshfl [vmem:[#allocation1 + $0x10] sm:$0xff pattern:$0x75316420]
      %v1880 = vld.sshfl [vmem:[#allocation1 + $0x18] sm:$0xff pattern:$0x75316420]
      %1885 = vrot.lane.b32.xlu0 %v1877, 1
      %v1886 = vpop.permute.xlu0 %1885
      %1887 = vrot.lane.b32.xlu0 %v1878, 1
      %v1888 = vpop.permute.xlu0 %1887
      %1889 = vrot.lane.b32.xlu0 %v1879, 1
      %v1890 = vpop.permute.xlu0 %1889
      %1891 = vrot.lane.b32.xlu0 %v1880, 1
      %v1892 = vpop.permute.xlu0 %1891
      %vm1893 = vcmp.lt.s32.totalorder %v255, 1
      %v1894 = vsel %vm1893, %v1890, %v1892
      %v1895 = vsel %vm1893, %v1888, %v1890
      %v1896 = vsel %vm1893, %v1886, %v1888
      %v1897 = vsel %vm1893, %v1892, %v1886
      %v1898 = vsel %vm205, 1, 0
      %v1899 = vperm.slane %v1898, 0
      %v1900 = vperm.slane %v1898, 1
      %v1901 = vperm.slane %v1898, 2
      %v1902 = vperm.slane %v1898, 3
      %vm1903 = vcmp.eq.s32.totalorder %v1899, 1
      %vm1904 = vcmp.eq.s32.totalorder %v1900, 1
      %vm1905 = vcmp.eq.s32.totalorder %v1901, 1
      %vm1906 = vcmp.eq.s32.totalorder %v1902, 1
      %v1907 = vsel %vm1903, %v1897, 0.0
      %v1908 = vsel %vm1904, %v1896, 0.0
      %v1909 = vsel %vm1905, %v1895, 0.0
      %v1910 = vsel %vm1906, %v1894, 0.0
      %1911 = vrot.lane.b32.xlu0 %v208, 80
      %v1912 = vpop.permute.xlu0 %1911
      %v1913 = vsel %vm314, %v1912, 0
      %v1916 = vsel %vm317, %v1907, 0
      %v1919 = vsel %vm317, %v1908, 0
      %v1922 = vsel %vm317, %v1909, 0
      %v1925 = vsel %vm317, %v1910, 0
      %1927 = vmatpush.msra.mxu0 0.0
      %1928 = vmatpush.msra.mxu0 0.0
      %1929 = vmatpush.msra.mxu0 0.0
      %1930 = vmatpush.msra.mxu0 0.0
      %1931 = vmatpush.msra.mxu0 0.0
      %1932 = vmatpush.msra.mxu0 0.0
      %1933 = vmatpush.msra.mxu0 0.0
      %1934 = vmatpush.msra.mxu0 0.0
      %1935 = vmatpush.msra.mxu0 0.0
      %1936 = vmatpush.msra.mxu0 0.0
      %1937 = vmatpush.msra.mxu0 0.0
      %1938 = vmatpush.msra.mxu0 0.0
      %1939 = vmatpush.msra.mxu0 0.0
      %1940 = vmatpush.msra.mxu0 0.0
      %1941 = vmatpush.msra.mxu0 0.0
      %1942 = vmatpush.msra.mxu0 %v1916
      %1943 = vmatmul.f32.gmra.mxu0 %v1913
      %v1944 = vpop.f32.mrf.mxu0
      %v1945 = vadd.f32 0.0, %v1944
      %1946 = vdwg.mxu0
      %1947 = vmatpush.msra.mxu0 0.0
      %1948 = vmatpush.msra.mxu0 0.0
      %1949 = vmatpush.msra.mxu0 0.0
      %1950 = vmatpush.msra.mxu0 0.0
      %1951 = vmatpush.msra.mxu0 0.0
      %1952 = vmatpush.msra.mxu0 0.0
      %1953 = vmatpush.msra.mxu0 0.0
      %1954 = vmatpush.msra.mxu0 0.0
      %1955 = vmatpush.msra.mxu0 0.0
      %1956 = vmatpush.msra.mxu0 0.0
      %1957 = vmatpush.msra.mxu0 0.0
      %1958 = vmatpush.msra.mxu0 0.0
      %1959 = vmatpush.msra.mxu0 0.0
      %1960 = vmatpush.msra.mxu0 0.0
      %1961 = vmatpush.msra.mxu0 0.0
      %1962 = vmatpush.msra.mxu0 %v1919
      %1963 = vmatmul.f32.gmra.mxu0 %v1913
      %v1964 = vpop.f32.mrf.mxu0
      %v1965 = vadd.f32 0.0, %v1964
      %1966 = vdwg.mxu0
      %1967 = vmatpush.msra.mxu0 0.0
      %1968 = vmatpush.msra.mxu0 0.0
      %1969 = vmatpush.msra.mxu0 0.0
      %1970 = vmatpush.msra.mxu0 0.0
      %1971 = vmatpush.msra.mxu0 0.0
      %1972 = vmatpush.msra.mxu0 0.0
      %1973 = vmatpush.msra.mxu0 0.0
      %1974 = vmatpush.msra.mxu0 0.0
      %1975 = vmatpush.msra.mxu0 0.0
      %1976 = vmatpush.msra.mxu0 0.0
      %1977 = vmatpush.msra.mxu0 0.0
      %1978 = vmatpush.msra.mxu0 0.0
      %1979 = vmatpush.msra.mxu0 0.0
      %1980 = vmatpush.msra.mxu0 0.0
      %1981 = vmatpush.msra.mxu0 0.0
      %1982 = vmatpush.msra.mxu0 %v1922
      %1983 = vmatmul.f32.gmra.mxu0 %v1913
      %v1984 = vpop.f32.mrf.mxu0
      %v1985 = vadd.f32 0.0, %v1984
      %1986 = vdwg.mxu0
      %1987 = vmatpush.msra.mxu0 0.0
      %1988 = vmatpush.msra.mxu0 0.0
      %1989 = vmatpush.msra.mxu0 0.0
      %1990 = vmatpush.msra.mxu0 0.0
      %1991 = vmatpush.msra.mxu0 0.0
      %1992 = vmatpush.msra.mxu0 0.0
      %1993 = vmatpush.msra.mxu0 0.0
      %1994 = vmatpush.msra.mxu0 0.0
      %1995 = vmatpush.msra.mxu0 0.0
      %1996 = vmatpush.msra.mxu0 0.0
      %1997 = vmatpush.msra.mxu0 0.0
      %1998 = vmatpush.msra.mxu0 0.0
      %1999 = vmatpush.msra.mxu0 0.0
      %2000 = vmatpush.msra.mxu0 0.0
      %2001 = vmatpush.msra.mxu0 0.0
      %2002 = vmatpush.msra.mxu0 %v1925
      %2003 = vmatmul.f32.gmra.mxu0 %v1913
      %v2004 = vpop.f32.mrf.mxu0
      %v2005 = vadd.f32 0.0, %v2004
      %2006 = vdwg.mxu0
      %v2007 = vadd.f32 %v1870, %v1945
      %v2008 = vadd.f32 %v1871, %v1965
      %v2009 = vadd.f32 %v1872, %v1985
      %v2010 = vadd.f32 %v1873, %v2005
      %2011 = vrot.lane.b32.xlu0 %v208, 76
      %v2012 = vpop.permute.xlu0 %2011
      %2013 = vst [vmem:[#allocation1] ss:$2 sm:$0xff] %v231
      %s2014 = scalar_lea.vmem [#allocation1], 16
      %2015 = vst [vmem:[%s2014] ss:$2 sm:$0xff] %v232
      %v2016 = vld.sshfl [vmem:[#allocation1] sm:$0xff pattern:$0x75316420]
      %v2017 = vld.sshfl [vmem:[#allocation1 + $0x8] sm:$0xff pattern:$0x75316420]
      %v2018 = vld.sshfl [vmem:[#allocation1 + $0x10] sm:$0xff pattern:$0x75316420]
      %v2019 = vld.sshfl [vmem:[#allocation1 + $0x18] sm:$0xff pattern:$0x75316420]
      %v2020 = vsel %vm314, %v2012, 0
      %v2022 = vsel %vm317, %v2016, 0
      %v2024 = vsel %vm317, %v2017, 0
      %v2026 = vsel %vm317, %v2018, 0
      %v2028 = vsel %vm317, %v2019, 0
      %2030 = vmatpush.msra.mxu0 0.0
      %2031 = vmatpush.msra.mxu0 0.0
      %2032 = vmatpush.msra.mxu0 0.0
      %2033 = vmatpush.msra.mxu0 0.0
      %2034 = vmatpush.msra.mxu0 0.0
      %2035 = vmatpush.msra.mxu0 0.0
      %2036 = vmatpush.msra.mxu0 0.0
      %2037 = vmatpush.msra.mxu0 0.0
      %2038 = vmatpush.msra.mxu0 0.0
      %2039 = vmatpush.msra.mxu0 0.0
      %2040 = vmatpush.msra.mxu0 0.0
      %2041 = vmatpush.msra.mxu0 0.0
      %2042 = vmatpush.msra.mxu0 0.0
      %2043 = vmatpush.msra.mxu0 0.0
      %2044 = vmatpush.msra.mxu0 0.0
      %2045 = vmatpush.msra.mxu0 %v2022
      %2046 = vmatmul.f32.gmra.mxu0 %v2020
      %v2047 = vpop.f32.mrf.mxu0
      %v2048 = vadd.f32 0.0, %v2047
      %2049 = vdwg.mxu0
      %2050 = vmatpush.msra.mxu0 0.0
      %2051 = vmatpush.msra.mxu0 0.0
      %2052 = vmatpush.msra.mxu0 0.0
      %2053 = vmatpush.msra.mxu0 0.0
      %2054 = vmatpush.msra.mxu0 0.0
      %2055 = vmatpush.msra.mxu0 0.0
      %2056 = vmatpush.msra.mxu0 0.0
      %2057 = vmatpush.msra.mxu0 0.0
      %2058 = vmatpush.msra.mxu0 0.0
      %2059 = vmatpush.msra.mxu0 0.0
      %2060 = vmatpush.msra.mxu0 0.0
      %2061 = vmatpush.msra.mxu0 0.0
      %2062 = vmatpush.msra.mxu0 0.0
      %2063 = vmatpush.msra.mxu0 0.0
      %2064 = vmatpush.msra.mxu0 0.0
      %2065 = vmatpush.msra.mxu0 %v2024
      %2066 = vmatmul.f32.gmra.mxu0 %v2020
      %v2067 = vpop.f32.mrf.mxu0
      %v2068 = vadd.f32 0.0, %v2067
      %2069 = vdwg.mxu0
      %2070 = vmatpush.msra.mxu0 0.0
      %2071 = vmatpush.msra.mxu0 0.0
      %2072 = vmatpush.msra.mxu0 0.0
      %2073 = vmatpush.msra.mxu0 0.0
      %2074 = vmatpush.msra.mxu0 0.0
      %2075 = vmatpush.msra.mxu0 0.0
      %2076 = vmatpush.msra.mxu0 0.0
      %2077 = vmatpush.msra.mxu0 0.0
      %2078 = vmatpush.msra.mxu0 0.0
      %2079 = vmatpush.msra.mxu0 0.0
      %2080 = vmatpush.msra.mxu0 0.0
      %2081 = vmatpush.msra.mxu0 0.0
      %2082 = vmatpush.msra.mxu0 0.0
      %2083 = vmatpush.msra.mxu0 0.0
      %2084 = vmatpush.msra.mxu0 0.0
      %2085 = vmatpush.msra.mxu0 %v2026
      %2086 = vmatmul.f32.gmra.mxu0 %v2020
      %v2087 = vpop.f32.mrf.mxu0
      %v2088 = vadd.f32 0.0, %v2087
      %2089 = vdwg.mxu0
      %2090 = vmatpush.msra.mxu0 0.0
      %2091 = vmatpush.msra.mxu0 0.0
      %2092 = vmatpush.msra.mxu0 0.0
      %2093 = vmatpush.msra.mxu0 0.0
      %2094 = vmatpush.msra.mxu0 0.0
      %2095 = vmatpush.msra.mxu0 0.0
      %2096 = vmatpush.msra.mxu0 0.0
      %2097 = vmatpush.msra.mxu0 0.0
      %2098 = vmatpush.msra.mxu0 0.0
      %2099 = vmatpush.msra.mxu0 0.0
      %2100 = vmatpush.msra.mxu0 0.0
      %2101 = vmatpush.msra.mxu0 0.0
      %2102 = vmatpush.msra.mxu0 0.0
      %2103 = vmatpush.msra.mxu0 0.0
      %2104 = vmatpush.msra.mxu0 0.0
      %2105 = vmatpush.msra.mxu0 %v2028
      %2106 = vmatmul.f32.gmra.mxu0 %v2020
      %v2107 = vpop.f32.mrf.mxu0
      %v2108 = vadd.f32 0.0, %v2107
      %2109 = vdwg.mxu0
      %v2110 = vadd.f32 %v2007, %v2048
      %v2111 = vadd.f32 %v2008, %v2068
      %v2112 = vadd.f32 %v2009, %v2088
      %v2113 = vadd.f32 %v2010, %v2108
      %2114 = vst [vmem:[#allocation1] ss:$2 sm:$0xff] %v231
      %s2115 = scalar_lea.vmem [#allocation1], 16
      %2116 = vst [vmem:[%s2115] ss:$2 sm:$0xff] %v232
      %v2117 = vld.sshfl [vmem:[#allocation1] sm:$0xff pattern:$0x75316420]
      %v2118 = vld.sshfl [vmem:[#allocation1 + $0x8] sm:$0xff pattern:$0x75316420]
      %v2119 = vld.sshfl [vmem:[#allocation1 + $0x10] sm:$0xff pattern:$0x75316420]
      %v2120 = vld.sshfl [vmem:[#allocation1 + $0x18] sm:$0xff pattern:$0x75316420]
      %2125 = vrot.lane.b32.xlu0 %v2117, 127
      %v2126 = vpop.permute.xlu0 %2125
      %2127 = vrot.lane.b32.xlu0 %v2118, 127
      %v2128 = vpop.permute.xlu0 %2127
      %2129 = vrot.lane.b32.xlu0 %v2119, 127
      %v2130 = vpop.permute.xlu0 %2129
      %2131 = vrot.lane.b32.xlu0 %v2120, 127
      %v2132 = vpop.permute.xlu0 %2131
      %vm2133 = vcmp.lt.s32.totalorder %v255, 127
      %v2134 = vsel %vm2133, %v2130, %v2132
      %v2135 = vsel %vm2133, %v2128, %v2130
      %v2136 = vsel %vm2133, %v2126, %v2128
      %v2137 = vsel %vm2133, %v2132, %v2126
      %v2138 = vsel %vm209, 1, 0
      %v2139 = vperm.slane %v2138, 0
      %v2140 = vperm.slane %v2138, 1
      %v2141 = vperm.slane %v2138, 2
      %v2142 = vperm.slane %v2138, 3
      %vm2143 = vcmp.eq.s32.totalorder %v2139, 1
      %vm2144 = vcmp.eq.s32.totalorder %v2140, 1
      %vm2145 = vcmp.eq.s32.totalorder %v2141, 1
      %vm2146 = vcmp.eq.s32.totalorder %v2142, 1
      %v2147 = vsel %vm2143, %v2136, 0.0
      %v2148 = vsel %vm2144, %v2135, 0.0
      %v2149 = vsel %vm2145, %v2134, 0.0
      %v2150 = vsel %vm2146, %v2137, 0.0
      %2151 = vrot.lane.b32.xlu0 %v208, 72
      %v2152 = vpop.permute.xlu0 %2151
      %v2153 = vsel %vm314, %v2152, 0
      %v2156 = vsel %vm317, %v2147, 0
      %v2159 = vsel %vm317, %v2148, 0
      %v2162 = vsel %vm317, %v2149, 0
      %v2165 = vsel %vm317, %v2150, 0
      %2167 = vmatpush.msra.mxu0 0.0
      %2168 = vmatpush.msra.mxu0 0.0
      %2169 = vmatpush.msra.mxu0 0.0
      %2170 = vmatpush.msra.mxu0 0.0
      %2171 = vmatpush.msra.mxu0 0.0
      %2172 = vmatpush.msra.mxu0 0.0
      %2173 = vmatpush.msra.mxu0 0.0
      %2174 = vmatpush.msra.mxu0 0.0
      %2175 = vmatpush.msra.mxu0 0.0
      %2176 = vmatpush.msra.mxu0 0.0
      %2177 = vmatpush.msra.mxu0 0.0
      %2178 = vmatpush.msra.mxu0 0.0
      %2179 = vmatpush.msra.mxu0 0.0
      %2180 = vmatpush.msra.mxu0 0.0
      %2181 = vmatpush.msra.mxu0 0.0
      %2182 = vmatpush.msra.mxu0 %v2156
      %2183 = vmatmul.f32.gmra.mxu0 %v2153
      %v2184 = vpop.f32.mrf.mxu0
      %v2185 = vadd.f32 0.0, %v2184
      %2186 = vdwg.mxu0
      %2187 = vmatpush.msra.mxu0 0.0
      %2188 = vmatpush.msra.mxu0 0.0
      %2189 = vmatpush.msra.mxu0 0.0
      %2190 = vmatpush.msra.mxu0 0.0
      %2191 = vmatpush.msra.mxu0 0.0
      %2192 = vmatpush.msra.mxu0 0.0
      %2193 = vmatpush.msra.mxu0 0.0
      %2194 = vmatpush.msra.mxu0 0.0
      %2195 = vmatpush.msra.mxu0 0.0
      %2196 = vmatpush.msra.mxu0 0.0
      %2197 = vmatpush.msra.mxu0 0.0
      %2198 = vmatpush.msra.mxu0 0.0
      %2199 = vmatpush.msra.mxu0 0.0
      %2200 = vmatpush.msra.mxu0 0.0
      %2201 = vmatpush.msra.mxu0 0.0
      %2202 = vmatpush.msra.mxu0 %v2159
      %2203 = vmatmul.f32.gmra.mxu0 %v2153
      %v2204 = vpop.f32.mrf.mxu0
      %v2205 = vadd.f32 0.0, %v2204
      %2206 = vdwg.mxu0
      %2207 = vmatpush.msra.mxu0 0.0
      %2208 = vmatpush.msra.mxu0 0.0
      %2209 = vmatpush.msra.mxu0 0.0
      %2210 = vmatpush.msra.mxu0 0.0
      %2211 = vmatpush.msra.mxu0 0.0
      %2212 = vmatpush.msra.mxu0 0.0
      %2213 = vmatpush.msra.mxu0 0.0
      %2214 = vmatpush.msra.mxu0 0.0
      %2215 = vmatpush.msra.mxu0 0.0
      %2216 = vmatpush.msra.mxu0 0.0
      %2217 = vmatpush.msra.mxu0 0.0
      %2218 = vmatpush.msra.mxu0 0.0
      %2219 = vmatpush.msra.mxu0 0.0
      %2220 = vmatpush.msra.mxu0 0.0
      %2221 = vmatpush.msra.mxu0 0.0
      %2222 = vmatpush.msra.mxu0 %v2162
      %2223 = vmatmul.f32.gmra.mxu0 %v2153
      %v2224 = vpop.f32.mrf.mxu0
      %v2225 = vadd.f32 0.0, %v2224
      %2226 = vdwg.mxu0
      %2227 = vmatpush.msra.mxu0 0.0
      %2228 = vmatpush.msra.mxu0 0.0
      %2229 = vmatpush.msra.mxu0 0.0
      %2230 = vmatpush.msra.mxu0 0.0
      %2231 = vmatpush.msra.mxu0 0.0
      %2232 = vmatpush.msra.mxu0 0.0
      %2233 = vmatpush.msra.mxu0 0.0
      %2234 = vmatpush.msra.mxu0 0.0
      %2235 = vmatpush.msra.mxu0 0.0
      %2236 = vmatpush.msra.mxu0 0.0
      %2237 = vmatpush.msra.mxu0 0.0
      %2238 = vmatpush.msra.mxu0 0.0
      %2239 = vmatpush.msra.mxu0 0.0
      %2240 = vmatpush.msra.mxu0 0.0
      %2241 = vmatpush.msra.mxu0 0.0
      %2242 = vmatpush.msra.mxu0 %v2165
      %2243 = vmatmul.f32.gmra.mxu0 %v2153
      %v2244 = vpop.f32.mrf.mxu0
      %v2245 = vadd.f32 0.0, %v2244
      %2246 = vdwg.mxu0
      %v2247 = vadd.f32 %v2110, %v2185
      %v2248 = vadd.f32 %v2111, %v2205
      %v2249 = vadd.f32 %v2112, %v2225
      %v2250 = vadd.f32 %v2113, %v2245
      %2251 = vst [vmem:[#allocation1] ss:$2 sm:$0xff] %v231
      %s2252 = scalar_lea.vmem [#allocation1], 16
      %2253 = vst [vmem:[%s2252] ss:$2 sm:$0xff] %v232
      %v2254 = vld.sshfl [vmem:[#allocation1] sm:$0xff pattern:$0x75316420]
      %v2255 = vld.sshfl [vmem:[#allocation1 + $0x8] sm:$0xff pattern:$0x75316420]
      %v2256 = vld.sshfl [vmem:[#allocation1 + $0x10] sm:$0xff pattern:$0x75316420]
      %v2257 = vld.sshfl [vmem:[#allocation1 + $0x18] sm:$0xff pattern:$0x75316420]
      %2262 = vrot.lane.b32.xlu0 %v2254, 121
      %v2263 = vpop.permute.xlu0 %2262
      %2264 = vrot.lane.b32.xlu0 %v2255, 121
      %v2265 = vpop.permute.xlu0 %2264
      %2266 = vrot.lane.b32.xlu0 %v2256, 121
      %v2267 = vpop.permute.xlu0 %2266
      %2268 = vrot.lane.b32.xlu0 %v2257, 121
      %v2269 = vpop.permute.xlu0 %2268
      %vm2270 = vcmp.lt.s32.totalorder %v255, 121
      %v2271 = vsel %vm2270, %v2267, %v2269
      %v2272 = vsel %vm2270, %v2265, %v2267
      %v2273 = vsel %vm2270, %v2263, %v2265
      %v2274 = vsel %vm2270, %v2269, %v2263
      %v2275 = vsel %vm219, 1, 0
      %v2276 = vperm.slane %v2275, 0
      %v2277 = vperm.slane %v2275, 1
      %v2278 = vperm.slane %v2275, 2
      %v2279 = vperm.slane %v2275, 3
      %vm2280 = vcmp.eq.s32.totalorder %v2276, 1
      %vm2281 = vcmp.eq.s32.totalorder %v2277, 1
      %vm2282 = vcmp.eq.s32.totalorder %v2278, 1
      %vm2283 = vcmp.eq.s32.totalorder %v2279, 1
      %v2284 = vsel %vm2280, %v2273, 0.0
      %v2285 = vsel %vm2281, %v2272, 0.0
      %v2286 = vsel %vm2282, %v2271, 0.0
      %v2287 = vsel %vm2283, %v2274, 0.0
      %2288 = vrot.lane.b32.xlu0 %v208, 68
      %v2289 = vpop.permute.xlu0 %2288
      %v2290 = vsel %vm314, %v2289, 0
      %v2293 = vsel %vm317, %v2284, 0
      %v2296 = vsel %vm317, %v2285, 0
      %v2299 = vsel %vm317, %v2286, 0
      %v2302 = vsel %vm317, %v2287, 0
      %2304 = vmatpush.msra.mxu0 0.0
      %2305 = vmatpush.msra.mxu0 0.0
      %2306 = vmatpush.msra.mxu0 0.0
      %2307 = vmatpush.msra.mxu0 0.0
      %2308 = vmatpush.msra.mxu0 0.0
      %2309 = vmatpush.msra.mxu0 0.0
      %2310 = vmatpush.msra.mxu0 0.0
      %2311 = vmatpush.msra.mxu0 0.0
      %2312 = vmatpush.msra.mxu0 0.0
      %2313 = vmatpush.msra.mxu0 0.0
      %2314 = vmatpush.msra.mxu0 0.0
      %2315 = vmatpush.msra.mxu0 0.0
      %2316 = vmatpush.msra.mxu0 0.0
      %2317 = vmatpush.msra.mxu0 0.0
      %2318 = vmatpush.msra.mxu0 0.0
      %2319 = vmatpush.msra.mxu0 %v2293
      %2320 = vmatmul.f32.gmra.mxu0 %v2290
      %v2321 = vpop.f32.mrf.mxu0
      %v2322 = vadd.f32 0.0, %v2321
      %2323 = vdwg.mxu0
      %2324 = vmatpush.msra.mxu0 0.0
      %2325 = vmatpush.msra.mxu0 0.0
      %2326 = vmatpush.msra.mxu0 0.0
      %2327 = vmatpush.msra.mxu0 0.0
      %2328 = vmatpush.msra.mxu0 0.0
      %2329 = vmatpush.msra.mxu0 0.0
      %2330 = vmatpush.msra.mxu0 0.0
      %2331 = vmatpush.msra.mxu0 0.0
      %2332 = vmatpush.msra.mxu0 0.0
      %2333 = vmatpush.msra.mxu0 0.0
      %2334 = vmatpush.msra.mxu0 0.0
      %2335 = vmatpush.msra.mxu0 0.0
      %2336 = vmatpush.msra.mxu0 0.0
      %2337 = vmatpush.msra.mxu0 0.0
      %2338 = vmatpush.msra.mxu0 0.0
      %2339 = vmatpush.msra.mxu0 %v2296
      %2340 = vmatmul.f32.gmra.mxu0 %v2290
      %v2341 = vpop.f32.mrf.mxu0
      %v2342 = vadd.f32 0.0, %v2341
      %2343 = vdwg.mxu0
      %2344 = vmatpush.msra.mxu0 0.0
      %2345 = vmatpush.msra.mxu0 0.0
      %2346 = vmatpush.msra.mxu0 0.0
      %2347 = vmatpush.msra.mxu0 0.0
      %2348 = vmatpush.msra.mxu0 0.0
      %2349 = vmatpush.msra.mxu0 0.0
      %2350 = vmatpush.msra.mxu0 0.0
      %2351 = vmatpush.msra.mxu0 0.0
      %2352 = vmatpush.msra.mxu0 0.0
      %2353 = vmatpush.msra.mxu0 0.0
      %2354 = vmatpush.msra.mxu0 0.0
      %2355 = vmatpush.msra.mxu0 0.0
      %2356 = vmatpush.msra.mxu0 0.0
      %2357 = vmatpush.msra.mxu0 0.0
      %2358 = vmatpush.msra.mxu0 0.0
      %2359 = vmatpush.msra.mxu0 %v2299
      %2360 = vmatmul.f32.gmra.mxu0 %v2290
      %v2361 = vpop.f32.mrf.mxu0
      %v2362 = vadd.f32 0.0, %v2361
      %2363 = vdwg.mxu0
      %2364 = vmatpush.msra.mxu0 0.0
      %2365 = vmatpush.msra.mxu0 0.0
      %2366 = vmatpush.msra.mxu0 0.0
      %2367 = vmatpush.msra.mxu0 0.0
      %2368 = vmatpush.msra.mxu0 0.0
      %2369 = vmatpush.msra.mxu0 0.0
      %2370 = vmatpush.msra.mxu0 0.0
      %2371 = vmatpush.msra.mxu0 0.0
      %2372 = vmatpush.msra.mxu0 0.0
      %2373 = vmatpush.msra.mxu0 0.0
      %2374 = vmatpush.msra.mxu0 0.0
      %2375 = vmatpush.msra.mxu0 0.0
      %2376 = vmatpush.msra.mxu0 0.0
      %2377 = vmatpush.msra.mxu0 0.0
      %2378 = vmatpush.msra.mxu0 0.0
      %2379 = vmatpush.msra.mxu0 %v2302
      %2380 = vmatmul.f32.gmra.mxu0 %v2290
      %v2381 = vpop.f32.mrf.mxu0
      %v2382 = vadd.f32 0.0, %v2381
      %2383 = vdwg.mxu0
      %v2384 = vadd.f32 %v2247, %v2322
      %v2385 = vadd.f32 %v2248, %v2342
      %v2386 = vadd.f32 %v2249, %v2362
      %v2387 = vadd.f32 %v2250, %v2382
      %2388 = vst [vmem:[#allocation1] ss:$2 sm:$0xff] %v231
      %s2389 = scalar_lea.vmem [#allocation1], 16
      %2390 = vst [vmem:[%s2389] ss:$2 sm:$0xff] %v232
      %v2391 = vld.sshfl [vmem:[#allocation1] sm:$0xff pattern:$0x75316420]
      %v2392 = vld.sshfl [vmem:[#allocation1 + $0x8] sm:$0xff pattern:$0x75316420]
      %v2393 = vld.sshfl [vmem:[#allocation1 + $0x10] sm:$0xff pattern:$0x75316420]
      %v2394 = vld.sshfl [vmem:[#allocation1 + $0x18] sm:$0xff pattern:$0x75316420]
      %2399 = vrot.lane.b32.xlu0 %v2391, 120
      %v2400 = vpop.permute.xlu0 %2399
      %2401 = vrot.lane.b32.xlu0 %v2392, 120
      %v2402 = vpop.permute.xlu0 %2401
      %2403 = vrot.lane.b32.xlu0 %v2393, 120
      %v2404 = vpop.permute.xlu0 %2403
      %2405 = vrot.lane.b32.xlu0 %v2394, 120
      %v2406 = vpop.permute.xlu0 %2405
      %vm2407 = vcmp.lt.s32.totalorder %v255, 120
      %v2408 = vsel %vm2407, %v2404, %v2406
      %v2409 = vsel %vm2407, %v2402, %v2404
      %v2410 = vsel %vm2407, %v2400, %v2402
      %v2411 = vsel %vm2407, %v2406, %v2400
      %v2412 = vsel %vm213, 1, 0
      %v2413 = vperm.slane %v2412, 0
      %v2414 = vperm.slane %v2412, 1
      %v2415 = vperm.slane %v2412, 2
      %v2416 = vperm.slane %v2412, 3
      %vm2417 = vcmp.eq.s32.totalorder %v2413, 1
      %vm2418 = vcmp.eq.s32.totalorder %v2414, 1
      %vm2419 = vcmp.eq.s32.totalorder %v2415, 1
      %vm2420 = vcmp.eq.s32.totalorder %v2416, 1
      %v2421 = vsel %vm2417, %v2410, 0.0
      %v2422 = vsel %vm2418, %v2409, 0.0
      %v2423 = vsel %vm2419, %v2408, 0.0
      %v2424 = vsel %vm2420, %v2411, 0.0
      %2425 = vrot.lane.b32.xlu0 %v208, 64
      %v2426 = vpop.permute.xlu0 %2425
      %v2427 = vsel %vm314, %v2426, 0
      %v2430 = vsel %vm317, %v2421, 0
      %v2433 = vsel %vm317, %v2422, 0
      %v2436 = vsel %vm317, %v2423, 0
      %v2439 = vsel %vm317, %v2424, 0
      %2441 = vmatpush.msra.mxu0 0.0
      %2442 = vmatpush.msra.mxu0 0.0
      %2443 = vmatpush.msra.mxu0 0.0
      %2444 = vmatpush.msra.mxu0 0.0
      %2445 = vmatpush.msra.mxu0 0.0
      %2446 = vmatpush.msra.mxu0 0.0
      %2447 = vmatpush.msra.mxu0 0.0
      %2448 = vmatpush.msra.mxu0 0.0
      %2449 = vmatpush.msra.mxu0 0.0
      %2450 = vmatpush.msra.mxu0 0.0
      %2451 = vmatpush.msra.mxu0 0.0
      %2452 = vmatpush.msra.mxu0 0.0
      %2453 = vmatpush.msra.mxu0 0.0
      %2454 = vmatpush.msra.mxu0 0.0
      %2455 = vmatpush.msra.mxu0 0.0
      %2456 = vmatpush.msra.mxu0 %v2430
      %2457 = vmatmul.f32.gmra.mxu0 %v2427
      %v2458 = vpop.f32.mrf.mxu0
      %v2459 = vadd.f32 0.0, %v2458
      %2460 = vdwg.mxu0
      %2461 = vmatpush.msra.mxu0 0.0
      %2462 = vmatpush.msra.mxu0 0.0
      %2463 = vmatpush.msra.mxu0 0.0
      %2464 = vmatpush.msra.mxu0 0.0
      %2465 = vmatpush.msra.mxu0 0.0
      %2466 = vmatpush.msra.mxu0 0.0
      %2467 = vmatpush.msra.mxu0 0.0
      %2468 = vmatpush.msra.mxu0 0.0
      %2469 = vmatpush.msra.mxu0 0.0
      %2470 = vmatpush.msra.mxu0 0.0
      %2471 = vmatpush.msra.mxu0 0.0
      %2472 = vmatpush.msra.mxu0 0.0
      %2473 = vmatpush.msra.mxu0 0.0
      %2474 = vmatpush.msra.mxu0 0.0
      %2475 = vmatpush.msra.mxu0 0.0
      %2476 = vmatpush.msra.mxu0 %v2433
      %2477 = vmatmul.f32.gmra.mxu0 %v2427
      %v2478 = vpop.f32.mrf.mxu0
      %v2479 = vadd.f32 0.0, %v2478
      %2480 = vdwg.mxu0
      %2481 = vmatpush.msra.mxu0 0.0
      %2482 = vmatpush.msra.mxu0 0.0
      %2483 = vmatpush.msra.mxu0 0.0
      %2484 = vmatpush.msra.mxu0 0.0
      %2485 = vmatpush.msra.mxu0 0.0
      %2486 = vmatpush.msra.mxu0 0.0
      %2487 = vmatpush.msra.mxu0 0.0
      %2488 = vmatpush.msra.mxu0 0.0
      %2489 = vmatpush.msra.mxu0 0.0
      %2490 = vmatpush.msra.mxu0 0.0
      %2491 = vmatpush.msra.mxu0 0.0
      %2492 = vmatpush.msra.mxu0 0.0
      %2493 = vmatpush.msra.mxu0 0.0
      %2494 = vmatpush.msra.mxu0 0.0
      %2495 = vmatpush.msra.mxu0 0.0
      %2496 = vmatpush.msra.mxu0 %v2436
      %2497 = vmatmul.f32.gmra.mxu0 %v2427
      %v2498 = vpop.f32.mrf.mxu0
      %v2499 = vadd.f32 0.0, %v2498
      %2500 = vdwg.mxu0
      %2501 = vmatpush.msra.mxu0 0.0
      %2502 = vmatpush.msra.mxu0 0.0
      %2503 = vmatpush.msra.mxu0 0.0
      %2504 = vmatpush.msra.mxu0 0.0
      %2505 = vmatpush.msra.mxu0 0.0
      %2506 = vmatpush.msra.mxu0 0.0
      %2507 = vmatpush.msra.mxu0 0.0
      %2508 = vmatpush.msra.mxu0 0.0
      %2509 = vmatpush.msra.mxu0 0.0
      %2510 = vmatpush.msra.mxu0 0.0
      %2511 = vmatpush.msra.mxu0 0.0
      %2512 = vmatpush.msra.mxu0 0.0
      %2513 = vmatpush.msra.mxu0 0.0
      %2514 = vmatpush.msra.mxu0 0.0
      %2515 = vmatpush.msra.mxu0 0.0
      %2516 = vmatpush.msra.mxu0 %v2439
      %2517 = vmatmul.f32.gmra.mxu0 %v2427
      %v2518 = vpop.f32.mrf.mxu0
      %v2519 = vadd.f32 0.0, %v2518
      %2520 = vdwg.mxu0
      %v2521 = vadd.f32 %v2384, %v2459
      %v2522 = vadd.f32 %v2385, %v2479
      %v2523 = vadd.f32 %v2386, %v2499
      %v2524 = vadd.f32 %v2387, %v2519
      %2525 = vst [vmem:[#allocation1] ss:$2 sm:$0xff] %v231
      %s2526 = scalar_lea.vmem [#allocation1], 16
      %2527 = vst [vmem:[%s2526] ss:$2 sm:$0xff] %v232
      %v2528 = vld.sshfl [vmem:[#allocation1] sm:$0xff pattern:$0x75316420]
      %v2529 = vld.sshfl [vmem:[#allocation1 + $0x8] sm:$0xff pattern:$0x75316420]
      %v2530 = vld.sshfl [vmem:[#allocation1 + $0x10] sm:$0xff pattern:$0x75316420]
      %v2531 = vld.sshfl [vmem:[#allocation1 + $0x18] sm:$0xff pattern:$0x75316420]
      %2536 = vrot.lane.b32.xlu0 %v2528, 119
      %v2537 = vpop.permute.xlu0 %2536
      %2538 = vrot.lane.b32.xlu0 %v2529, 119
      %v2539 = vpop.permute.xlu0 %2538
      %2540 = vrot.lane.b32.xlu0 %v2530, 119
      %v2541 = vpop.permute.xlu0 %2540
      %2542 = vrot.lane.b32.xlu0 %v2531, 119
      %v2543 = vpop.permute.xlu0 %2542
      %vm2544 = vcmp.lt.s32.totalorder %v255, 119
      %v2545 = vsel %vm2544, %v2541, %v2543
      %v2546 = vsel %vm2544, %v2539, %v2541
      %v2547 = vsel %vm2544, %v2537, %v2539
      %v2548 = vsel %vm2544, %v2543, %v2537
      %v2549 = vsel %vm220, 1, 0
      %v2550 = vperm.slane %v2549, 0
      %v2551 = vperm.slane %v2549, 1
      %v2552 = vperm.slane %v2549, 2
      %v2553 = vperm.slane %v2549, 3
      %vm2554 = vcmp.eq.s32.totalorder %v2550, 1
      %vm2555 = vcmp.eq.s32.totalorder %v2551, 1
      %vm2556 = vcmp.eq.s32.totalorder %v2552, 1
      %vm2557 = vcmp.eq.s32.totalorder %v2553, 1
      %v2558 = vsel %vm2554, %v2547, 0.0
      %v2559 = vsel %vm2555, %v2546, 0.0
      %v2560 = vsel %vm2556, %v2545, 0.0
      %v2561 = vsel %vm2557, %v2548, 0.0
      %2562 = vrot.lane.b32.xlu0 %v208, 60
      %v2563 = vpop.permute.xlu0 %2562
      %v2564 = vsel %vm314, %v2563, 0
      %v2567 = vsel %vm317, %v2558, 0
      %v2570 = vsel %vm317, %v2559, 0
      %v2573 = vsel %vm317, %v2560, 0
      %v2576 = vsel %vm317, %v2561, 0
      %2578 = vmatpush.msra.mxu0 0.0
      %2579 = vmatpush.msra.mxu0 0.0
      %2580 = vmatpush.msra.mxu0 0.0
      %2581 = vmatpush.msra.mxu0 0.0
      %2582 = vmatpush.msra.mxu0 0.0
      %2583 = vmatpush.msra.mxu0 0.0
      %2584 = vmatpush.msra.mxu0 0.0
      %2585 = vmatpush.msra.mxu0 0.0
      %2586 = vmatpush.msra.mxu0 0.0
      %2587 = vmatpush.msra.mxu0 0.0
      %2588 = vmatpush.msra.mxu0 0.0
      %2589 = vmatpush.msra.mxu0 0.0
      %2590 = vmatpush.msra.mxu0 0.0
      %2591 = vmatpush.msra.mxu0 0.0
      %2592 = vmatpush.msra.mxu0 0.0
      %2593 = vmatpush.msra.mxu0 %v2567
      %2594 = vmatmul.f32.gmra.mxu0 %v2564
      %v2595 = vpop.f32.mrf.mxu0
      %v2596 = vadd.f32 0.0, %v2595
      %2597 = vdwg.mxu0
      %2598 = vmatpush.msra.mxu0 0.0
      %2599 = vmatpush.msra.mxu0 0.0
      %2600 = vmatpush.msra.mxu0 0.0
      %2601 = vmatpush.msra.mxu0 0.0
      %2602 = vmatpush.msra.mxu0 0.0
      %2603 = vmatpush.msra.mxu0 0.0
      %2604 = vmatpush.msra.mxu0 0.0
      %2605 = vmatpush.msra.mxu0 0.0
      %2606 = vmatpush.msra.mxu0 0.0
      %2607 = vmatpush.msra.mxu0 0.0
      %2608 = vmatpush.msra.mxu0 0.0
      %2609 = vmatpush.msra.mxu0 0.0
      %2610 = vmatpush.msra.mxu0 0.0
      %2611 = vmatpush.msra.mxu0 0.0
      %2612 = vmatpush.msra.mxu0 0.0
      %2613 = vmatpush.msra.mxu0 %v2570
      %2614 = vmatmul.f32.gmra.mxu0 %v2564
      %v2615 = vpop.f32.mrf.mxu0
      %v2616 = vadd.f32 0.0, %v2615
      %2617 = vdwg.mxu0
      %2618 = vmatpush.msra.mxu0 0.0
      %2619 = vmatpush.msra.mxu0 0.0
      %2620 = vmatpush.msra.mxu0 0.0
      %2621 = vmatpush.msra.mxu0 0.0
      %2622 = vmatpush.msra.mxu0 0.0
      %2623 = vmatpush.msra.mxu0 0.0
      %2624 = vmatpush.msra.mxu0 0.0
      %2625 = vmatpush.msra.mxu0 0.0
      %2626 = vmatpush.msra.mxu0 0.0
      %2627 = vmatpush.msra.mxu0 0.0
      %2628 = vmatpush.msra.mxu0 0.0
      %2629 = vmatpush.msra.mxu0 0.0
      %2630 = vmatpush.msra.mxu0 0.0
      %2631 = vmatpush.msra.mxu0 0.0
      %2632 = vmatpush.msra.mxu0 0.0
      %2633 = vmatpush.msra.mxu0 %v2573
      %2634 = vmatmul.f32.gmra.mxu0 %v2564
      %v2635 = vpop.f32.mrf.mxu0
      %v2636 = vadd.f32 0.0, %v2635
      %2637 = vdwg.mxu0
      %2638 = vmatpush.msra.mxu0 0.0
      %2639 = vmatpush.msra.mxu0 0.0
      %2640 = vmatpush.msra.mxu0 0.0
      %2641 = vmatpush.msra.mxu0 0.0
      %2642 = vmatpush.msra.mxu0 0.0
      %2643 = vmatpush.msra.mxu0 0.0
      %2644 = vmatpush.msra.mxu0 0.0
      %2645 = vmatpush.msra.mxu0 0.0
      %2646 = vmatpush.msra.mxu0 0.0
      %2647 = vmatpush.msra.mxu0 0.0
      %2648 = vmatpush.msra.mxu0 0.0
      %2649 = vmatpush.msra.mxu0 0.0
      %2650 = vmatpush.msra.mxu0 0.0
      %2651 = vmatpush.msra.mxu0 0.0
      %2652 = vmatpush.msra.mxu0 0.0
      %2653 = vmatpush.msra.mxu0 %v2576
      %2654 = vmatmul.f32.gmra.mxu0 %v2564
      %v2655 = vpop.f32.mrf.mxu0
      %v2656 = vadd.f32 0.0, %v2655
      %2657 = vdwg.mxu0
      %v2658 = vadd.f32 %v2521, %v2596
      %v2659 = vadd.f32 %v2522, %v2616
      %v2660 = vadd.f32 %v2523, %v2636
      %v2661 = vadd.f32 %v2524, %v2656
      %2662 = vst [vmem:[#allocation1] ss:$2 sm:$0xff] %v231
      %s2663 = scalar_lea.vmem [#allocation1], 16
      %2664 = vst [vmem:[%s2663] ss:$2 sm:$0xff] %v232
      %v2665 = vld.sshfl [vmem:[#allocation1] sm:$0xff pattern:$0x75316420]
      %v2666 = vld.sshfl [vmem:[#allocation1 + $0x8] sm:$0xff pattern:$0x75316420]
      %v2667 = vld.sshfl [vmem:[#allocation1 + $0x10] sm:$0xff pattern:$0x75316420]
      %v2668 = vld.sshfl [vmem:[#allocation1 + $0x18] sm:$0xff pattern:$0x75316420]
      %2673 = vrot.lane.b32.xlu0 %v2665, 73
      %v2674 = vpop.permute.xlu0 %2673
      %2675 = vrot.lane.b32.xlu0 %v2666, 73
      %v2676 = vpop.permute.xlu0 %2675
      %2677 = vrot.lane.b32.xlu0 %v2667, 73
      %v2678 = vpop.permute.xlu0 %2677
      %2679 = vrot.lane.b32.xlu0 %v2668, 73
      %v2680 = vpop.permute.xlu0 %2679
      %v2681 = vsel %vm256, %v2678, %v2680
      %v2682 = vsel %vm256, %v2676, %v2678
      %v2683 = vsel %vm256, %v2674, %v2676
      %v2684 = vsel %vm256, %v2680, %v2674
      %v2685 = vsel %vm223, 1, 0
      %v2686 = vperm.slane %v2685, 0
      %v2687 = vperm.slane %v2685, 1
      %v2688 = vperm.slane %v2685, 2
      %v2689 = vperm.slane %v2685, 3
      %vm2690 = vcmp.eq.s32.totalorder %v2686, 1
      %vm2691 = vcmp.eq.s32.totalorder %v2687, 1
      %vm2692 = vcmp.eq.s32.totalorder %v2688, 1
      %vm2693 = vcmp.eq.s32.totalorder %v2689, 1
      %v2694 = vsel %vm2690, %v2683, 0.0
      %v2695 = vsel %vm2691, %v2682, 0.0
      %v2696 = vsel %vm2692, %v2681, 0.0
      %v2697 = vsel %vm2693, %v2684, 0.0
      %2698 = vrot.lane.b32.xlu0 %v208, 56
      %v2699 = vpop.permute.xlu0 %2698
      %v2700 = vsel %vm314, %v2699, 0
      %v2703 = vsel %vm317, %v2694, 0
      %v2706 = vsel %vm317, %v2695, 0
      %v2709 = vsel %vm317, %v2696, 0
      %v2712 = vsel %vm317, %v2697, 0
      %2714 = vmatpush.msra.mxu0 0.0
      %2715 = vmatpush.msra.mxu0 0.0
      %2716 = vmatpush.msra.mxu0 0.0
      %2717 = vmatpush.msra.mxu0 0.0
      %2718 = vmatpush.msra.mxu0 0.0
      %2719 = vmatpush.msra.mxu0 0.0
      %2720 = vmatpush.msra.mxu0 0.0
      %2721 = vmatpush.msra.mxu0 0.0
      %2722 = vmatpush.msra.mxu0 0.0
      %2723 = vmatpush.msra.mxu0 0.0
      %2724 = vmatpush.msra.mxu0 0.0
      %2725 = vmatpush.msra.mxu0 0.0
      %2726 = vmatpush.msra.mxu0 0.0
      %2727 = vmatpush.msra.mxu0 0.0
      %2728 = vmatpush.msra.mxu0 0.0
      %2729 = vmatpush.msra.mxu0 %v2703
      %2730 = vmatmul.f32.gmra.mxu0 %v2700
      %v2731 = vpop.f32.mrf.mxu0
      %v2732 = vadd.f32 0.0, %v2731
      %2733 = vdwg.mxu0
      %2734 = vmatpush.msra.mxu0 0.0
      %2735 = vmatpush.msra.mxu0 0.0
      %2736 = vmatpush.msra.mxu0 0.0
      %2737 = vmatpush.msra.mxu0 0.0
      %2738 = vmatpush.msra.mxu0 0.0
      %2739 = vmatpush.msra.mxu0 0.0
      %2740 = vmatpush.msra.mxu0 0.0
      %2741 = vmatpush.msra.mxu0 0.0
      %2742 = vmatpush.msra.mxu0 0.0
      %2743 = vmatpush.msra.mxu0 0.0
      %2744 = vmatpush.msra.mxu0 0.0
      %2745 = vmatpush.msra.mxu0 0.0
      %2746 = vmatpush.msra.mxu0 0.0
      %2747 = vmatpush.msra.mxu0 0.0
      %2748 = vmatpush.msra.mxu0 0.0
      %2749 = vmatpush.msra.mxu0 %v2706
      %2750 = vmatmul.f32.gmra.mxu0 %v2700
      %v2751 = vpop.f32.mrf.mxu0
      %v2752 = vadd.f32 0.0, %v2751
      %2753 = vdwg.mxu0
      %2754 = vmatpush.msra.mxu0 0.0
      %2755 = vmatpush.msra.mxu0 0.0
      %2756 = vmatpush.msra.mxu0 0.0
      %2757 = vmatpush.msra.mxu0 0.0
      %2758 = vmatpush.msra.mxu0 0.0
      %2759 = vmatpush.msra.mxu0 0.0
      %2760 = vmatpush.msra.mxu0 0.0
      %2761 = vmatpush.msra.mxu0 0.0
      %2762 = vmatpush.msra.mxu0 0.0
      %2763 = vmatpush.msra.mxu0 0.0
      %2764 = vmatpush.msra.mxu0 0.0
      %2765 = vmatpush.msra.mxu0 0.0
      %2766 = vmatpush.msra.mxu0 0.0
      %2767 = vmatpush.msra.mxu0 0.0
      %2768 = vmatpush.msra.mxu0 0.0
      %2769 = vmatpush.msra.mxu0 %v2709
      %2770 = vmatmul.f32.gmra.mxu0 %v2700
      %v2771 = vpop.f32.mrf.mxu0
      %v2772 = vadd.f32 0.0, %v2771
      %2773 = vdwg.mxu0
      %2774 = vmatpush.msra.mxu0 0.0
      %2775 = vmatpush.msra.mxu0 0.0
      %2776 = vmatpush.msra.mxu0 0.0
      %2777 = vmatpush.msra.mxu0 0.0
      %2778 = vmatpush.msra.mxu0 0.0
      %2779 = vmatpush.msra.mxu0 0.0
      %2780 = vmatpush.msra.mxu0 0.0
      %2781 = vmatpush.msra.mxu0 0.0
      %2782 = vmatpush.msra.mxu0 0.0
      %2783 = vmatpush.msra.mxu0 0.0
      %2784 = vmatpush.msra.mxu0 0.0
      %2785 = vmatpush.msra.mxu0 0.0
      %2786 = vmatpush.msra.mxu0 0.0
      %2787 = vmatpush.msra.mxu0 0.0
      %2788 = vmatpush.msra.mxu0 0.0
      %2789 = vmatpush.msra.mxu0 %v2712
      %2790 = vmatmul.f32.gmra.mxu0 %v2700
      %v2791 = vpop.f32.mrf.mxu0
      %v2792 = vadd.f32 0.0, %v2791
      %2793 = vdwg.mxu0
      %v2794 = vadd.f32 %v2658, %v2732
      %v2795 = vadd.f32 %v2659, %v2752
      %v2796 = vadd.f32 %v2660, %v2772
      %v2797 = vadd.f32 %v2661, %v2792
      %2798 = vst [vmem:[#allocation1] ss:$2 sm:$0xff] %v231
      %s2799 = scalar_lea.vmem [#allocation1], 16
      %2800 = vst [vmem:[%s2799] ss:$2 sm:$0xff] %v232
      %v2801 = vld.sshfl [vmem:[#allocation1] sm:$0xff pattern:$0x75316420]
      %v2802 = vld.sshfl [vmem:[#allocation1 + $0x8] sm:$0xff pattern:$0x75316420]
      %v2803 = vld.sshfl [vmem:[#allocation1 + $0x10] sm:$0xff pattern:$0x75316420]
      %v2804 = vld.sshfl [vmem:[#allocation1 + $0x18] sm:$0xff pattern:$0x75316420]
      %2809 = vrot.lane.b32.xlu0 %v2801, 72
      %v2810 = vpop.permute.xlu0 %2809
      %2811 = vrot.lane.b32.xlu0 %v2802, 72
      %v2812 = vpop.permute.xlu0 %2811
      %2813 = vrot.lane.b32.xlu0 %v2803, 72
      %v2814 = vpop.permute.xlu0 %2813
      %2815 = vrot.lane.b32.xlu0 %v2804, 72
      %v2816 = vpop.permute.xlu0 %2815
      %v2817 = vsel %vm293, %v2814, %v2816
      %v2818 = vsel %vm293, %v2812, %v2814
      %v2819 = vsel %vm293, %v2810, %v2812
      %v2820 = vsel %vm293, %v2816, %v2810
      %v2821 = vsel %vm222, 1, 0
      %v2822 = vperm.slane %v2821, 0
      %v2823 = vperm.slane %v2821, 1
      %v2824 = vperm.slane %v2821, 2
      %v2825 = vperm.slane %v2821, 3
      %vm2826 = vcmp.eq.s32.totalorder %v2822, 1
      %vm2827 = vcmp.eq.s32.totalorder %v2823, 1
      %vm2828 = vcmp.eq.s32.totalorder %v2824, 1
      %vm2829 = vcmp.eq.s32.totalorder %v2825, 1
      %v2830 = vsel %vm2826, %v2819, 0.0
      %v2831 = vsel %vm2827, %v2818, 0.0
      %v2832 = vsel %vm2828, %v2817, 0.0
      %v2833 = vsel %vm2829, %v2820, 0.0
      %2834 = vrot.lane.b32.xlu0 %v208, 52
      %v2835 = vpop.permute.xlu0 %2834
      %v2836 = vsel %vm314, %v2835, 0
      %v2839 = vsel %vm317, %v2830, 0
      %v2842 = vsel %vm317, %v2831, 0
      %v2845 = vsel %vm317, %v2832, 0
      %v2848 = vsel %vm317, %v2833, 0
      %2850 = vmatpush.msra.mxu0 0.0
      %2851 = vmatpush.msra.mxu0 0.0
      %2852 = vmatpush.msra.mxu0 0.0
      %2853 = vmatpush.msra.mxu0 0.0
      %2854 = vmatpush.msra.mxu0 0.0
      %2855 = vmatpush.msra.mxu0 0.0
      %2856 = vmatpush.msra.mxu0 0.0
      %2857 = vmatpush.msra.mxu0 0.0
      %2858 = vmatpush.msra.mxu0 0.0
      %2859 = vmatpush.msra.mxu0 0.0
      %2860 = vmatpush.msra.mxu0 0.0
      %2861 = vmatpush.msra.mxu0 0.0
      %2862 = vmatpush.msra.mxu0 0.0
      %2863 = vmatpush.msra.mxu0 0.0
      %2864 = vmatpush.msra.mxu0 0.0
      %2865 = vmatpush.msra.mxu0 %v2839
      %2866 = vmatmul.f32.gmra.mxu0 %v2836
      %v2867 = vpop.f32.mrf.mxu0
      %v2868 = vadd.f32 0.0, %v2867
      %2869 = vdwg.mxu0
      %2870 = vmatpush.msra.mxu0 0.0
      %2871 = vmatpush.msra.mxu0 0.0
      %2872 = vmatpush.msra.mxu0 0.0
      %2873 = vmatpush.msra.mxu0 0.0
      %2874 = vmatpush.msra.mxu0 0.0
      %2875 = vmatpush.msra.mxu0 0.0
      %2876 = vmatpush.msra.mxu0 0.0
      %2877 = vmatpush.msra.mxu0 0.0
      %2878 = vmatpush.msra.mxu0 0.0
      %2879 = vmatpush.msra.mxu0 0.0
      %2880 = vmatpush.msra.mxu0 0.0
      %2881 = vmatpush.msra.mxu0 0.0
      %2882 = vmatpush.msra.mxu0 0.0
      %2883 = vmatpush.msra.mxu0 0.0
      %2884 = vmatpush.msra.mxu0 0.0
      %2885 = vmatpush.msra.mxu0 %v2842
      %2886 = vmatmul.f32.gmra.mxu0 %v2836
      %v2887 = vpop.f32.mrf.mxu0
      %v2888 = vadd.f32 0.0, %v2887
      %2889 = vdwg.mxu0
      %2890 = vmatpush.msra.mxu0 0.0
      %2891 = vmatpush.msra.mxu0 0.0
      %2892 = vmatpush.msra.mxu0 0.0
      %2893 = vmatpush.msra.mxu0 0.0
      %2894 = vmatpush.msra.mxu0 0.0
      %2895 = vmatpush.msra.mxu0 0.0
      %2896 = vmatpush.msra.mxu0 0.0
      %2897 = vmatpush.msra.mxu0 0.0
      %2898 = vmatpush.msra.mxu0 0.0
      %2899 = vmatpush.msra.mxu0 0.0
      %2900 = vmatpush.msra.mxu0 0.0
      %2901 = vmatpush.msra.mxu0 0.0
      %2902 = vmatpush.msra.mxu0 0.0
      %2903 = vmatpush.msra.mxu0 0.0
      %2904 = vmatpush.msra.mxu0 0.0
      %2905 = vmatpush.msra.mxu0 %v2845
      %2906 = vmatmul.f32.gmra.mxu0 %v2836
      %v2907 = vpop.f32.mrf.mxu0
      %v2908 = vadd.f32 0.0, %v2907
      %2909 = vdwg.mxu0
      %2910 = vmatpush.msra.mxu0 0.0
      %2911 = vmatpush.msra.mxu0 0.0
      %2912 = vmatpush.msra.mxu0 0.0
      %2913 = vmatpush.msra.mxu0 0.0
      %2914 = vmatpush.msra.mxu0 0.0
      %2915 = vmatpush.msra.mxu0 0.0
      %2916 = vmatpush.msra.mxu0 0.0
      %2917 = vmatpush.msra.mxu0 0.0
      %2918 = vmatpush.msra.mxu0 0.0
      %2919 = vmatpush.msra.mxu0 0.0
      %2920 = vmatpush.msra.mxu0 0.0
      %2921 = vmatpush.msra.mxu0 0.0
      %2922 = vmatpush.msra.mxu0 0.0
      %2923 = vmatpush.msra.mxu0 0.0
      %2924 = vmatpush.msra.mxu0 0.0
      %2925 = vmatpush.msra.mxu0 %v2848
      %2926 = vmatmul.f32.gmra.mxu0 %v2836
      %v2927 = vpop.f32.mrf.mxu0
      %v2928 = vadd.f32 0.0, %v2927
      %2929 = vdwg.mxu0
      %v2930 = vadd.f32 %v2794, %v2868
      %v2931 = vadd.f32 %v2795, %v2888
      %v2932 = vadd.f32 %v2796, %v2908
      %v2933 = vadd.f32 %v2797, %v2928
      %2934 = vst [vmem:[#allocation1] ss:$2 sm:$0xff] %v231
      %s2935 = scalar_lea.vmem [#allocation1], 16
      %2936 = vst [vmem:[%s2935] ss:$2 sm:$0xff] %v232
      %v2937 = vld.sshfl [vmem:[#allocation1] sm:$0xff pattern:$0x75316420]
      %v2938 = vld.sshfl [vmem:[#allocation1 + $0x8] sm:$0xff pattern:$0x75316420]
      %v2939 = vld.sshfl [vmem:[#allocation1 + $0x10] sm:$0xff pattern:$0x75316420]
      %v2940 = vld.sshfl [vmem:[#allocation1 + $0x18] sm:$0xff pattern:$0x75316420]
      %2945 = vrot.lane.b32.xlu0 %v2937, 71
      %v2946 = vpop.permute.xlu0 %2945
      %2947 = vrot.lane.b32.xlu0 %v2938, 71
      %v2948 = vpop.permute.xlu0 %2947
      %2949 = vrot.lane.b32.xlu0 %v2939, 71
      %v2950 = vpop.permute.xlu0 %2949
      %2951 = vrot.lane.b32.xlu0 %v2940, 71
      %v2952 = vpop.permute.xlu0 %2951
      %v2953 = vsel %vm523, %v2950, %v2952
      %v2954 = vsel %vm523, %v2948, %v2950
      %v2955 = vsel %vm523, %v2946, %v2948
      %v2956 = vsel %vm523, %v2952, %v2946
      %v2957 = vsel %vm224, 1, 0
      %v2958 = vperm.slane %v2957, 0
      %v2959 = vperm.slane %v2957, 1
      %v2960 = vperm.slane %v2957, 2
      %v2961 = vperm.slane %v2957, 3
      %vm2962 = vcmp.eq.s32.totalorder %v2958, 1
      %vm2963 = vcmp.eq.s32.totalorder %v2959, 1
      %vm2964 = vcmp.eq.s32.totalorder %v2960, 1
      %vm2965 = vcmp.eq.s32.totalorder %v2961, 1
      %v2966 = vsel %vm2962, %v2955, 0.0
      %v2967 = vsel %vm2963, %v2954, 0.0
      %v2968 = vsel %vm2964, %v2953, 0.0
      %v2969 = vsel %vm2965, %v2956, 0.0
      %2970 = vrot.lane.b32.xlu0 %v208, 48
      %v2971 = vpop.permute.xlu0 %2970
      %v2972 = vsel %vm314, %v2971, 0
      %v2975 = vsel %vm317, %v2966, 0
      %v2978 = vsel %vm317, %v2967, 0
      %v2981 = vsel %vm317, %v2968, 0
      %v2984 = vsel %vm317, %v2969, 0
      %2986 = vmatpush.msra.mxu0 0.0
      %2987 = vmatpush.msra.mxu0 0.0
      %2988 = vmatpush.msra.mxu0 0.0
      %2989 = vmatpush.msra.mxu0 0.0
      %2990 = vmatpush.msra.mxu0 0.0
      %2991 = vmatpush.msra.mxu0 0.0
      %2992 = vmatpush.msra.mxu0 0.0
      %2993 = vmatpush.msra.mxu0 0.0
      %2994 = vmatpush.msra.mxu0 0.0
      %2995 = vmatpush.msra.mxu0 0.0
      %2996 = vmatpush.msra.mxu0 0.0
      %2997 = vmatpush.msra.mxu0 0.0
      %2998 = vmatpush.msra.mxu0 0.0
      %2999 = vmatpush.msra.mxu0 0.0
      %3000 = vmatpush.msra.mxu0 0.0
      %3001 = vmatpush.msra.mxu0 %v2975
      %3002 = vmatmul.f32.gmra.mxu0 %v2972
      %v3003 = vpop.f32.mrf.mxu0
      %v3004 = vadd.f32 0.0, %v3003
      %3005 = vdwg.mxu0
      %3006 = vmatpush.msra.mxu0 0.0
      %3007 = vmatpush.msra.mxu0 0.0
      %3008 = vmatpush.msra.mxu0 0.0
      %3009 = vmatpush.msra.mxu0 0.0
      %3010 = vmatpush.msra.mxu0 0.0
      %3011 = vmatpush.msra.mxu0 0.0
      %3012 = vmatpush.msra.mxu0 0.0
      %3013 = vmatpush.msra.mxu0 0.0
      %3014 = vmatpush.msra.mxu0 0.0
      %3015 = vmatpush.msra.mxu0 0.0
      %3016 = vmatpush.msra.mxu0 0.0
      %3017 = vmatpush.msra.mxu0 0.0
      %3018 = vmatpush.msra.mxu0 0.0
      %3019 = vmatpush.msra.mxu0 0.0
      %3020 = vmatpush.msra.mxu0 0.0
      %3021 = vmatpush.msra.mxu0 %v2978
      %3022 = vmatmul.f32.gmra.mxu0 %v2972
      %v3023 = vpop.f32.mrf.mxu0
      %v3024 = vadd.f32 0.0, %v3023
      %3025 = vdwg.mxu0
      %3026 = vmatpush.msra.mxu0 0.0
      %3027 = vmatpush.msra.mxu0 0.0
      %3028 = vmatpush.msra.mxu0 0.0
      %3029 = vmatpush.msra.mxu0 0.0
      %3030 = vmatpush.msra.mxu0 0.0
      %3031 = vmatpush.msra.mxu0 0.0
      %3032 = vmatpush.msra.mxu0 0.0
      %3033 = vmatpush.msra.mxu0 0.0
      %3034 = vmatpush.msra.mxu0 0.0
      %3035 = vmatpush.msra.mxu0 0.0
      %3036 = vmatpush.msra.mxu0 0.0
      %3037 = vmatpush.msra.mxu0 0.0
      %3038 = vmatpush.msra.mxu0 0.0
      %3039 = vmatpush.msra.mxu0 0.0
      %3040 = vmatpush.msra.mxu0 0.0
      %3041 = vmatpush.msra.mxu0 %v2981
      %3042 = vmatmul.f32.gmra.mxu0 %v2972
      %v3043 = vpop.f32.mrf.mxu0
      %v3044 = vadd.f32 0.0, %v3043
      %3045 = vdwg.mxu0
      %3046 = vmatpush.msra.mxu0 0.0
      %3047 = vmatpush.msra.mxu0 0.0
      %3048 = vmatpush.msra.mxu0 0.0
      %3049 = vmatpush.msra.mxu0 0.0
      %3050 = vmatpush.msra.mxu0 0.0
      %3051 = vmatpush.msra.mxu0 0.0
      %3052 = vmatpush.msra.mxu0 0.0
      %3053 = vmatpush.msra.mxu0 0.0
      %3054 = vmatpush.msra.mxu0 0.0
      %3055 = vmatpush.msra.mxu0 0.0
      %3056 = vmatpush.msra.mxu0 0.0
      %3057 = vmatpush.msra.mxu0 0.0
      %3058 = vmatpush.msra.mxu0 0.0
      %3059 = vmatpush.msra.mxu0 0.0
      %3060 = vmatpush.msra.mxu0 0.0
      %3061 = vmatpush.msra.mxu0 %v2984
      %3062 = vmatmul.f32.gmra.mxu0 %v2972
      %v3063 = vpop.f32.mrf.mxu0
      %v3064 = vadd.f32 0.0, %v3063
      %3065 = vdwg.mxu0
      %v3066 = vadd.f32 %v2930, %v3004
      %v3067 = vadd.f32 %v2931, %v3024
      %v3068 = vadd.f32 %v2932, %v3044
      %v3069 = vadd.f32 %v2933, %v3064
      %3070 = vst [vmem:[#allocation1] ss:$2 sm:$0xff] %v231
      %s3071 = scalar_lea.vmem [#allocation1], 16
      %3072 = vst [vmem:[%s3071] ss:$2 sm:$0xff] %v232
      %v3073 = vld.sshfl [vmem:[#allocation1] sm:$0xff pattern:$0x75316420]
      %v3074 = vld.sshfl [vmem:[#allocation1 + $0x8] sm:$0xff pattern:$0x75316420]
      %v3075 = vld.sshfl [vmem:[#allocation1 + $0x10] sm:$0xff pattern:$0x75316420]
      %v3076 = vld.sshfl [vmem:[#allocation1 + $0x18] sm:$0xff pattern:$0x75316420]
      %3081 = vrot.lane.b32.xlu0 %v3073, 65
      %v3082 = vpop.permute.xlu0 %3081
      %3083 = vrot.lane.b32.xlu0 %v3074, 65
      %v3084 = vpop.permute.xlu0 %3083
      %3085 = vrot.lane.b32.xlu0 %v3075, 65
      %v3086 = vpop.permute.xlu0 %3085
      %3087 = vrot.lane.b32.xlu0 %v3076, 65
      %v3088 = vpop.permute.xlu0 %3087
      %v3089 = vsel %vm660, %v3086, %v3088
      %v3090 = vsel %vm660, %v3084, %v3086
      %v3091 = vsel %vm660, %v3082, %v3084
      %v3092 = vsel %vm660, %v3088, %v3082
      %v3093 = vsel %vm225, 1, 0
      %v3094 = vperm.slane %v3093, 0
      %v3095 = vperm.slane %v3093, 1
      %v3096 = vperm.slane %v3093, 2
      %v3097 = vperm.slane %v3093, 3
      %vm3098 = vcmp.eq.s32.totalorder %v3094, 1
      %vm3099 = vcmp.eq.s32.totalorder %v3095, 1
      %vm3100 = vcmp.eq.s32.totalorder %v3096, 1
      %vm3101 = vcmp.eq.s32.totalorder %v3097, 1
      %v3102 = vsel %vm3098, %v3091, 0.0
      %v3103 = vsel %vm3099, %v3090, 0.0
      %v3104 = vsel %vm3100, %v3089, 0.0
      %v3105 = vsel %vm3101, %v3092, 0.0
      %3106 = vrot.lane.b32.xlu0 %v208, 44
      %v3107 = vpop.permute.xlu0 %3106
      %v3108 = vsel %vm314, %v3107, 0
      %v3111 = vsel %vm317, %v3102, 0
      %v3114 = vsel %vm317, %v3103, 0
      %v3117 = vsel %vm317, %v3104, 0
      %v3120 = vsel %vm317, %v3105, 0
      %3122 = vmatpush.msra.mxu0 0.0
      %3123 = vmatpush.msra.mxu0 0.0
      %3124 = vmatpush.msra.mxu0 0.0
      %3125 = vmatpush.msra.mxu0 0.0
      %3126 = vmatpush.msra.mxu0 0.0
      %3127 = vmatpush.msra.mxu0 0.0
      %3128 = vmatpush.msra.mxu0 0.0
      %3129 = vmatpush.msra.mxu0 0.0
      %3130 = vmatpush.msra.mxu0 0.0
      %3131 = vmatpush.msra.mxu0 0.0
      %3132 = vmatpush.msra.mxu0 0.0
      %3133 = vmatpush.msra.mxu0 0.0
      %3134 = vmatpush.msra.mxu0 0.0
      %3135 = vmatpush.msra.mxu0 0.0
      %3136 = vmatpush.msra.mxu0 0.0
      %3137 = vmatpush.msra.mxu0 %v3111
      %3138 = vmatmul.f32.gmra.mxu0 %v3108
      %v3139 = vpop.f32.mrf.mxu0
      %v3140 = vadd.f32 0.0, %v3139
      %3141 = vdwg.mxu0
      %3142 = vmatpush.msra.mxu0 0.0
      %3143 = vmatpush.msra.mxu0 0.0
      %3144 = vmatpush.msra.mxu0 0.0
      %3145 = vmatpush.msra.mxu0 0.0
      %3146 = vmatpush.msra.mxu0 0.0
      %3147 = vmatpush.msra.mxu0 0.0
      %3148 = vmatpush.msra.mxu0 0.0
      %3149 = vmatpush.msra.mxu0 0.0
      %3150 = vmatpush.msra.mxu0 0.0
      %3151 = vmatpush.msra.mxu0 0.0
      %3152 = vmatpush.msra.mxu0 0.0
      %3153 = vmatpush.msra.mxu0 0.0
      %3154 = vmatpush.msra.mxu0 0.0
      %3155 = vmatpush.msra.mxu0 0.0
      %3156 = vmatpush.msra.mxu0 0.0
      %3157 = vmatpush.msra.mxu0 %v3114
      %3158 = vmatmul.f32.gmra.mxu0 %v3108
      %v3159 = vpop.f32.mrf.mxu0
      %v3160 = vadd.f32 0.0, %v3159
      %3161 = vdwg.mxu0
      %3162 = vmatpush.msra.mxu0 0.0
      %3163 = vmatpush.msra.mxu0 0.0
      %3164 = vmatpush.msra.mxu0 0.0
      %3165 = vmatpush.msra.mxu0 0.0
      %3166 = vmatpush.msra.mxu0 0.0
      %3167 = vmatpush.msra.mxu0 0.0
      %3168 = vmatpush.msra.mxu0 0.0
      %3169 = vmatpush.msra.mxu0 0.0
      %3170 = vmatpush.msra.mxu0 0.0
      %3171 = vmatpush.msra.mxu0 0.0
      %3172 = vmatpush.msra.mxu0 0.0
      %3173 = vmatpush.msra.mxu0 0.0
      %3174 = vmatpush.msra.mxu0 0.0
      %3175 = vmatpush.msra.mxu0 0.0
      %3176 = vmatpush.msra.mxu0 0.0
      %3177 = vmatpush.msra.mxu0 %v3117
      %3178 = vmatmul.f32.gmra.mxu0 %v3108
      %v3179 = vpop.f32.mrf.mxu0
      %v3180 = vadd.f32 0.0, %v3179
      %3181 = vdwg.mxu0
      %3182 = vmatpush.msra.mxu0 0.0
      %3183 = vmatpush.msra.mxu0 0.0
      %3184 = vmatpush.msra.mxu0 0.0
      %3185 = vmatpush.msra.mxu0 0.0
      %3186 = vmatpush.msra.mxu0 0.0
      %3187 = vmatpush.msra.mxu0 0.0
      %3188 = vmatpush.msra.mxu0 0.0
      %3189 = vmatpush.msra.mxu0 0.0
      %3190 = vmatpush.msra.mxu0 0.0
      %3191 = vmatpush.msra.mxu0 0.0
      %3192 = vmatpush.msra.mxu0 0.0
      %3193 = vmatpush.msra.mxu0 0.0
      %3194 = vmatpush.msra.mxu0 0.0
      %3195 = vmatpush.msra.mxu0 0.0
      %3196 = vmatpush.msra.mxu0 0.0
      %3197 = vmatpush.msra.mxu0 %v3120
      %3198 = vmatmul.f32.gmra.mxu0 %v3108
      %v3199 = vpop.f32.mrf.mxu0
      %v3200 = vadd.f32 0.0, %v3199
      %3201 = vdwg.mxu0
      %v3202 = vadd.f32 %v3066, %v3140
      %v3203 = vadd.f32 %v3067, %v3160
      %v3204 = vadd.f32 %v3068, %v3180
      %v3205 = vadd.f32 %v3069, %v3200
      %3206 = vst [vmem:[#allocation1] ss:$2 sm:$0xff] %v231
      %s3207 = scalar_lea.vmem [#allocation1], 16
      %3208 = vst [vmem:[%s3207] ss:$2 sm:$0xff] %v232
      %v3209 = vld.sshfl [vmem:[#allocation1] sm:$0xff pattern:$0x75316420]
      %v3210 = vld.sshfl [vmem:[#allocation1 + $0x8] sm:$0xff pattern:$0x75316420]
      %v3211 = vld.sshfl [vmem:[#allocation1 + $0x10] sm:$0xff pattern:$0x75316420]
      %v3212 = vld.sshfl [vmem:[#allocation1 + $0x18] sm:$0xff pattern:$0x75316420]
      %3217 = vrot.lane.b32.xlu0 %v3209, 64
      %v3218 = vpop.permute.xlu0 %3217
      %3219 = vrot.lane.b32.xlu0 %v3210, 64
      %v3220 = vpop.permute.xlu0 %3219
      %3221 = vrot.lane.b32.xlu0 %v3211, 64
      %v3222 = vpop.permute.xlu0 %3221
      %3223 = vrot.lane.b32.xlu0 %v3212, 64
      %v3224 = vpop.permute.xlu0 %3223
      %v3225 = vsel %vm797, %v3222, %v3224
      %v3226 = vsel %vm797, %v3220, %v3222
      %v3227 = vsel %vm797, %v3218, %v3220
      %v3228 = vsel %vm797, %v3224, %v3218
      %v3229 = vsel %vm221, 1, 0
      %v3230 = vperm.slane %v3229, 0
      %v3231 = vperm.slane %v3229, 1
      %v3232 = vperm.slane %v3229, 2
      %v3233 = vperm.slane %v3229, 3
      %vm3234 = vcmp.eq.s32.totalorder %v3230, 1
      %vm3235 = vcmp.eq.s32.totalorder %v3231, 1
      %vm3236 = vcmp.eq.s32.totalorder %v3232, 1
      %vm3237 = vcmp.eq.s32.totalorder %v3233, 1
      %v3238 = vsel %vm3234, %v3227, 0.0
      %v3239 = vsel %vm3235, %v3226, 0.0
      %v3240 = vsel %vm3236, %v3225, 0.0
      %v3241 = vsel %vm3237, %v3228, 0.0
      %3242 = vrot.lane.b32.xlu0 %v208, 40
      %v3243 = vpop.permute.xlu0 %3242
      %v3244 = vsel %vm314, %v3243, 0
      %v3247 = vsel %vm317, %v3238, 0
      %v3250 = vsel %vm317, %v3239, 0
      %v3253 = vsel %vm317, %v3240, 0
      %v3256 = vsel %vm317, %v3241, 0
      %3258 = vmatpush.msra.mxu0 0.0
      %3259 = vmatpush.msra.mxu0 0.0
      %3260 = vmatpush.msra.mxu0 0.0
      %3261 = vmatpush.msra.mxu0 0.0
      %3262 = vmatpush.msra.mxu0 0.0
      %3263 = vmatpush.msra.mxu0 0.0
      %3264 = vmatpush.msra.mxu0 0.0
      %3265 = vmatpush.msra.mxu0 0.0
      %3266 = vmatpush.msra.mxu0 0.0
      %3267 = vmatpush.msra.mxu0 0.0
      %3268 = vmatpush.msra.mxu0 0.0
      %3269 = vmatpush.msra.mxu0 0.0
      %3270 = vmatpush.msra.mxu0 0.0
      %3271 = vmatpush.msra.mxu0 0.0
      %3272 = vmatpush.msra.mxu0 0.0
      %3273 = vmatpush.msra.mxu0 %v3247
      %3274 = vmatmul.f32.gmra.mxu0 %v3244
      %v3275 = vpop.f32.mrf.mxu0
      %v3276 = vadd.f32 0.0, %v3275
      %3277 = vdwg.mxu0
      %3278 = vmatpush.msra.mxu0 0.0
      %3279 = vmatpush.msra.mxu0 0.0
      %3280 = vmatpush.msra.mxu0 0.0
      %3281 = vmatpush.msra.mxu0 0.0
      %3282 = vmatpush.msra.mxu0 0.0
      %3283 = vmatpush.msra.mxu0 0.0
      %3284 = vmatpush.msra.mxu0 0.0
      %3285 = vmatpush.msra.mxu0 0.0
      %3286 = vmatpush.msra.mxu0 0.0
      %3287 = vmatpush.msra.mxu0 0.0
      %3288 = vmatpush.msra.mxu0 0.0
      %3289 = vmatpush.msra.mxu0 0.0
      %3290 = vmatpush.msra.mxu0 0.0
      %3291 = vmatpush.msra.mxu0 0.0
      %3292 = vmatpush.msra.mxu0 0.0
      %3293 = vmatpush.msra.mxu0 %v3250
      %3294 = vmatmul.f32.gmra.mxu0 %v3244
      %v3295 = vpop.f32.mrf.mxu0
      %v3296 = vadd.f32 0.0, %v3295
      %3297 = vdwg.mxu0
      %3298 = vmatpush.msra.mxu0 0.0
      %3299 = vmatpush.msra.mxu0 0.0
      %3300 = vmatpush.msra.mxu0 0.0
      %3301 = vmatpush.msra.mxu0 0.0
      %3302 = vmatpush.msra.mxu0 0.0
      %3303 = vmatpush.msra.mxu0 0.0
      %3304 = vmatpush.msra.mxu0 0.0
      %3305 = vmatpush.msra.mxu0 0.0
      %3306 = vmatpush.msra.mxu0 0.0
      %3307 = vmatpush.msra.mxu0 0.0
      %3308 = vmatpush.msra.mxu0 0.0
      %3309 = vmatpush.msra.mxu0 0.0
      %3310 = vmatpush.msra.mxu0 0.0
      %3311 = vmatpush.msra.mxu0 0.0
      %3312 = vmatpush.msra.mxu0 0.0
      %3313 = vmatpush.msra.mxu0 %v3253
      %3314 = vmatmul.f32.gmra.mxu0 %v3244
      %v3315 = vpop.f32.mrf.mxu0
      %v3316 = vadd.f32 0.0, %v3315
      %3317 = vdwg.mxu0
      %3318 = vmatpush.msra.mxu0 0.0
      %3319 = vmatpush.msra.mxu0 0.0
      %3320 = vmatpush.msra.mxu0 0.0
      %3321 = vmatpush.msra.mxu0 0.0
      %3322 = vmatpush.msra.mxu0 0.0
      %3323 = vmatpush.msra.mxu0 0.0
      %3324 = vmatpush.msra.mxu0 0.0
      %3325 = vmatpush.msra.mxu0 0.0
      %3326 = vmatpush.msra.mxu0 0.0
      %3327 = vmatpush.msra.mxu0 0.0
      %3328 = vmatpush.msra.mxu0 0.0
      %3329 = vmatpush.msra.mxu0 0.0
      %3330 = vmatpush.msra.mxu0 0.0
      %3331 = vmatpush.msra.mxu0 0.0
      %3332 = vmatpush.msra.mxu0 0.0
      %3333 = vmatpush.msra.mxu0 %v3256
      %3334 = vmatmul.f32.gmra.mxu0 %v3244
      %v3335 = vpop.f32.mrf.mxu0
      %v3336 = vadd.f32 0.0, %v3335
      %3337 = vdwg.mxu0
      %v3338 = vadd.f32 %v3202, %v3276
      %v3339 = vadd.f32 %v3203, %v3296
      %v3340 = vadd.f32 %v3204, %v3316
      %v3341 = vadd.f32 %v3205, %v3336
      %3342 = vst [vmem:[#allocation1] ss:$2 sm:$0xff] %v231
      %s3343 = scalar_lea.vmem [#allocation1], 16
      %3344 = vst [vmem:[%s3343] ss:$2 sm:$0xff] %v232
      %v3345 = vld.sshfl [vmem:[#allocation1] sm:$0xff pattern:$0x75316420]
      %v3346 = vld.sshfl [vmem:[#allocation1 + $0x8] sm:$0xff pattern:$0x75316420]
      %v3347 = vld.sshfl [vmem:[#allocation1 + $0x10] sm:$0xff pattern:$0x75316420]
      %v3348 = vld.sshfl [vmem:[#allocation1 + $0x18] sm:$0xff pattern:$0x75316420]
      %3353 = vrot.lane.b32.xlu0 %v3345, 63
      %v3354 = vpop.permute.xlu0 %3353
      %3355 = vrot.lane.b32.xlu0 %v3346, 63
      %v3356 = vpop.permute.xlu0 %3355
      %3357 = vrot.lane.b32.xlu0 %v3347, 63
      %v3358 = vpop.permute.xlu0 %3357
      %3359 = vrot.lane.b32.xlu0 %v3348, 63
      %v3360 = vpop.permute.xlu0 %3359
      %v3361 = vsel %vm934, %v3358, %v3360
      %v3362 = vsel %vm934, %v3356, %v3358
      %v3363 = vsel %vm934, %v3354, %v3356
      %v3364 = vsel %vm934, %v3360, %v3354
      %v3365 = vsel %vm226, 1, 0
      %v3366 = vperm.slane %v3365, 0
      %v3367 = vperm.slane %v3365, 1
      %v3368 = vperm.slane %v3365, 2
      %v3369 = vperm.slane %v3365, 3
      %vm3370 = vcmp.eq.s32.totalorder %v3366, 1
      %vm3371 = vcmp.eq.s32.totalorder %v3367, 1
      %vm3372 = vcmp.eq.s32.totalorder %v3368, 1
      %vm3373 = vcmp.eq.s32.totalorder %v3369, 1
      %v3374 = vsel %vm3370, %v3363, 0.0
      %v3375 = vsel %vm3371, %v3362, 0.0
      %v3376 = vsel %vm3372, %v3361, 0.0
      %v3377 = vsel %vm3373, %v3364, 0.0
      %3378 = vrot.lane.b32.xlu0 %v208, 36
      %v3379 = vpop.permute.xlu0 %3378
      %v3380 = vsel %vm314, %v3379, 0
      %v3383 = vsel %vm317, %v3374, 0
      %v3386 = vsel %vm317, %v3375, 0
      %v3389 = vsel %vm317, %v3376, 0
      %v3392 = vsel %vm317, %v3377, 0
      %3394 = vmatpush.msra.mxu0 0.0
      %3395 = vmatpush.msra.mxu0 0.0
      %3396 = vmatpush.msra.mxu0 0.0
      %3397 = vmatpush.msra.mxu0 0.0
      %3398 = vmatpush.msra.mxu0 0.0
      %3399 = vmatpush.msra.mxu0 0.0
      %3400 = vmatpush.msra.mxu0 0.0
      %3401 = vmatpush.msra.mxu0 0.0
      %3402 = vmatpush.msra.mxu0 0.0
      %3403 = vmatpush.msra.mxu0 0.0
      %3404 = vmatpush.msra.mxu0 0.0
      %3405 = vmatpush.msra.mxu0 0.0
      %3406 = vmatpush.msra.mxu0 0.0
      %3407 = vmatpush.msra.mxu0 0.0
      %3408 = vmatpush.msra.mxu0 0.0
      %3409 = vmatpush.msra.mxu0 %v3383
      %3410 = vmatmul.f32.gmra.mxu0 %v3380
      %v3411 = vpop.f32.mrf.mxu0
      %v3412 = vadd.f32 0.0, %v3411
      %3413 = vdwg.mxu0
      %3414 = vmatpush.msra.mxu0 0.0
      %3415 = vmatpush.msra.mxu0 0.0
      %3416 = vmatpush.msra.mxu0 0.0
      %3417 = vmatpush.msra.mxu0 0.0
      %3418 = vmatpush.msra.mxu0 0.0
      %3419 = vmatpush.msra.mxu0 0.0
      %3420 = vmatpush.msra.mxu0 0.0
      %3421 = vmatpush.msra.mxu0 0.0
      %3422 = vmatpush.msra.mxu0 0.0
      %3423 = vmatpush.msra.mxu0 0.0
      %3424 = vmatpush.msra.mxu0 0.0
      %3425 = vmatpush.msra.mxu0 0.0
      %3426 = vmatpush.msra.mxu0 0.0
      %3427 = vmatpush.msra.mxu0 0.0
      %3428 = vmatpush.msra.mxu0 0.0
      %3429 = vmatpush.msra.mxu0 %v3386
      %3430 = vmatmul.f32.gmra.mxu0 %v3380
      %v3431 = vpop.f32.mrf.mxu0
      %v3432 = vadd.f32 0.0, %v3431
      %3433 = vdwg.mxu0
      %3434 = vmatpush.msra.mxu0 0.0
      %3435 = vmatpush.msra.mxu0 0.0
      %3436 = vmatpush.msra.mxu0 0.0
      %3437 = vmatpush.msra.mxu0 0.0
      %3438 = vmatpush.msra.mxu0 0.0
      %3439 = vmatpush.msra.mxu0 0.0
      %3440 = vmatpush.msra.mxu0 0.0
      %3441 = vmatpush.msra.mxu0 0.0
      %3442 = vmatpush.msra.mxu0 0.0
      %3443 = vmatpush.msra.mxu0 0.0
      %3444 = vmatpush.msra.mxu0 0.0
      %3445 = vmatpush.msra.mxu0 0.0
      %3446 = vmatpush.msra.mxu0 0.0
      %3447 = vmatpush.msra.mxu0 0.0
      %3448 = vmatpush.msra.mxu0 0.0
      %3449 = vmatpush.msra.mxu0 %v3389
      %3450 = vmatmul.f32.gmra.mxu0 %v3380
      %v3451 = vpop.f32.mrf.mxu0
      %v3452 = vadd.f32 0.0, %v3451
      %3453 = vdwg.mxu0
      %3454 = vmatpush.msra.mxu0 0.0
      %3455 = vmatpush.msra.mxu0 0.0
      %3456 = vmatpush.msra.mxu0 0.0
      %3457 = vmatpush.msra.mxu0 0.0
      %3458 = vmatpush.msra.mxu0 0.0
      %3459 = vmatpush.msra.mxu0 0.0
      %3460 = vmatpush.msra.mxu0 0.0
      %3461 = vmatpush.msra.mxu0 0.0
      %3462 = vmatpush.msra.mxu0 0.0
      %3463 = vmatpush.msra.mxu0 0.0
      %3464 = vmatpush.msra.mxu0 0.0
      %3465 = vmatpush.msra.mxu0 0.0
      %3466 = vmatpush.msra.mxu0 0.0
      %3467 = vmatpush.msra.mxu0 0.0
      %3468 = vmatpush.msra.mxu0 0.0
      %3469 = vmatpush.msra.mxu0 %v3392
      %3470 = vmatmul.f32.gmra.mxu0 %v3380
      %v3471 = vpop.f32.mrf.mxu0
      %v3472 = vadd.f32 0.0, %v3471
      %3473 = vdwg.mxu0
      %v3474 = vadd.f32 %v3338, %v3412
      %v3475 = vadd.f32 %v3339, %v3432
      %v3476 = vadd.f32 %v3340, %v3452
      %v3477 = vadd.f32 %v3341, %v3472
      %3478 = vst [vmem:[#allocation1] ss:$2 sm:$0xff] %v231
      %s3479 = scalar_lea.vmem [#allocation1], 16
      %3480 = vst [vmem:[%s3479] ss:$2 sm:$0xff] %v232
      %v3481 = vld.sshfl [vmem:[#allocation1] sm:$0xff pattern:$0x75316420]
      %v3482 = vld.sshfl [vmem:[#allocation1 + $0x8] sm:$0xff pattern:$0x75316420]
      %v3483 = vld.sshfl [vmem:[#allocation1 + $0x10] sm:$0xff pattern:$0x75316420]
      %v3484 = vld.sshfl [vmem:[#allocation1 + $0x18] sm:$0xff pattern:$0x75316420]
      %3489 = vrot.lane.b32.xlu0 %v3481, 57
      %v3490 = vpop.permute.xlu0 %3489
      %3491 = vrot.lane.b32.xlu0 %v3482, 57
      %v3492 = vpop.permute.xlu0 %3491
      %3493 = vrot.lane.b32.xlu0 %v3483, 57
      %v3494 = vpop.permute.xlu0 %3493
      %3495 = vrot.lane.b32.xlu0 %v3484, 57
      %v3496 = vpop.permute.xlu0 %3495
      %v3497 = vsel %vm1071, %v3494, %v3496
      %v3498 = vsel %vm1071, %v3492, %v3494
      %v3499 = vsel %vm1071, %v3490, %v3492
      %v3500 = vsel %vm1071, %v3496, %v3490
      %v3501 = vsel %vm228, 1, 0
      %v3502 = vperm.slane %v3501, 0
      %v3503 = vperm.slane %v3501, 1
      %v3504 = vperm.slane %v3501, 2
      %v3505 = vperm.slane %v3501, 3
      %vm3506 = vcmp.eq.s32.totalorder %v3502, 1
      %vm3507 = vcmp.eq.s32.totalorder %v3503, 1
      %vm3508 = vcmp.eq.s32.totalorder %v3504, 1
      %vm3509 = vcmp.eq.s32.totalorder %v3505, 1
      %v3510 = vsel %vm3506, %v3499, 0.0
      %v3511 = vsel %vm3507, %v3498, 0.0
      %v3512 = vsel %vm3508, %v3497, 0.0
      %v3513 = vsel %vm3509, %v3500, 0.0
      %3514 = vrot.lane.b32.xlu0 %v208, 32
      %v3515 = vpop.permute.xlu0 %3514
      %v3516 = vsel %vm314, %v3515, 0
      %v3519 = vsel %vm317, %v3510, 0
      %v3522 = vsel %vm317, %v3511, 0
      %v3525 = vsel %vm317, %v3512, 0
      %v3528 = vsel %vm317, %v3513, 0
      %3530 = vmatpush.msra.mxu0 0.0
      %3531 = vmatpush.msra.mxu0 0.0
      %3532 = vmatpush.msra.mxu0 0.0
      %3533 = vmatpush.msra.mxu0 0.0
      %3534 = vmatpush.msra.mxu0 0.0
      %3535 = vmatpush.msra.mxu0 0.0
      %3536 = vmatpush.msra.mxu0 0.0
      %3537 = vmatpush.msra.mxu0 0.0
      %3538 = vmatpush.msra.mxu0 0.0
      %3539 = vmatpush.msra.mxu0 0.0
      %3540 = vmatpush.msra.mxu0 0.0
      %3541 = vmatpush.msra.mxu0 0.0
      %3542 = vmatpush.msra.mxu0 0.0
      %3543 = vmatpush.msra.mxu0 0.0
      %3544 = vmatpush.msra.mxu0 0.0
      %3545 = vmatpush.msra.mxu0 %v3519
      %3546 = vmatmul.f32.gmra.mxu0 %v3516
      %v3547 = vpop.f32.mrf.mxu0
      %v3548 = vadd.f32 0.0, %v3547
      %3549 = vdwg.mxu0
      %3550 = vmatpush.msra.mxu0 0.0
      %3551 = vmatpush.msra.mxu0 0.0
      %3552 = vmatpush.msra.mxu0 0.0
      %3553 = vmatpush.msra.mxu0 0.0
      %3554 = vmatpush.msra.mxu0 0.0
      %3555 = vmatpush.msra.mxu0 0.0
      %3556 = vmatpush.msra.mxu0 0.0
      %3557 = vmatpush.msra.mxu0 0.0
      %3558 = vmatpush.msra.mxu0 0.0
      %3559 = vmatpush.msra.mxu0 0.0
      %3560 = vmatpush.msra.mxu0 0.0
      %3561 = vmatpush.msra.mxu0 0.0
      %3562 = vmatpush.msra.mxu0 0.0
      %3563 = vmatpush.msra.mxu0 0.0
      %3564 = vmatpush.msra.mxu0 0.0
      %3565 = vmatpush.msra.mxu0 %v3522
      %3566 = vmatmul.f32.gmra.mxu0 %v3516
      %v3567 = vpop.f32.mrf.mxu0
      %v3568 = vadd.f32 0.0, %v3567
      %3569 = vdwg.mxu0
      %3570 = vmatpush.msra.mxu0 0.0
      %3571 = vmatpush.msra.mxu0 0.0
      %3572 = vmatpush.msra.mxu0 0.0
      %3573 = vmatpush.msra.mxu0 0.0
      %3574 = vmatpush.msra.mxu0 0.0
      %3575 = vmatpush.msra.mxu0 0.0
      %3576 = vmatpush.msra.mxu0 0.0
      %3577 = vmatpush.msra.mxu0 0.0
      %3578 = vmatpush.msra.mxu0 0.0
      %3579 = vmatpush.msra.mxu0 0.0
      %3580 = vmatpush.msra.mxu0 0.0
      %3581 = vmatpush.msra.mxu0 0.0
      %3582 = vmatpush.msra.mxu0 0.0
      %3583 = vmatpush.msra.mxu0 0.0
      %3584 = vmatpush.msra.mxu0 0.0
      %3585 = vmatpush.msra.mxu0 %v3525
      %3586 = vmatmul.f32.gmra.mxu0 %v3516
      %v3587 = vpop.f32.mrf.mxu0
      %v3588 = vadd.f32 0.0, %v3587
      %3589 = vdwg.mxu0
      %3590 = vmatpush.msra.mxu0 0.0
      %3591 = vmatpush.msra.mxu0 0.0
      %3592 = vmatpush.msra.mxu0 0.0
      %3593 = vmatpush.msra.mxu0 0.0
      %3594 = vmatpush.msra.mxu0 0.0
      %3595 = vmatpush.msra.mxu0 0.0
      %3596 = vmatpush.msra.mxu0 0.0
      %3597 = vmatpush.msra.mxu0 0.0
      %3598 = vmatpush.msra.mxu0 0.0
      %3599 = vmatpush.msra.mxu0 0.0
      %3600 = vmatpush.msra.mxu0 0.0
      %3601 = vmatpush.msra.mxu0 0.0
      %3602 = vmatpush.msra.mxu0 0.0
      %3603 = vmatpush.msra.mxu0 0.0
      %3604 = vmatpush.msra.mxu0 0.0
      %3605 = vmatpush.msra.mxu0 %v3528
      %3606 = vmatmul.f32.gmra.mxu0 %v3516
      %v3607 = vpop.f32.mrf.mxu0
      %v3608 = vadd.f32 0.0, %v3607
      %3609 = vdwg.mxu0
      %v3610 = vadd.f32 %v3474, %v3548
      %v3611 = vadd.f32 %v3475, %v3568
      %v3612 = vadd.f32 %v3476, %v3588
      %v3613 = vadd.f32 %v3477, %v3608
      %3614 = vst [vmem:[#allocation1] ss:$2 sm:$0xff] %v231
      %s3615 = scalar_lea.vmem [#allocation1], 16
      %3616 = vst [vmem:[%s3615] ss:$2 sm:$0xff] %v232
      %v3617 = vld.sshfl [vmem:[#allocation1] sm:$0xff pattern:$0x75316420]
      %v3618 = vld.sshfl [vmem:[#allocation1 + $0x8] sm:$0xff pattern:$0x75316420]
      %v3619 = vld.sshfl [vmem:[#allocation1 + $0x10] sm:$0xff pattern:$0x75316420]
      %v3620 = vld.sshfl [vmem:[#allocation1 + $0x18] sm:$0xff pattern:$0x75316420]
      %3625 = vrot.lane.b32.xlu0 %v3617, 56
      %v3626 = vpop.permute.xlu0 %3625
      %3627 = vrot.lane.b32.xlu0 %v3618, 56
      %v3628 = vpop.permute.xlu0 %3627
      %3629 = vrot.lane.b32.xlu0 %v3619, 56
      %v3630 = vpop.permute.xlu0 %3629
      %3631 = vrot.lane.b32.xlu0 %v3620, 56
      %v3632 = vpop.permute.xlu0 %3631
      %v3633 = vsel %vm1208, %v3630, %v3632
      %v3634 = vsel %vm1208, %v3628, %v3630
      %v3635 = vsel %vm1208, %v3626, %v3628
      %v3636 = vsel %vm1208, %v3632, %v3626
      %v3637 = vsel %vm227, 1, 0
      %v3638 = vperm.slane %v3637, 0
      %v3639 = vperm.slane %v3637, 1
      %v3640 = vperm.slane %v3637, 2
      %v3641 = vperm.slane %v3637, 3
      %vm3642 = vcmp.eq.s32.totalorder %v3638, 1
      %vm3643 = vcmp.eq.s32.totalorder %v3639, 1
      %vm3644 = vcmp.eq.s32.totalorder %v3640, 1
      %vm3645 = vcmp.eq.s32.totalorder %v3641, 1
      %v3646 = vsel %vm3642, %v3635, 0.0
      %v3647 = vsel %vm3643, %v3634, 0.0
      %v3648 = vsel %vm3644, %v3633, 0.0
      %v3649 = vsel %vm3645, %v3636, 0.0
      %3650 = vrot.lane.b32.xlu0 %v208, 28
      %v3651 = vpop.permute.xlu0 %3650
      %v3652 = vsel %vm314, %v3651, 0
      %v3655 = vsel %vm317, %v3646, 0
      %v3658 = vsel %vm317, %v3647, 0
      %v3661 = vsel %vm317, %v3648, 0
      %v3664 = vsel %vm317, %v3649, 0
      %3666 = vmatpush.msra.mxu0 0.0
      %3667 = vmatpush.msra.mxu0 0.0
      %3668 = vmatpush.msra.mxu0 0.0
      %3669 = vmatpush.msra.mxu0 0.0
      %3670 = vmatpush.msra.mxu0 0.0
      %3671 = vmatpush.msra.mxu0 0.0
      %3672 = vmatpush.msra.mxu0 0.0
      %3673 = vmatpush.msra.mxu0 0.0
      %3674 = vmatpush.msra.mxu0 0.0
      %3675 = vmatpush.msra.mxu0 0.0
      %3676 = vmatpush.msra.mxu0 0.0
      %3677 = vmatpush.msra.mxu0 0.0
      %3678 = vmatpush.msra.mxu0 0.0
      %3679 = vmatpush.msra.mxu0 0.0
      %3680 = vmatpush.msra.mxu0 0.0
      %3681 = vmatpush.msra.mxu0 %v3655
      %3682 = vmatmul.f32.gmra.mxu0 %v3652
      %v3683 = vpop.f32.mrf.mxu0
      %v3684 = vadd.f32 0.0, %v3683
      %3685 = vdwg.mxu0
      %3686 = vmatpush.msra.mxu0 0.0
      %3687 = vmatpush.msra.mxu0 0.0
      %3688 = vmatpush.msra.mxu0 0.0
      %3689 = vmatpush.msra.mxu0 0.0
      %3690 = vmatpush.msra.mxu0 0.0
      %3691 = vmatpush.msra.mxu0 0.0
      %3692 = vmatpush.msra.mxu0 0.0
      %3693 = vmatpush.msra.mxu0 0.0
      %3694 = vmatpush.msra.mxu0 0.0
      %3695 = vmatpush.msra.mxu0 0.0
      %3696 = vmatpush.msra.mxu0 0.0
      %3697 = vmatpush.msra.mxu0 0.0
      %3698 = vmatpush.msra.mxu0 0.0
      %3699 = vmatpush.msra.mxu0 0.0
      %3700 = vmatpush.msra.mxu0 0.0
      %3701 = vmatpush.msra.mxu0 %v3658
      %3702 = vmatmul.f32.gmra.mxu0 %v3652
      %v3703 = vpop.f32.mrf.mxu0
      %v3704 = vadd.f32 0.0, %v3703
      %3705 = vdwg.mxu0
      %3706 = vmatpush.msra.mxu0 0.0
      %3707 = vmatpush.msra.mxu0 0.0
      %3708 = vmatpush.msra.mxu0 0.0
      %3709 = vmatpush.msra.mxu0 0.0
      %3710 = vmatpush.msra.mxu0 0.0
      %3711 = vmatpush.msra.mxu0 0.0
      %3712 = vmatpush.msra.mxu0 0.0
      %3713 = vmatpush.msra.mxu0 0.0
      %3714 = vmatpush.msra.mxu0 0.0
      %3715 = vmatpush.msra.mxu0 0.0
      %3716 = vmatpush.msra.mxu0 0.0
      %3717 = vmatpush.msra.mxu0 0.0
      %3718 = vmatpush.msra.mxu0 0.0
      %3719 = vmatpush.msra.mxu0 0.0
      %3720 = vmatpush.msra.mxu0 0.0
      %3721 = vmatpush.msra.mxu0 %v3661
      %3722 = vmatmul.f32.gmra.mxu0 %v3652
      %v3723 = vpop.f32.mrf.mxu0
      %v3724 = vadd.f32 0.0, %v3723
      %3725 = vdwg.mxu0
      %3726 = vmatpush.msra.mxu0 0.0
      %3727 = vmatpush.msra.mxu0 0.0
      %3728 = vmatpush.msra.mxu0 0.0
      %3729 = vmatpush.msra.mxu0 0.0
      %3730 = vmatpush.msra.mxu0 0.0
      %3731 = vmatpush.msra.mxu0 0.0
      %3732 = vmatpush.msra.mxu0 0.0
      %3733 = vmatpush.msra.mxu0 0.0
      %3734 = vmatpush.msra.mxu0 0.0
      %3735 = vmatpush.msra.mxu0 0.0
      %3736 = vmatpush.msra.mxu0 0.0
      %3737 = vmatpush.msra.mxu0 0.0
      %3738 = vmatpush.msra.mxu0 0.0
      %3739 = vmatpush.msra.mxu0 0.0
      %3740 = vmatpush.msra.mxu0 0.0
      %3741 = vmatpush.msra.mxu0 %v3664
      %3742 = vmatmul.f32.gmra.mxu0 %v3652
      %v3743 = vpop.f32.mrf.mxu0
      %v3744 = vadd.f32 0.0, %v3743
      %3745 = vdwg.mxu0
      %v3746 = vadd.f32 %v3610, %v3684
      %v3747 = vadd.f32 %v3611, %v3704
      %v3748 = vadd.f32 %v3612, %v3724
      %v3749 = vadd.f32 %v3613, %v3744
      %3750 = vst [vmem:[#allocation1] ss:$2 sm:$0xff] %v231
      %s3751 = scalar_lea.vmem [#allocation1], 16
      %3752 = vst [vmem:[%s3751] ss:$2 sm:$0xff] %v232
      %v3753 = vld.sshfl [vmem:[#allocation1] sm:$0xff pattern:$0x75316420]
      %v3754 = vld.sshfl [vmem:[#allocation1 + $0x8] sm:$0xff pattern:$0x75316420]
      %v3755 = vld.sshfl [vmem:[#allocation1 + $0x10] sm:$0xff pattern:$0x75316420]
      %v3756 = vld.sshfl [vmem:[#allocation1 + $0x18] sm:$0xff pattern:$0x75316420]
      %3761 = vrot.lane.b32.xlu0 %v3753, 55
      %v3762 = vpop.permute.xlu0 %3761
      %3763 = vrot.lane.b32.xlu0 %v3754, 55
      %v3764 = vpop.permute.xlu0 %3763
      %3765 = vrot.lane.b32.xlu0 %v3755, 55
      %v3766 = vpop.permute.xlu0 %3765
      %3767 = vrot.lane.b32.xlu0 %v3756, 55
      %v3768 = vpop.permute.xlu0 %3767
      %v3769 = vsel %vm1345, %v3766, %v3768
      %v3770 = vsel %vm1345, %v3764, %v3766
      %v3771 = vsel %vm1345, %v3762, %v3764
      %v3772 = vsel %vm1345, %v3768, %v3762
      %v3773 = vsel %vm229, 1, 0
      %v3774 = vperm.slane %v3773, 0
      %v3775 = vperm.slane %v3773, 1
      %v3776 = vperm.slane %v3773, 2
      %v3777 = vperm.slane %v3773, 3
      %vm3778 = vcmp.eq.s32.totalorder %v3774, 1
      %vm3779 = vcmp.eq.s32.totalorder %v3775, 1
      %vm3780 = vcmp.eq.s32.totalorder %v3776, 1
      %vm3781 = vcmp.eq.s32.totalorder %v3777, 1
      %v3782 = vsel %vm3778, %v3771, 0.0
      %v3783 = vsel %vm3779, %v3770, 0.0
      %v3784 = vsel %vm3780, %v3769, 0.0
      %v3785 = vsel %vm3781, %v3772, 0.0
      %3786 = vrot.lane.b32.xlu0 %v208, 24
      %v3787 = vpop.permute.xlu0 %3786
      %v3788 = vsel %vm314, %v3787, 0
      %v3791 = vsel %vm317, %v3782, 0
      %v3794 = vsel %vm317, %v3783, 0
      %v3797 = vsel %vm317, %v3784, 0
      %v3800 = vsel %vm317, %v3785, 0
      %3802 = vmatpush.msra.mxu0 0.0
      %3803 = vmatpush.msra.mxu0 0.0
      %3804 = vmatpush.msra.mxu0 0.0
      %3805 = vmatpush.msra.mxu0 0.0
      %3806 = vmatpush.msra.mxu0 0.0
      %3807 = vmatpush.msra.mxu0 0.0
      %3808 = vmatpush.msra.mxu0 0.0
      %3809 = vmatpush.msra.mxu0 0.0
      %3810 = vmatpush.msra.mxu0 0.0
      %3811 = vmatpush.msra.mxu0 0.0
      %3812 = vmatpush.msra.mxu0 0.0
      %3813 = vmatpush.msra.mxu0 0.0
      %3814 = vmatpush.msra.mxu0 0.0
      %3815 = vmatpush.msra.mxu0 0.0
      %3816 = vmatpush.msra.mxu0 0.0
      %3817 = vmatpush.msra.mxu0 %v3791
      %3818 = vmatmul.f32.gmra.mxu0 %v3788
      %v3819 = vpop.f32.mrf.mxu0
      %v3820 = vadd.f32 0.0, %v3819
      %3821 = vdwg.mxu0
      %3822 = vmatpush.msra.mxu0 0.0
      %3823 = vmatpush.msra.mxu0 0.0
      %3824 = vmatpush.msra.mxu0 0.0
      %3825 = vmatpush.msra.mxu0 0.0
      %3826 = vmatpush.msra.mxu0 0.0
      %3827 = vmatpush.msra.mxu0 0.0
      %3828 = vmatpush.msra.mxu0 0.0
      %3829 = vmatpush.msra.mxu0 0.0
      %3830 = vmatpush.msra.mxu0 0.0
      %3831 = vmatpush.msra.mxu0 0.0
      %3832 = vmatpush.msra.mxu0 0.0
      %3833 = vmatpush.msra.mxu0 0.0
      %3834 = vmatpush.msra.mxu0 0.0
      %3835 = vmatpush.msra.mxu0 0.0
      %3836 = vmatpush.msra.mxu0 0.0
      %3837 = vmatpush.msra.mxu0 %v3794
      %3838 = vmatmul.f32.gmra.mxu0 %v3788
      %v3839 = vpop.f32.mrf.mxu0
      %v3840 = vadd.f32 0.0, %v3839
      %3841 = vdwg.mxu0
      %3842 = vmatpush.msra.mxu0 0.0
      %3843 = vmatpush.msra.mxu0 0.0
      %3844 = vmatpush.msra.mxu0 0.0
      %3845 = vmatpush.msra.mxu0 0.0
      %3846 = vmatpush.msra.mxu0 0.0
      %3847 = vmatpush.msra.mxu0 0.0
      %3848 = vmatpush.msra.mxu0 0.0
      %3849 = vmatpush.msra.mxu0 0.0
      %3850 = vmatpush.msra.mxu0 0.0
      %3851 = vmatpush.msra.mxu0 0.0
      %3852 = vmatpush.msra.mxu0 0.0
      %3853 = vmatpush.msra.mxu0 0.0
      %3854 = vmatpush.msra.mxu0 0.0
      %3855 = vmatpush.msra.mxu0 0.0
      %3856 = vmatpush.msra.mxu0 0.0
      %3857 = vmatpush.msra.mxu0 %v3797
      %3858 = vmatmul.f32.gmra.mxu0 %v3788
      %v3859 = vpop.f32.mrf.mxu0
      %v3860 = vadd.f32 0.0, %v3859
      %3861 = vdwg.mxu0
      %3862 = vmatpush.msra.mxu0 0.0
      %3863 = vmatpush.msra.mxu0 0.0
      %3864 = vmatpush.msra.mxu0 0.0
      %3865 = vmatpush.msra.mxu0 0.0
      %3866 = vmatpush.msra.mxu0 0.0
      %3867 = vmatpush.msra.mxu0 0.0
      %3868 = vmatpush.msra.mxu0 0.0
      %3869 = vmatpush.msra.mxu0 0.0
      %3870 = vmatpush.msra.mxu0 0.0
      %3871 = vmatpush.msra.mxu0 0.0
      %3872 = vmatpush.msra.mxu0 0.0
      %3873 = vmatpush.msra.mxu0 0.0
      %3874 = vmatpush.msra.mxu0 0.0
      %3875 = vmatpush.msra.mxu0 0.0
      %3876 = vmatpush.msra.mxu0 0.0
      %3877 = vmatpush.msra.mxu0 %v3800
      %3878 = vmatmul.f32.gmra.mxu0 %v3788
      %v3879 = vpop.f32.mrf.mxu0
      %v3880 = vadd.f32 0.0, %v3879
      %3881 = vdwg.mxu0
      %v3882 = vadd.f32 %v3746, %v3820
      %v3883 = vadd.f32 %v3747, %v3840
      %v3884 = vadd.f32 %v3748, %v3860
      %v3885 = vadd.f32 %v3749, %v3880
      %3887 = vset.pattern.permute.xlu0 0
      %3888 = vperm.xlu0 %3887, %v230
      %v3889 = vpop.permute.xlu0 %3888
      %v3891 = vadd.f32 %v3882, %v3889
      %v3892 = vadd.f32 %v3883, %v3889
      %v3893 = vadd.f32 %v3884, %v3889
      %v3894 = vadd.f32 %v3885, %v3889
      %v3895 = vmax.f32 %v3891, 0.0
      %v3896 = vmax.f32 %v3892, 0.0
      %v3897 = vmax.f32 %v3893, 0.0
      %v3898 = vmax.f32 %v3894, 0.0
      %v3903 = vrot.slane %v3896, 4
      %v3904 = vrot.slane %v3898, 4
      %v3905 = vsel %vm317, %v3895, %v3903
      %v3906 = vsel %vm317, %v3897, %v3904
      %3909 = vst [vmem:[%s197] sm:$0xff] %v3905
      %3910 = vst [vmem:[%s197 + $0x8] sm:$0xff] %v3906
      %p3911 = scmp.lt.s32.totalorder %s15, 1
      %s3912 = scalar_select %p3911, %s15, 1
      %s3913 = smul.addr %s3912, 4
      %s3914 = smul.addr %s3913, 4
      %s3915 = scalar_lea.vmem %s4, %s3914
      // Predicated region
      $region37: #{three_ds2t_forward.1} parent=35 // pred_check
        %p3916 = pneg %p122
      $region38: #{three_ds2t_forward.1} parent=35 // pred_check_branch
        %3918 = sbr.rel (%p3916) target = $region40
      $region39: #{three_ds2t_forward.1} parent=35 // pred_region
        _
      $region40: #{three_ds2t_forward.1} parent=35 // pred_fallthru
        _
    $region36: #{three_ds2t_forward.1} parent=5 // pred_fallthru
      _
    %p3919 = scmp.le.s32.totalorder 2, %s10
    // Predicated region
    $region41: #{three_ds2t_forward.1} parent=5 // pred_check
      %p3920 = pneg %p3919
    $region42: #{three_ds2t_forward.1} parent=5 // pred_check_branch
      %3922 = sbr.rel (%p3920) target = $region44
    $region43: #{three_ds2t_forward.1} parent=5 // pred_region
      %s3923 = ssub.s32 %s10, 2
      // Predicated region
      $region45: #{three_ds2t_forward.1} parent=43 // pred_check
        %p3924 = pneg %p128
      $region46: #{three_ds2t_forward.1} parent=43 // pred_check_branch
        %3926 = sbr.rel (%p3924) target = $region48
      $region47: #{three_ds2t_forward.1} parent=43 // pred_region
        %p3927 = scmp.lt.s32.totalorder %s16, 1
        %s3928 = scalar_select %p3927, %s16, 1
        %s3929 = smul.addr %s3928, 4
        %s3930 = smul.addr %s3929, 4
        %s3931 = scalar_lea.vmem %s4, %s3930
      $region48: #{three_ds2t_forward.1} parent=43 // pred_fallthru
        _
    $region44: #{three_ds2t_forward.1} parent=5 // pred_fallthru
      _
  $region6: #{three_ds2t_forward.1} parent=0 // loop_footer
    %s14 = sadd.s32 1, %s10
  $region7: #{three_ds2t_forward.1} parent=0 // loop_footer_branch
    %9 = sbr.rel target = $region3
  $region8: #{three_ds2t_forward.1} parent=0 // loop_exit
    _

</llo_original>
